<compile_context>
chip_gen: v7x
topology: tpu7x:2x2x1
jax: 0.10.0
libtpu: 0.0.40
codegen_flags: <defaults>
</compile_context>

<pallas_src>
import functools

import jax
import jax.numpy as jnp
import numpy as np
from jax.experimental import pallas as pl
from jax.experimental.pallas import tpu as pltpu

LN_EPS = 1e-5  # PyTorch nn.LayerNorm default


# ---------------------------------------------------------------------------
# helpers (host / XLA side)
# ---------------------------------------------------------------------------
def window_partition(x, ws):
    B, H, W, C = x.shape
    x = x.reshape(B, H // ws, ws, W // ws, ws, C)
    return x.transpose(0, 1, 3, 2, 4, 5).reshape(-1, ws, ws, C)


def window_reverse(windows, ws, H, W):
    B = windows.shape[0] // (H * W // ws // ws)
    x = windows.reshape(B, H // ws, W // ws, ws, ws, -1)
    return x.transpose(0, 1, 3, 2, 4, 5).reshape(B, H, W, -1)


def relative_position_bias(table, ws, num_heads):
    """table: ((2*ws-1)^2, num_heads) -> (num_heads, N, N)."""
    coords = jnp.stack(
        jnp.meshgrid(jnp.arange(ws), jnp.arange(ws), indexing="ij"))
    cf = coords.reshape(2, -1)
    rel = cf[:, :, None] - cf[:, None, :]
    rel = rel.transpose(1, 2, 0)
    idx = (rel[..., 0] + ws - 1) * (2 * ws - 1) + (rel[..., 1] + ws - 1)
    N = ws * ws
    bias = table[idx.reshape(-1)].reshape(N, N, num_heads)
    return bias.transpose(2, 0, 1)


def _gelu_exact(x):
    """erf-based GELU via the Abramowitz-Stegun 7.1.26 polynomial.

    |erf error| < 1.5e-7, so this matches PyTorch's exact nn.GELU to float32
    precision while only using mul/add/exp/where (all safe Mosaic lowerings).
    """
    z = x * 0.7071067811865476
    a = jnp.abs(z)
    t = 1.0 / (1.0 + 0.3275911 * a)
    poly = t * (0.254829592 +
                t * (-0.284496736 +
                     t * (1.421413741 +
                          t * (-1.453152027 + t * 1.061405429))))
    erf_abs = 1.0 - poly * jnp.exp(-a * a)
    erf = jnp.where(z < 0.0, -erf_abs, erf_abs)
    return 0.5 * x * (1.0 + erf)


# ---------------------------------------------------------------------------
# Fused kernel: (in-VMEM windowing) + LN1 + W-MSA + residual + LN2 + MLP + residual
#   one grid step handles wbi * nWw windows (= R token rows)
# ---------------------------------------------------------------------------
def _fused_block_kernel(xw_ref, wq_ref, wk_ref, wv_ref, pw_ref, w1_ref, w2_ref,
                        bias_ref, vec_ref, fb1_ref, o_ref, attn_acc,
                        *, num_heads, head_dim, wbi, n_ww, ws, n_tok):
    C = num_heads * head_dim
    WN = wbi * n_tok            # token rows per window-column slab
    WB = wbi * n_ww             # windows per grid step
    R = WB * n_tok              # token rows per grid step

    # resident bias / affine vectors, packed as one (9, C) operand
    bq, bk, bv = vec_ref[0:1], vec_ref[1:2], vec_ref[2:3]
    pb, fb2 = vec_ref[3:4], vec_ref[4:5]
    g1, b1 = vec_ref[5:6], vec_ref[6:7]
    g2, b2 = vec_ref[7:8], vec_ref[8:9]

    # ---- in-VMEM window regrouping (replaces the HBM window_partition pass) ----
    # xw_ref block: (wbi, ws, nWw, ws, C).  Window column j -> rows
    # [j*WN, (j+1)*WN) of x2, in window-contiguous token order.
    xcols = []
    for j in range(n_ww):
        xj = xw_ref[:, :, j, :, :]                  # (wbi, ws, ws, C)
        xcols.append(xj.reshape(WN, C))             # lane dim (C) preserved
    x2 = jnp.concatenate(xcols, axis=0) if n_ww > 1 else xcols[0]   # (R, C) f32

    # ---- LayerNorm 1 (per-token, f32) ----
    mu = jnp.mean(x2, axis=-1, keepdims=True)
    var = jnp.mean((x2 - mu) ** 2, axis=-1, keepdims=True)
    xn = (x2 - mu) * jax.lax.rsqrt(var + LN_EPS) * g1 + b1
    xn_bf = xn.astype(jnp.bfloat16)

    # ---- QKV projection (attention scale pre-folded into wq / bq) ----
    q = jnp.dot(xn_bf, wq_ref[...], preferred_element_type=jnp.float32) + bq
    k = jnp.dot(xn_bf, wk_ref[...], preferred_element_type=jnp.float32) + bk
    v = jnp.dot(xn_bf, wv_ref[...], preferred_element_type=jnp.float32) + bv

    q3 = q.reshape(WB, n_tok, C)
    k3 = k.reshape(WB, n_tok, C)
    v3 = v.reshape(WB, n_tok, C)

    # ---- multi-head attention, batched over windows.  Each head's output is
    #      written into its column slab of a bf16 scratch so that the output
    #      projection is a single full-depth (R, C) @ (C, C) matmul. ----
    for h in range(num_heads):
        lo, hi = h * head_dim, (h + 1) * head_dim
        qh = q3[:, :, lo:hi].astype(jnp.bfloat16)   # (WB, N, hd)
        kh = k3[:, :, lo:hi].astype(jnp.bfloat16)
        vh = v3[:, :, lo:hi].astype(jnp.bfloat16)

        s = jnp.einsum("bnd,bmd->bnm", qh, kh,
                       preferred_element_type=jnp.float32)          # (WB, N, N)
        s = s + bias_ref[h][None, :, :]
        s = s - jnp.max(s, axis=-1, keepdims=True)
        p = jnp.exp(s)
        p = p * pl.reciprocal(jnp.sum(p, axis=-1, keepdims=True), approx=True)

        oh = jnp.einsum("bnm,bmd->bnd", p.astype(jnp.bfloat16), vh,
                        preferred_element_type=jnp.float32)          # (WB, N, hd)
        attn_acc[:, lo:hi] = oh.reshape(R, head_dim).astype(jnp.bfloat16)

    attn_out = jnp.dot(attn_acc[...], pw_ref[...],
                       preferred_element_type=jnp.float32) + pb

    # ---- residual 1 ----
    y = x2 + attn_out

    # ---- LayerNorm 2 + MLP (fc1 / exact GELU / fc2) + residual 2 ----
    mu2 = jnp.mean(y, axis=-1, keepdims=True)
    var2 = jnp.mean((y - mu2) ** 2, axis=-1, keepdims=True)
    z = (y - mu2) * jax.lax.rsqrt(var2 + LN_EPS) * g2 + b2

    hmid = jnp.dot(z.astype(jnp.bfloat16), w1_ref[...],
                   preferred_element_type=jnp.float32) + fb1_ref[...]
    hmid = _gelu_exact(hmid)
    out = y + jnp.dot(hmid.astype(jnp.bfloat16), w2_ref[...],
                      preferred_element_type=jnp.float32) + fb2

    # ---- scatter window-contiguous rows back to the raster layout and store
    #      (replaces the HBM window_reverse pass) ----
    for j in range(n_ww):
        oj = out[j * WN:(j + 1) * WN, :]            # (WN, C)
        o_ref[:, :, j, :, :] = oj.reshape(wbi, ws, ws, C)


# ---------------------------------------------------------------------------
# Full block forward (shift_size = 0, mask = None)
# ---------------------------------------------------------------------------
def swin_transformer_block(x, x_size, params, *, num_heads, window_size):
    H, W = x_size
    B, L, C = x.shape
    ws = window_size
    assert L == H * W and H % ws == 0 and W % ws == 0 and C % num_heads == 0
    N = ws * ws
    nWh, nWw = H // ws, W // ws
    head_dim = C // num_heads
    scale = head_dim ** (-0.5)

    # --- one-time parameter prep (outside the kernel) ---
    rel_bias = relative_position_bias(
        params["rel_table"], ws, num_heads).astype(jnp.float32)    # (nh, N, N)

    qkv_w, qkv_b = params["qkv_w"], params["qkv_b"]
    wq = (qkv_w[:, :C] * scale).astype(jnp.bfloat16)   # fold attention scale into Q
    wk = qkv_w[:, C:2 * C].astype(jnp.bfloat16)
    wv = qkv_w[:, 2 * C:].astype(jnp.bfloat16)
    pw = params["proj_w"].astype(jnp.bfloat16)
    w1 = params["fc1_w"].astype(jnp.bfloat16)
    w2 = params["fc2_w"].astype(jnp.bfloat16)
    Hd = w1.shape[1]

    # all (C,)-sized vectors packed into ONE resident operand
    vecs = jnp.stack([
        qkv_b[:C] * scale,            # 0: q bias (scaled)
        qkv_b[C:2 * C],               # 1: k bias
        qkv_b[2 * C:],                # 2: v bias
        params["proj_b"],             # 3: attn proj bias
        params["fc2_b"],              # 4: fc2 bias
        params["g1"], params["b1"],   # 5, 6: LN1 affine
        params["g2"], params["b2"],   # 7, 8: LN2 affine
    ], axis=0).astype(jnp.float32)                        # (9, C)
    fb1 = params["fc1_b"].reshape(1, Hd).astype(jnp.float32)

    # FREE reshape (no data movement): (B, L, C) == (B*nWh, ws, nWw, ws, C).
    # The per-window permutation happens inside the kernel, in VMEM.
    Bi = B * nWh
    xr = x.reshape(Bi, ws, nWw, ws, C)

    # --- block sizing: target ~1024 token rows per grid step, bounded by a
    #     VMEM budget; keep >= 2 grid steps when possible (pipelining + the
    #     two v7x TensorCores).
    rows_per_unit = ws * W                      # tokens per unit of the leading axis
    target_rows = 1024
    bytes_per_row = 4 * (12 * C + Hd + 4 * N)   # rough live f32/bf16 bytes per token
    vmem_budget = 40 * 1024 * 1024
    wbi = 1
    for d in range(1, Bi + 1):
        if Bi % d:
            continue
        rows = d * rows_per_unit
        if rows <= max(target_rows, rows_per_unit) and rows * bytes_per_row <= vmem_budget:
            wbi = d
    if Bi // wbi < 2 and wbi % 2 == 0:
        wbi //= 2
    # TODO(synk): for very large W a single window-row stripe may exceed the
    #             VMEM budget; a 2-D (row, column) blocking would be needed then.

    R = wbi * nWw * N                           # token rows per grid step

    kernel = functools.partial(
        _fused_block_kernel, num_heads=num_heads, head_dim=head_dim,
        wbi=wbi, n_ww=nWw, ws=ws, n_tok=N)

    cw = lambda i: (0, 0)       # resident operands: constant index_map -> stay in VMEM
    out = pl.pallas_call(
        kernel,
        out_shape=jax.ShapeDtypeStruct((Bi, ws, nWw, ws, C), jnp.float32),
        grid=(Bi // wbi,),
        in_specs=[
            pl.BlockSpec((wbi, ws, nWw, ws, C), lambda i: (i, 0, 0, 0, 0)),  # x
            pl.BlockSpec((C, C), cw),                                   # wq (scaled)
            pl.BlockSpec((C, C), cw),                                   # wk
            pl.BlockSpec((C, C), cw),                                   # wv
            pl.BlockSpec((C, C), cw),                                   # proj w
            pl.BlockSpec((C, Hd), cw),                                  # fc1 w
            pl.BlockSpec((Hd, C), cw),                                  # fc2 w
            pl.BlockSpec((num_heads, N, N), lambda i: (0, 0, 0)),       # rel-pos bias
            pl.BlockSpec((9, C), cw),                                   # packed vectors
            pl.BlockSpec((1, Hd), cw),                                  # fc1 bias
        ],
        out_specs=pl.BlockSpec((wbi, ws, nWw, ws, C), lambda i: (i, 0, 0, 0, 0)),
        scratch_shapes=[pltpu.VMEM((R, C), jnp.bfloat16)],
        compiler_params=pltpu.CompilerParams(
            dimension_semantics=("parallel",),
            vmem_limit_bytes=48 * 1024 * 1024),
    )(xr, wq, wk, wv, pw, w1, w2, rel_bias, vecs, fb1)

    return out.reshape(B, L, C)


# ---------------------------------------------------------------------------
# Pure-JAX reference for verification
# ---------------------------------------------------------------------------
def reference(x, x_size, params, *, num_heads, window_size):
    H, W = x_size
    B, L, C = x.shape
    hd = C // num_heads
    scale = hd ** (-0.5)

    def ln(v, g, b):
        mu = v.mean(-1, keepdims=True)
        var = ((v - mu) ** 2).mean(-1, keepdims=True)
        return (v - mu) / jnp.sqrt(var + LN_EPS) * g + b

    shortcut = x
    xn = ln(x, params["g1"], params["b1"])
    xw = window_partition(xn.reshape(B, H, W, C), window_size)
    xw = xw.reshape(-1, window_size * window_size, C)
    Bw, N, _ = xw.shape

    qkv = xw @ params["qkv_w"] + params["qkv_b"]
    qkv = qkv.reshape(Bw, N, 3, num_heads, hd).transpose(2, 0, 3, 1, 4)
    q, k, v = qkv[0] * scale, qkv[1], qkv[2]
    rel_bias = relative_position_bias(params["rel_table"], window_size, num_heads)
    attn = jnp.einsum("bhnd,bhmd->bhnm", q, k) + rel_bias[None]
    attn = jax.nn.softmax(attn, axis=-1)
    o = jnp.einsum("bhnm,bhmd->bhnd", attn, v).transpose(0, 2, 1, 3).reshape(Bw, N, C)
    o = o @ params["proj_w"] + params["proj_b"]
    o = window_reverse(o.reshape(-1, window_size, window_size, C),
                       window_size, H, W).reshape(B, L, C)

    y = shortcut + o
    z = ln(y, params["g2"], params["b2"])
    h = jax.nn.gelu(z @ params["fc1_w"] + params["fc1_b"], approximate=False)
    return y + h @ params["fc2_w"] + params["fc2_b"]


# ---------------------------------------------------------------------------
if __name__ == "__main__":
    B, H, W = 2, 8, 8
    dim = 32
    num_heads = 4
    window_size = 4
    mlp_ratio = 2.0
    hidden = int(dim * mlp_ratio)
    L = H * W

    key = jax.random.PRNGKey(0)
    ks = jax.random.split(key, 12)

    x = jax.random.normal(ks[0], (B, L, dim), jnp.float32)

    params = {
        "g1": jnp.ones((dim,), jnp.float32),
        "b1": jnp.zeros((dim,), jnp.float32),
        "qkv_w": 0.02 * jax.random.normal(ks[1], (dim, 3 * dim), jnp.float32),
        "qkv_b": 0.01 * jax.random.normal(ks[2], (3 * dim,), jnp.float32),
        "rel_table": 0.02 * jax.random.normal(
            ks[3], ((2 * window_size - 1) ** 2, num_heads), jnp.float32),
        "proj_w": 0.02 * jax.random.normal(ks[4], (dim, dim), jnp.float32),
        "proj_b": 0.01 * jax.random.normal(ks[5], (dim,), jnp.float32),
        "g2": jnp.ones((dim,), jnp.float32),
        "b2": jnp.zeros((dim,), jnp.float32),
        "fc1_w": 0.02 * jax.random.normal(ks[6], (dim, hidden), jnp.float32),
        "fc1_b": 0.01 * jax.random.normal(ks[7], (hidden,), jnp.float32),
        "fc2_w": 0.02 * jax.random.normal(ks[8], (hidden, dim), jnp.float32),
        "fc2_b": 0.01 * jax.random.normal(ks[9], (dim,), jnp.float32),
    }

    out = swin_transformer_block(
        x, (H, W), params, num_heads=num_heads, window_size=window_size)
    out = jax.block_until_ready(out)

    ref = jax.block_until_ready(
        reference(x, (H, W), params, num_heads=num_heads, window_size=window_size))

    np.testing.assert_allclose(np.asarray(out), np.asarray(ref),
                               rtol=2e-2, atol=2e-2)
    print("KERNEL_OK")
</pallas_src>

<mosaic_0001>
module attributes {stable_mosaic.version = 11 : i64} {
  func.func @_fused_block_kernel(%arg0: i32, %arg1: memref<2x4x2x4x32xf32, #tpu.memory_space<vmem>>, %arg2: memref<32x32xbf16, #tpu.memory_space<vmem>>, %arg3: memref<32x32xbf16, #tpu.memory_space<vmem>>, %arg4: memref<32x32xbf16, #tpu.memory_space<vmem>>, %arg5: memref<32x32xbf16, #tpu.memory_space<vmem>>, %arg6: memref<32x64xbf16, #tpu.memory_space<vmem>>, %arg7: memref<64x32xbf16, #tpu.memory_space<vmem>>, %arg8: memref<4x16x16xf32, #tpu.memory_space<vmem>>, %arg9: memref<9x32xf32, #tpu.memory_space<vmem>>, %arg10: memref<1x64xf32, #tpu.memory_space<vmem>>, %arg11: memref<2x4x2x4x32xf32, #tpu.memory_space<vmem>>, %arg12: memref<64x32xbf16, #tpu.memory_space<vmem>>) attributes {dimension_semantics = [#tpu.dimension_semantics<parallel>], iteration_bounds = array<i64: 2>, scalar_prefetch = 0 : i64, scratch_operands = 1 : i64, tpu.core_type = #tpu.core_type<tc>, window_params = [{transform_indices = @transform_0, window_bounds = array<i64: 2, 4, 2, 4, 32>}, {pipeline_mode = #tpu.pipeline_mode<synchronous>, transform_indices = @transform_1, window_bounds = array<i64: 32, 32>}, {pipeline_mode = #tpu.pipeline_mode<synchronous>, transform_indices = @transform_2, window_bounds = array<i64: 32, 32>}, {pipeline_mode = #tpu.pipeline_mode<synchronous>, transform_indices = @transform_3, window_bounds = array<i64: 32, 32>}, {pipeline_mode = #tpu.pipeline_mode<synchronous>, transform_indices = @transform_4, window_bounds = array<i64: 32, 32>}, {pipeline_mode = #tpu.pipeline_mode<synchronous>, transform_indices = @transform_5, window_bounds = array<i64: 32, 64>}, {pipeline_mode = #tpu.pipeline_mode<synchronous>, transform_indices = @transform_6, window_bounds = array<i64: 64, 32>}, {pipeline_mode = #tpu.pipeline_mode<synchronous>, transform_indices = @transform_7, window_bounds = array<i64: 4, 16, 16>}, {pipeline_mode = #tpu.pipeline_mode<synchronous>, transform_indices = @transform_8, window_bounds = array<i64: 9, 32>}, {pipeline_mode = #tpu.pipeline_mode<synchronous>, transform_indices = @transform_9, window_bounds = array<i64: 1, 64>}, {transform_indices = @transform_10, window_bounds = array<i64: 2, 4, 2, 4, 32>}]} {
    %c0 = arith.constant 0 : index
    %c0_0 = arith.constant 0 : index
    %0 = vector.load %arg9[%c0, %c0_0] : memref<9x32xf32, #tpu.memory_space<vmem>>, vector<1x32xf32>
    %c1 = arith.constant 1 : index
    %c0_1 = arith.constant 0 : index
    %1 = vector.load %arg9[%c1, %c0_1] : memref<9x32xf32, #tpu.memory_space<vmem>>, vector<1x32xf32>
    %c2 = arith.constant 2 : index
    %c0_2 = arith.constant 0 : index
    %2 = vector.load %arg9[%c2, %c0_2] : memref<9x32xf32, #tpu.memory_space<vmem>>, vector<1x32xf32>
    %c3 = arith.constant 3 : index
    %c0_3 = arith.constant 0 : index
    %3 = vector.load %arg9[%c3, %c0_3] : memref<9x32xf32, #tpu.memory_space<vmem>>, vector<1x32xf32>
    %c4 = arith.constant 4 : index
    %c0_4 = arith.constant 0 : index
    %4 = vector.load %arg9[%c4, %c0_4] : memref<9x32xf32, #tpu.memory_space<vmem>>, vector<1x32xf32>
    %c5 = arith.constant 5 : index
    %c0_5 = arith.constant 0 : index
    %5 = vector.load %arg9[%c5, %c0_5] : memref<9x32xf32, #tpu.memory_space<vmem>>, vector<1x32xf32>
    %c6 = arith.constant 6 : index
    %c0_6 = arith.constant 0 : index
    %6 = vector.load %arg9[%c6, %c0_6] : memref<9x32xf32, #tpu.memory_space<vmem>>, vector<1x32xf32>
    %c7 = arith.constant 7 : index
    %c0_7 = arith.constant 0 : index
    %7 = vector.load %arg9[%c7, %c0_7] : memref<9x32xf32, #tpu.memory_space<vmem>>, vector<1x32xf32>
    %c8 = arith.constant 8 : index
    %c0_8 = arith.constant 0 : index
    %8 = vector.load %arg9[%c8, %c0_8] : memref<9x32xf32, #tpu.memory_space<vmem>>, vector<1x32xf32>
    %c0_9 = arith.constant 0 : index
    %c0_10 = arith.constant 0 : index
    %c0_11 = arith.constant 0 : index
    %c0_12 = arith.constant 0 : index
    %c0_13 = arith.constant 0 : index
    %9 = vector.load %arg1[%c0_9, %c0_10, %c0_11, %c0_12, %c0_13] : memref<2x4x2x4x32xf32, #tpu.memory_space<vmem>>, vector<2x4x1x4x32xf32>
    %10 = vector.shape_cast %9 : vector<2x4x1x4x32xf32> to vector<2x4x4x32xf32>
    %11 = vector.shape_cast %10 : vector<2x4x4x32xf32> to vector<32x32xf32>
    %c0_14 = arith.constant 0 : index
    %c0_15 = arith.constant 0 : index
    %c1_16 = arith.constant 1 : index
    %c0_17 = arith.constant 0 : index
    %c0_18 = arith.constant 0 : index
    %12 = vector.load %arg1[%c0_14, %c0_15, %c1_16, %c0_17, %c0_18] : memref<2x4x2x4x32xf32, #tpu.memory_space<vmem>>, vector<2x4x1x4x32xf32>
    %13 = vector.shape_cast %12 : vector<2x4x1x4x32xf32> to vector<2x4x4x32xf32>
    %14 = vector.shape_cast %13 : vector<2x4x4x32xf32> to vector<32x32xf32>
    %15 = tpu.concatenate %11, %14 in 0 : vector<32x32xf32>, vector<32x32xf32> -> vector<64x32xf32>
    %cst = arith.constant dense<0.000000e+00> : vector<64xf32>
    %16 = vector.multi_reduction <add>, %15, %cst [1] : vector<64x32xf32> to vector<64xf32>
    %17 = vector.shape_cast %16 : vector<64xf32> to vector<64x1xf32>
    %cst_19 = arith.constant 3.200000e+01 : f32
    %18 = vector.broadcast %cst_19 : f32 to vector<64x1xf32>
    %19 = arith.divf %17, %18 : vector<64x1xf32>
    %20 = vector.broadcast %19 : vector<64x1xf32> to vector<64x32xf32>
    %21 = arith.subf %15, %20 : vector<64x32xf32>
    %22 = arith.mulf %21, %21 : vector<64x32xf32>
    %cst_20 = arith.constant dense<0.000000e+00> : vector<64xf32>
    %23 = vector.multi_reduction <add>, %22, %cst_20 [1] : vector<64x32xf32> to vector<64xf32>
    %24 = vector.shape_cast %23 : vector<64xf32> to vector<64x1xf32>
    %cst_21 = arith.constant 3.200000e+01 : f32
    %25 = vector.broadcast %cst_21 : f32 to vector<64x1xf32>
    %26 = arith.divf %24, %25 : vector<64x1xf32>
    %27 = vector.broadcast %19 : vector<64x1xf32> to vector<64x32xf32>
    %28 = arith.subf %15, %27 : vector<64x32xf32>
    %cst_22 = arith.constant 9.99999974E-6 : f32
    %29 = vector.broadcast %cst_22 : f32 to vector<64x1xf32>
    %30 = arith.addf %26, %29 : vector<64x1xf32>
    %31 = math.rsqrt %30 : vector<64x1xf32>
    %32 = vector.broadcast %31 : vector<64x1xf32> to vector<64x32xf32>
    %33 = arith.mulf %28, %32 : vector<64x32xf32>
    %34 = vector.broadcast %5 : vector<1x32xf32> to vector<64x32xf32>
    %35 = arith.mulf %33, %34 : vector<64x32xf32>
    %36 = vector.broadcast %6 : vector<1x32xf32> to vector<64x32xf32>
    %37 = arith.addf %35, %36 : vector<64x32xf32>
    %38 = arith.truncf %37 : vector<64x32xf32> to vector<64x32xbf16>
    %c0_23 = arith.constant 0 : index
    %c0_24 = arith.constant 0 : index
    %39 = vector.load %arg2[%c0_23, %c0_24] : memref<32x32xbf16, #tpu.memory_space<vmem>>, vector<32x32xbf16>
    %cst_25 = arith.constant dense<0.000000e+00> : vector<64x32xf32>
    %40 = tpu.matmul %38, %39, %cst_25 {dimension_numbers = #tpu.dot_dimension_numbers<[1], [0], [0], [1], [0, 0, 1, 1], [], []>} : vector<64x32xbf16>, vector<32x32xbf16>, vector<64x32xf32> -> vector<64x32xf32>
    %41 = vector.broadcast %0 : vector<1x32xf32> to vector<64x32xf32>
    %42 = arith.addf %40, %41 : vector<64x32xf32>
    %c0_26 = arith.constant 0 : index
    %c0_27 = arith.constant 0 : index
    %43 = vector.load %arg3[%c0_26, %c0_27] : memref<32x32xbf16, #tpu.memory_space<vmem>>, vector<32x32xbf16>
    %cst_28 = arith.constant dense<0.000000e+00> : vector<64x32xf32>
    %44 = tpu.matmul %38, %43, %cst_28 {dimension_numbers = #tpu.dot_dimension_numbers<[1], [0], [0], [1], [0, 0, 1, 1], [], []>} : vector<64x32xbf16>, vector<32x32xbf16>, vector<64x32xf32> -> vector<64x32xf32>
    %45 = vector.broadcast %1 : vector<1x32xf32> to vector<64x32xf32>
    %46 = arith.addf %44, %45 : vector<64x32xf32>
    %c0_29 = arith.constant 0 : index
    %c0_30 = arith.constant 0 : index
    %47 = vector.load %arg4[%c0_29, %c0_30] : memref<32x32xbf16, #tpu.memory_space<vmem>>, vector<32x32xbf16>
    %cst_31 = arith.constant dense<0.000000e+00> : vector<64x32xf32>
    %48 = tpu.matmul %38, %47, %cst_31 {dimension_numbers = #tpu.dot_dimension_numbers<[1], [0], [0], [1], [0, 0, 1, 1], [], []>} : vector<64x32xbf16>, vector<32x32xbf16>, vector<64x32xf32> -> vector<64x32xf32>
    %49 = vector.broadcast %2 : vector<1x32xf32> to vector<64x32xf32>
    %50 = arith.addf %48, %49 : vector<64x32xf32>
    %51 = vector.shape_cast %42 : vector<64x32xf32> to vector<4x16x32xf32>
    %52 = vector.shape_cast %46 : vector<64x32xf32> to vector<4x16x32xf32>
    %53 = vector.shape_cast %50 : vector<64x32xf32> to vector<4x16x32xf32>
    %54 = vector.extract_strided_slice %51 {offsets = [0, 0, 0], sizes = [4, 16, 8], strides = [1, 1, 1]} : vector<4x16x32xf32> to vector<4x16x8xf32>
    %55 = arith.truncf %54 : vector<4x16x8xf32> to vector<4x16x8xbf16>
    %56 = vector.extract_strided_slice %52 {offsets = [0, 0, 0], sizes = [4, 16, 8], strides = [1, 1, 1]} : vector<4x16x32xf32> to vector<4x16x8xf32>
    %57 = arith.truncf %56 : vector<4x16x8xf32> to vector<4x16x8xbf16>
    %58 = vector.extract_strided_slice %53 {offsets = [0, 0, 0], sizes = [4, 16, 8], strides = [1, 1, 1]} : vector<4x16x32xf32> to vector<4x16x8xf32>
    %59 = arith.truncf %58 : vector<4x16x8xf32> to vector<4x16x8xbf16>
    "tpu.trace_start"() <{level = 10 : i32, message = "bnd,bmd->bnm"}> : () -> ()
    %cst_32 = arith.constant dense<0.000000e+00> : vector<4x16x16xf32>
    %60 = tpu.matmul %55, %57, %cst_32 {dimension_numbers = #tpu.dot_dimension_numbers<[2], [2], [1], [1], [0, 0, 0, 1, 1, 1], [0], [0]>} : vector<4x16x8xbf16>, vector<4x16x8xbf16>, vector<4x16x16xf32> -> vector<4x16x16xf32>
    "tpu.trace_stop"() : () -> ()
    %c0_33 = arith.constant 0 : index
    %c0_34 = arith.constant 0 : index
    %c0_35 = arith.constant 0 : index
    %61 = vector.load %arg8[%c0_33, %c0_34, %c0_35] : memref<4x16x16xf32, #tpu.memory_space<vmem>>, vector<1x16x16xf32>
    %62 = vector.shape_cast %61 : vector<1x16x16xf32> to vector<16x16xf32>
    %63 = vector.shape_cast %62 : vector<16x16xf32> to vector<1x16x16xf32>
    %64 = vector.broadcast %63 : vector<1x16x16xf32> to vector<4x16x16xf32>
    %65 = arith.addf %60, %64 : vector<4x16x16xf32>
    %cst_36 = arith.constant dense<0xFF800000> : vector<4x16xf32>
    %66 = vector.multi_reduction <maximumf>, %65, %cst_36 [2] : vector<4x16x16xf32> to vector<4x16xf32>
    %67 = vector.shape_cast %66 : vector<4x16xf32> to vector<4x16x1xf32>
    %68 = vector.broadcast %67 : vector<4x16x1xf32> to vector<4x16x16xf32>
    %69 = arith.subf %65, %68 : vector<4x16x16xf32>
    %70 = math.exp %69 : vector<4x16x16xf32>
    %cst_37 = arith.constant dense<0.000000e+00> : vector<4x16xf32>
    %71 = vector.multi_reduction <add>, %70, %cst_37 [2] : vector<4x16x16xf32> to vector<4x16xf32>
    %72 = vector.shape_cast %71 : vector<4x16xf32> to vector<4x16x1xf32>
    %73 = tpu.reciprocal %72 {approx = true} : vector<4x16x1xf32> -> vector<4x16x1xf32>
    %74 = vector.broadcast %73 : vector<4x16x1xf32> to vector<4x16x16xf32>
    %75 = arith.mulf %70, %74 : vector<4x16x16xf32>
    %76 = arith.truncf %75 : vector<4x16x16xf32> to vector<4x16x16xbf16>
    "tpu.trace_start"() <{level = 10 : i32, message = "bnm,bmd->bnd"}> : () -> ()
    %cst_38 = arith.constant dense<0.000000e+00> : vector<4x16x8xf32>
    %77 = tpu.matmul %76, %59, %cst_38 {dimension_numbers = #tpu.dot_dimension_numbers<[2], [1], [1], [2], [0, 0, 0, 1, 1, 2], [0], [0]>} : vector<4x16x16xbf16>, vector<4x16x8xbf16>, vector<4x16x8xf32> -> vector<4x16x8xf32>
    "tpu.trace_stop"() : () -> ()
    %78 = vector.shape_cast %77 : vector<4x16x8xf32> to vector<64x8xf32>
    %79 = arith.truncf %78 : vector<64x8xf32> to vector<64x8xbf16>
    %c0_39 = arith.constant 0 : index
    %c0_40 = arith.constant 0 : index
    %80 = vector.load %arg12[%c0_39, %c0_40] : memref<64x32xbf16, #tpu.memory_space<vmem>>, vector<64x8xbf16>
    tpu.vector_store %arg12[%c0_39, %c0_40], %79 {strides = array<i32>} : memref<64x32xbf16, #tpu.memory_space<vmem>>, vector<64x8xbf16>,
    %81 = vector.extract_strided_slice %51 {offsets = [0, 0, 8], sizes = [4, 16, 8], strides = [1, 1, 1]} : vector<4x16x32xf32> to vector<4x16x8xf32>
    %82 = arith.truncf %81 : vector<4x16x8xf32> to vector<4x16x8xbf16>
    %83 = vector.extract_strided_slice %52 {offsets = [0, 0, 8], sizes = [4, 16, 8], strides = [1, 1, 1]} : vector<4x16x32xf32> to vector<4x16x8xf32>
    %84 = arith.truncf %83 : vector<4x16x8xf32> to vector<4x16x8xbf16>
    %85 = vector.extract_strided_slice %53 {offsets = [0, 0, 8], sizes = [4, 16, 8], strides = [1, 1, 1]} : vector<4x16x32xf32> to vector<4x16x8xf32>
    %86 = arith.truncf %85 : vector<4x16x8xf32> to vector<4x16x8xbf16>
    "tpu.trace_start"() <{level = 10 : i32, message = "bnd,bmd->bnm"}> : () -> ()
    %cst_41 = arith.constant dense<0.000000e+00> : vector<4x16x16xf32>
    %87 = tpu.matmul %82, %84, %cst_41 {dimension_numbers = #tpu.dot_dimension_numbers<[2], [2], [1], [1], [0, 0, 0, 1, 1, 1], [0], [0]>} : vector<4x16x8xbf16>, vector<4x16x8xbf16>, vector<4x16x16xf32> -> vector<4x16x16xf32>
    "tpu.trace_stop"() : () -> ()
    %c1_42 = arith.constant 1 : index
    %c0_43 = arith.constant 0 : index
    %c0_44 = arith.constant 0 : index
    %88 = vector.load %arg8[%c1_42, %c0_43, %c0_44] : memref<4x16x16xf32, #tpu.memory_space<vmem>>, vector<1x16x16xf32>
    %89 = vector.shape_cast %88 : vector<1x16x16xf32> to vector<16x16xf32>
    %90 = vector.shape_cast %89 : vector<16x16xf32> to vector<1x16x16xf32>
    %91 = vector.broadcast %90 : vector<1x16x16xf32> to vector<4x16x16xf32>
    %92 = arith.addf %87, %91 : vector<4x16x16xf32>
    %cst_45 = arith.constant dense<0xFF800000> : vector<4x16xf32>
    %93 = vector.multi_reduction <maximumf>, %92, %cst_45 [2] : vector<4x16x16xf32> to vector<4x16xf32>
    %94 = vector.shape_cast %93 : vector<4x16xf32> to vector<4x16x1xf32>
    %95 = vector.broadcast %94 : vector<4x16x1xf32> to vector<4x16x16xf32>
    %96 = arith.subf %92, %95 : vector<4x16x16xf32>
    %97 = math.exp %96 : vector<4x16x16xf32>
    %cst_46 = arith.constant dense<0.000000e+00> : vector<4x16xf32>
    %98 = vector.multi_reduction <add>, %97, %cst_46 [2] : vector<4x16x16xf32> to vector<4x16xf32>
    %99 = vector.shape_cast %98 : vector<4x16xf32> to vector<4x16x1xf32>
    %100 = tpu.reciprocal %99 {approx = true} : vector<4x16x1xf32> -> vector<4x16x1xf32>
    %101 = vector.broadcast %100 : vector<4x16x1xf32> to vector<4x16x16xf32>
    %102 = arith.mulf %97, %101 : vector<4x16x16xf32>
    %103 = arith.truncf %102 : vector<4x16x16xf32> to vector<4x16x16xbf16>
    "tpu.trace_start"() <{level = 10 : i32, message = "bnm,bmd->bnd"}> : () -> ()
    %cst_47 = arith.constant dense<0.000000e+00> : vector<4x16x8xf32>
    %104 = tpu.matmul %103, %86, %cst_47 {dimension_numbers = #tpu.dot_dimension_numbers<[2], [1], [1], [2], [0, 0, 0, 1, 1, 2], [0], [0]>} : vector<4x16x16xbf16>, vector<4x16x8xbf16>, vector<4x16x8xf32> -> vector<4x16x8xf32>
    "tpu.trace_stop"() : () -> ()
    %105 = vector.shape_cast %104 : vector<4x16x8xf32> to vector<64x8xf32>
    %106 = arith.truncf %105 : vector<64x8xf32> to vector<64x8xbf16>
    %c0_48 = arith.constant 0 : index
    %c8_49 = arith.constant 8 : index
    %107 = vector.load %arg12[%c0_48, %c8_49] : memref<64x32xbf16, #tpu.memory_space<vmem>>, vector<64x8xbf16>
    tpu.vector_store %arg12[%c0_48, %c8_49], %106 {strides = array<i32>} : memref<64x32xbf16, #tpu.memory_space<vmem>>, vector<64x8xbf16>,
    %108 = vector.extract_strided_slice %51 {offsets = [0, 0, 16], sizes = [4, 16, 8], strides = [1, 1, 1]} : vector<4x16x32xf32> to vector<4x16x8xf32>
    %109 = arith.truncf %108 : vector<4x16x8xf32> to vector<4x16x8xbf16>
    %110 = vector.extract_strided_slice %52 {offsets = [0, 0, 16], sizes = [4, 16, 8], strides = [1, 1, 1]} : vector<4x16x32xf32> to vector<4x16x8xf32>
    %111 = arith.truncf %110 : vector<4x16x8xf32> to vector<4x16x8xbf16>
    %112 = vector.extract_strided_slice %53 {offsets = [0, 0, 16], sizes = [4, 16, 8], strides = [1, 1, 1]} : vector<4x16x32xf32> to vector<4x16x8xf32>
    %113 = arith.truncf %112 : vector<4x16x8xf32> to vector<4x16x8xbf16>
    "tpu.trace_start"() <{level = 10 : i32, message = "bnd,bmd->bnm"}> : () -> ()
    %cst_50 = arith.constant dense<0.000000e+00> : vector<4x16x16xf32>
    %114 = tpu.matmul %109, %111, %cst_50 {dimension_numbers = #tpu.dot_dimension_numbers<[2], [2], [1], [1], [0, 0, 0, 1, 1, 1], [0], [0]>} : vector<4x16x8xbf16>, vector<4x16x8xbf16>, vector<4x16x16xf32> -> vector<4x16x16xf32>
    "tpu.trace_stop"() : () -> ()
    %c2_51 = arith.constant 2 : index
    %c0_52 = arith.constant 0 : index
    %c0_53 = arith.constant 0 : index
    %115 = vector.load %arg8[%c2_51, %c0_52, %c0_53] : memref<4x16x16xf32, #tpu.memory_space<vmem>>, vector<1x16x16xf32>
    %116 = vector.shape_cast %115 : vector<1x16x16xf32> to vector<16x16xf32>
    %117 = vector.shape_cast %116 : vector<16x16xf32> to vector<1x16x16xf32>
    %118 = vector.broadcast %117 : vector<1x16x16xf32> to vector<4x16x16xf32>
    %119 = arith.addf %114, %118 : vector<4x16x16xf32>
    %cst_54 = arith.constant dense<0xFF800000> : vector<4x16xf32>
    %120 = vector.multi_reduction <maximumf>, %119, %cst_54 [2] : vector<4x16x16xf32> to vector<4x16xf32>
    %121 = vector.shape_cast %120 : vector<4x16xf32> to vector<4x16x1xf32>
    %122 = vector.broadcast %121 : vector<4x16x1xf32> to vector<4x16x16xf32>
    %123 = arith.subf %119, %122 : vector<4x16x16xf32>
    %124 = math.exp %123 : vector<4x16x16xf32>
    %cst_55 = arith.constant dense<0.000000e+00> : vector<4x16xf32>
    %125 = vector.multi_reduction <add>, %124, %cst_55 [2] : vector<4x16x16xf32> to vector<4x16xf32>
    %126 = vector.shape_cast %125 : vector<4x16xf32> to vector<4x16x1xf32>
    %127 = tpu.reciprocal %126 {approx = true} : vector<4x16x1xf32> -> vector<4x16x1xf32>
    %128 = vector.broadcast %127 : vector<4x16x1xf32> to vector<4x16x16xf32>
    %129 = arith.mulf %124, %128 : vector<4x16x16xf32>
    %130 = arith.truncf %129 : vector<4x16x16xf32> to vector<4x16x16xbf16>
    "tpu.trace_start"() <{level = 10 : i32, message = "bnm,bmd->bnd"}> : () -> ()
    %cst_56 = arith.constant dense<0.000000e+00> : vector<4x16x8xf32>
    %131 = tpu.matmul %130, %113, %cst_56 {dimension_numbers = #tpu.dot_dimension_numbers<[2], [1], [1], [2], [0, 0, 0, 1, 1, 2], [0], [0]>} : vector<4x16x16xbf16>, vector<4x16x8xbf16>, vector<4x16x8xf32> -> vector<4x16x8xf32>
    "tpu.trace_stop"() : () -> ()
    %132 = vector.shape_cast %131 : vector<4x16x8xf32> to vector<64x8xf32>
    %133 = arith.truncf %132 : vector<64x8xf32> to vector<64x8xbf16>
    %c0_57 = arith.constant 0 : index
    %c16 = arith.constant 16 : index
    %134 = vector.load %arg12[%c0_57, %c16] : memref<64x32xbf16, #tpu.memory_space<vmem>>, vector<64x8xbf16>
    tpu.vector_store %arg12[%c0_57, %c16], %133 {strides = array<i32>} : memref<64x32xbf16, #tpu.memory_space<vmem>>, vector<64x8xbf16>,
    %135 = vector.extract_strided_slice %51 {offsets = [0, 0, 24], sizes = [4, 16, 8], strides = [1, 1, 1]} : vector<4x16x32xf32> to vector<4x16x8xf32>
    %136 = arith.truncf %135 : vector<4x16x8xf32> to vector<4x16x8xbf16>
    %137 = vector.extract_strided_slice %52 {offsets = [0, 0, 24], sizes = [4, 16, 8], strides = [1, 1, 1]} : vector<4x16x32xf32> to vector<4x16x8xf32>
    %138 = arith.truncf %137 : vector<4x16x8xf32> to vector<4x16x8xbf16>
    %139 = vector.extract_strided_slice %53 {offsets = [0, 0, 24], sizes = [4, 16, 8], strides = [1, 1, 1]} : vector<4x16x32xf32> to vector<4x16x8xf32>
    %140 = arith.truncf %139 : vector<4x16x8xf32> to vector<4x16x8xbf16>
    "tpu.trace_start"() <{level = 10 : i32, message = "bnd,bmd->bnm"}> : () -> ()
    %cst_58 = arith.constant dense<0.000000e+00> : vector<4x16x16xf32>
    %141 = tpu.matmul %136, %138, %cst_58 {dimension_numbers = #tpu.dot_dimension_numbers<[2], [2], [1], [1], [0, 0, 0, 1, 1, 1], [0], [0]>} : vector<4x16x8xbf16>, vector<4x16x8xbf16>, vector<4x16x16xf32> -> vector<4x16x16xf32>
    "tpu.trace_stop"() : () -> ()
    %c3_59 = arith.constant 3 : index
    %c0_60 = arith.constant 0 : index
    %c0_61 = arith.constant 0 : index
    %142 = vector.load %arg8[%c3_59, %c0_60, %c0_61] : memref<4x16x16xf32, #tpu.memory_space<vmem>>, vector<1x16x16xf32>
    %143 = vector.shape_cast %142 : vector<1x16x16xf32> to vector<16x16xf32>
    %144 = vector.shape_cast %143 : vector<16x16xf32> to vector<1x16x16xf32>
    %145 = vector.broadcast %144 : vector<1x16x16xf32> to vector<4x16x16xf32>
    %146 = arith.addf %141, %145 : vector<4x16x16xf32>
    %cst_62 = arith.constant dense<0xFF800000> : vector<4x16xf32>
    %147 = vector.multi_reduction <maximumf>, %146, %cst_62 [2] : vector<4x16x16xf32> to vector<4x16xf32>
    %148 = vector.shape_cast %147 : vector<4x16xf32> to vector<4x16x1xf32>
    %149 = vector.broadcast %148 : vector<4x16x1xf32> to vector<4x16x16xf32>
    %150 = arith.subf %146, %149 : vector<4x16x16xf32>
    %151 = math.exp %150 : vector<4x16x16xf32>
    %cst_63 = arith.constant dense<0.000000e+00> : vector<4x16xf32>
    %152 = vector.multi_reduction <add>, %151, %cst_63 [2] : vector<4x16x16xf32> to vector<4x16xf32>
    %153 = vector.shape_cast %152 : vector<4x16xf32> to vector<4x16x1xf32>
    %154 = tpu.reciprocal %153 {approx = true} : vector<4x16x1xf32> -> vector<4x16x1xf32>
    %155 = vector.broadcast %154 : vector<4x16x1xf32> to vector<4x16x16xf32>
    %156 = arith.mulf %151, %155 : vector<4x16x16xf32>
    %157 = arith.truncf %156 : vector<4x16x16xf32> to vector<4x16x16xbf16>
    "tpu.trace_start"() <{level = 10 : i32, message = "bnm,bmd->bnd"}> : () -> ()
    %cst_64 = arith.constant dense<0.000000e+00> : vector<4x16x8xf32>
    %158 = tpu.matmul %157, %140, %cst_64 {dimension_numbers = #tpu.dot_dimension_numbers<[2], [1], [1], [2], [0, 0, 0, 1, 1, 2], [0], [0]>} : vector<4x16x16xbf16>, vector<4x16x8xbf16>, vector<4x16x8xf32> -> vector<4x16x8xf32>
    "tpu.trace_stop"() : () -> ()
    %159 = vector.shape_cast %158 : vector<4x16x8xf32> to vector<64x8xf32>
    %160 = arith.truncf %159 : vector<64x8xf32> to vector<64x8xbf16>
    %c0_65 = arith.constant 0 : index
    %c24 = arith.constant 24 : index
    %161 = vector.load %arg12[%c0_65, %c24] : memref<64x32xbf16, #tpu.memory_space<vmem>>, vector<64x8xbf16>
    tpu.vector_store %arg12[%c0_65, %c24], %160 {strides = array<i32>} : memref<64x32xbf16, #tpu.memory_space<vmem>>, vector<64x8xbf16>,
    %c0_66 = arith.constant 0 : index
    %c0_67 = arith.constant 0 : index
    %162 = vector.load %arg12[%c0_66, %c0_67] : memref<64x32xbf16, #tpu.memory_space<vmem>>, vector<64x32xbf16>
    %c0_68 = arith.constant 0 : index
    %c0_69 = arith.constant 0 : index
    %163 = vector.load %arg5[%c0_68, %c0_69] : memref<32x32xbf16, #tpu.memory_space<vmem>>, vector<32x32xbf16>
    %cst_70 = arith.constant dense<0.000000e+00> : vector<64x32xf32>
    %164 = tpu.matmul %162, %163, %cst_70 {dimension_numbers = #tpu.dot_dimension_numbers<[1], [0], [0], [1], [0, 0, 1, 1], [], []>} : vector<64x32xbf16>, vector<32x32xbf16>, vector<64x32xf32> -> vector<64x32xf32>
    %165 = vector.broadcast %3 : vector<1x32xf32> to vector<64x32xf32>
    %166 = arith.addf %164, %165 : vector<64x32xf32>
    %167 = arith.addf %15, %166 : vector<64x32xf32>
    %cst_71 = arith.constant dense<0.000000e+00> : vector<64xf32>
    %168 = vector.multi_reduction <add>, %167, %cst_71 [1] : vector<64x32xf32> to vector<64xf32>
    %169 = vector.shape_cast %168 : vector<64xf32> to vector<64x1xf32>
    %cst_72 = arith.constant 3.200000e+01 : f32
    %170 = vector.broadcast %cst_72 : f32 to vector<64x1xf32>
    %171 = arith.divf %169, %170 : vector<64x1xf32>
    %172 = vector.broadcast %171 : vector<64x1xf32> to vector<64x32xf32>
    %173 = arith.subf %167, %172 : vector<64x32xf32>
    %174 = arith.mulf %173, %173 : vector<64x32xf32>
    %cst_73 = arith.constant dense<0.000000e+00> : vector<64xf32>
    %175 = vector.multi_reduction <add>, %174, %cst_73 [1] : vector<64x32xf32> to vector<64xf32>
    %176 = vector.shape_cast %175 : vector<64xf32> to vector<64x1xf32>
    %cst_74 = arith.constant 3.200000e+01 : f32
    %177 = vector.broadcast %cst_74 : f32 to vector<64x1xf32>
    %178 = arith.divf %176, %177 : vector<64x1xf32>
    %179 = vector.broadcast %171 : vector<64x1xf32> to vector<64x32xf32>
    %180 = arith.subf %167, %179 : vector<64x32xf32>
    %cst_75 = arith.constant 9.99999974E-6 : f32
    %181 = vector.broadcast %cst_75 : f32 to vector<64x1xf32>
    %182 = arith.addf %178, %181 : vector<64x1xf32>
    %183 = math.rsqrt %182 : vector<64x1xf32>
    %184 = vector.broadcast %183 : vector<64x1xf32> to vector<64x32xf32>
    %185 = arith.mulf %180, %184 : vector<64x32xf32>
    %186 = vector.broadcast %7 : vector<1x32xf32> to vector<64x32xf32>
    %187 = arith.mulf %185, %186 : vector<64x32xf32>
    %188 = vector.broadcast %8 : vector<1x32xf32> to vector<64x32xf32>
    %189 = arith.addf %187, %188 : vector<64x32xf32>
    %190 = arith.truncf %189 : vector<64x32xf32> to vector<64x32xbf16>
    %c0_76 = arith.constant 0 : index
    %c0_77 = arith.constant 0 : index
    %191 = vector.load %arg6[%c0_76, %c0_77] : memref<32x64xbf16, #tpu.memory_space<vmem>>, vector<32x64xbf16>
    %cst_78 = arith.constant dense<0.000000e+00> : vector<64x64xf32>
    %192 = tpu.matmul %190, %191, %cst_78 {dimension_numbers = #tpu.dot_dimension_numbers<[1], [0], [0], [1], [0, 0, 1, 1], [], []>} : vector<64x32xbf16>, vector<32x64xbf16>, vector<64x64xf32> -> vector<64x64xf32>
    %c0_79 = arith.constant 0 : index
    %c0_80 = arith.constant 0 : index
    %193 = vector.load %arg10[%c0_79, %c0_80] : memref<1x64xf32, #tpu.memory_space<vmem>>, vector<1x64xf32>
    %194 = vector.broadcast %193 : vector<1x64xf32> to vector<64x64xf32>
    %195 = arith.addf %192, %194 : vector<64x64xf32>
    %cst_81 = arith.constant 0.707106769 : f32
    %196 = vector.broadcast %cst_81 : f32 to vector<64x64xf32>
    %197 = arith.mulf %195, %196 : vector<64x64xf32>
    %198 = math.absf %197 : vector<64x64xf32>
    %cst_82 = arith.constant 0.327591091 : f32
    %199 = vector.broadcast %cst_82 : f32 to vector<64x64xf32>
    %200 = arith.mulf %199, %198 : vector<64x64xf32>
    %cst_83 = arith.constant 1.000000e+00 : f32
    %201 = vector.broadcast %cst_83 : f32 to vector<64x64xf32>
    %202 = arith.addf %201, %200 : vector<64x64xf32>
    %cst_84 = arith.constant 1.000000e+00 : f32
    %203 = vector.broadcast %cst_84 : f32 to vector<64x64xf32>
    %204 = arith.divf %203, %202 : vector<64x64xf32>
    %cst_85 = arith.constant 1.06140542 : f32
    %205 = vector.broadcast %cst_85 : f32 to vector<64x64xf32>
    %206 = arith.mulf %204, %205 : vector<64x64xf32>
    %cst_86 = arith.constant -1.45315206 : f32
    %207 = vector.broadcast %cst_86 : f32 to vector<64x64xf32>
    %208 = arith.addf %207, %206 : vector<64x64xf32>
    %209 = arith.mulf %204, %208 : vector<64x64xf32>
    %cst_87 = arith.constant 1.42141378 : f32
    %210 = vector.broadcast %cst_87 : f32 to vector<64x64xf32>
    %211 = arith.addf %210, %209 : vector<64x64xf32>
    %212 = arith.mulf %204, %211 : vector<64x64xf32>
    %cst_88 = arith.constant -0.284496725 : f32
    %213 = vector.broadcast %cst_88 : f32 to vector<64x64xf32>
    %214 = arith.addf %213, %212 : vector<64x64xf32>
    %215 = arith.mulf %204, %214 : vector<64x64xf32>
    %cst_89 = arith.constant 0.254829586 : f32
    %216 = vector.broadcast %cst_89 : f32 to vector<64x64xf32>
    %217 = arith.addf %216, %215 : vector<64x64xf32>
    %218 = arith.mulf %204, %217 : vector<64x64xf32>
    %cst_90 = arith.constant 0.000000e+00 : f32
    %219 = vector.broadcast %cst_90 : f32 to vector<64x64xf32>
    %220 = arith.subf %219, %198 : vector<64x64xf32>
    %221 = arith.mulf %220, %198 : vector<64x64xf32>
    %222 = math.exp %221 : vector<64x64xf32>
    %223 = arith.mulf %218, %222 : vector<64x64xf32>
    %cst_91 = arith.constant 1.000000e+00 : f32
    %224 = vector.broadcast %cst_91 : f32 to vector<64x64xf32>
    %225 = arith.subf %224, %223 : vector<64x64xf32>
    %cst_92 = arith.constant 0.000000e+00 : f32
    %226 = vector.broadcast %cst_92 : f32 to vector<64x64xf32>
    %227 = arith.cmpf olt, %197, %226 : vector<64x64xf32>
    %cst_93 = arith.constant 0.000000e+00 : f32
    %228 = vector.broadcast %cst_93 : f32 to vector<64x64xf32>
    %229 = arith.subf %228, %225 : vector<64x64xf32>
    %230 = arith.select %227, %229, %225 : vector<64x64xi1>, vector<64x64xf32>
    %cst_94 = arith.constant 5.000000e-01 : f32
    %231 = vector.broadcast %cst_94 : f32 to vector<64x64xf32>
    %232 = arith.mulf %231, %195 : vector<64x64xf32>
    %cst_95 = arith.constant 1.000000e+00 : f32
    %233 = vector.broadcast %cst_95 : f32 to vector<64x64xf32>
    %234 = arith.addf %233, %230 : vector<64x64xf32>
    %235 = arith.mulf %232, %234 : vector<64x64xf32>
    %236 = arith.truncf %235 : vector<64x64xf32> to vector<64x64xbf16>
    %c0_96 = arith.constant 0 : index
    %c0_97 = arith.constant 0 : index
    %237 = vector.load %arg7[%c0_96, %c0_97] : memref<64x32xbf16, #tpu.memory_space<vmem>>, vector<64x32xbf16>
    %cst_98 = arith.constant dense<0.000000e+00> : vector<64x32xf32>
    %238 = tpu.matmul %236, %237, %cst_98 {dimension_numbers = #tpu.dot_dimension_numbers<[1], [0], [0], [1], [0, 0, 1, 1], [], []>} : vector<64x64xbf16>, vector<64x32xbf16>, vector<64x32xf32> -> vector<64x32xf32>
    %239 = arith.addf %167, %238 : vector<64x32xf32>
    %240 = vector.broadcast %4 : vector<1x32xf32> to vector<64x32xf32>
    %241 = arith.addf %239, %240 : vector<64x32xf32>
    %242 = vector.extract_strided_slice %241 {offsets = [0, 0], sizes = [32, 32], strides = [1, 1]} : vector<64x32xf32> to vector<32x32xf32>
    %243 = vector.shape_cast %242 : vector<32x32xf32> to vector<2x4x4x32xf32>
    %c0_99 = arith.constant 0 : index
    %c0_100 = arith.constant 0 : index
    %c0_101 = arith.constant 0 : index
    %c0_102 = arith.constant 0 : index
    %c0_103 = arith.constant 0 : index
    %244 = vector.load %arg11[%c0_99, %c0_100, %c0_101, %c0_102, %c0_103] : memref<2x4x2x4x32xf32, #tpu.memory_space<vmem>>, vector<2x4x1x4x32xf32>
    %245 = vector.shape_cast %244 : vector<2x4x1x4x32xf32> to vector<2x4x4x32xf32>
    %246 = vector.shape_cast %243 : vector<2x4x4x32xf32> to vector<2x4x1x4x32xf32>
    tpu.vector_store %arg11[%c0_99, %c0_100, %c0_101, %c0_102, %c0_103], %246 {strides = array<i32>} : memref<2x4x2x4x32xf32, #tpu.memory_space<vmem>>, vector<2x4x1x4x32xf32>,
    %247 = vector.extract_strided_slice %241 {offsets = [32, 0], sizes = [32, 32], strides = [1, 1]} : vector<64x32xf32> to vector<32x32xf32>
    %248 = vector.shape_cast %247 : vector<32x32xf32> to vector<2x4x4x32xf32>
    %c0_104 = arith.constant 0 : index
    %c0_105 = arith.constant 0 : index
    %c1_106 = arith.constant 1 : index
    %c0_107 = arith.constant 0 : index
    %c0_108 = arith.constant 0 : index
    %249 = vector.load %arg11[%c0_104, %c0_105, %c1_106, %c0_107, %c0_108] : memref<2x4x2x4x32xf32, #tpu.memory_space<vmem>>, vector<2x4x1x4x32xf32>
    %250 = vector.shape_cast %249 : vector<2x4x1x4x32xf32> to vector<2x4x4x32xf32>
    %251 = vector.shape_cast %248 : vector<2x4x4x32xf32> to vector<2x4x1x4x32xf32>
    tpu.vector_store %arg11[%c0_104, %c0_105, %c1_106, %c0_107, %c0_108], %251 {strides = array<i32>} : memref<2x4x2x4x32xf32, #tpu.memory_space<vmem>>, vector<2x4x1x4x32xf32>,
    return
  }
  func.func @transform_0(%arg0: i32) -> (i32, i32, i32, i32, i32) {
    %c0_i32 = arith.constant 0 : i32
    %c0_i32_0 = arith.constant 0 : i32
    %c0_i32_1 = arith.constant 0 : i32
    %c0_i32_2 = arith.constant 0 : i32
    %c0_i32_3 = arith.constant 0 : i32
    return %arg0, %c0_i32, %c0_i32_0, %c0_i32_1, %c0_i32_2 : i32, i32, i32, i32, i32
  }
  func.func @transform_1(%arg0: i32) -> (i32, i32) {
    %c0_i32 = arith.constant 0 : i32
    %c0_i32_0 = arith.constant 0 : i32
    %c0_i32_1 = arith.constant 0 : i32
    return %c0_i32, %c0_i32_0 : i32, i32
  }
  func.func @transform_2(%arg0: i32) -> (i32, i32) {
    %c0_i32 = arith.constant 0 : i32
    %c0_i32_0 = arith.constant 0 : i32
    %c0_i32_1 = arith.constant 0 : i32
    return %c0_i32, %c0_i32_0 : i32, i32
  }
  func.func @transform_3(%arg0: i32) -> (i32, i32) {
    %c0_i32 = arith.constant 0 : i32
    %c0_i32_0 = arith.constant 0 : i32
    %c0_i32_1 = arith.constant 0 : i32
    return %c0_i32, %c0_i32_0 : i32, i32
  }
  func.func @transform_4(%arg0: i32) -> (i32, i32) {
    %c0_i32 = arith.constant 0 : i32
    %c0_i32_0 = arith.constant 0 : i32
    %c0_i32_1 = arith.constant 0 : i32
    return %c0_i32, %c0_i32_0 : i32, i32
  }
  func.func @transform_5(%arg0: i32) -> (i32, i32) {
    %c0_i32 = arith.constant 0 : i32
    %c0_i32_0 = arith.constant 0 : i32
    %c0_i32_1 = arith.constant 0 : i32
    return %c0_i32, %c0_i32_0 : i32, i32
  }
  func.func @transform_6(%arg0: i32) -> (i32, i32) {
    %c0_i32 = arith.constant 0 : i32
    %c0_i32_0 = arith.constant 0 : i32
    %c0_i32_1 = arith.constant 0 : i32
    return %c0_i32, %c0_i32_0 : i32, i32
  }
  func.func @transform_7(%arg0: i32) -> (i32, i32, i32) {
    %c0_i32 = arith.constant 0 : i32
    %c0_i32_0 = arith.constant 0 : i32
    %c0_i32_1 = arith.constant 0 : i32
    %c0_i32_2 = arith.constant 0 : i32
    return %c0_i32, %c0_i32_0, %c0_i32_1 : i32, i32, i32
  }
  func.func @transform_8(%arg0: i32) -> (i32, i32) {
    %c0_i32 = arith.constant 0 : i32
    %c0_i32_0 = arith.constant 0 : i32
    %c0_i32_1 = arith.constant 0 : i32
    return %c0_i32, %c0_i32_0 : i32, i32
  }
  func.func @transform_9(%arg0: i32) -> (i32, i32) {
    %c0_i32 = arith.constant 0 : i32
    %c0_i32_0 = arith.constant 0 : i32
    %c0_i32_1 = arith.constant 0 : i32
    return %c0_i32, %c0_i32_0 : i32, i32
  }
  func.func @transform_10(%arg0: i32) -> (i32, i32, i32, i32, i32) {
    %c0_i32 = arith.constant 0 : i32
    %c0_i32_0 = arith.constant 0 : i32
    %c0_i32_1 = arith.constant 0 : i32
    %c0_i32_2 = arith.constant 0 : i32
    %c0_i32_3 = arith.constant 0 : i32
    return %arg0, %c0_i32, %c0_i32_0, %c0_i32_1, %c0_i32_2 : i32, i32, i32, i32, i32
  }
}

</mosaic_0001>

<llo_original>
// kernel: tpu_custom_call.1
$region0: #{tpu_custom_call.1}
  #allocation0 [shape = 'u32[]', space=smem, size = 0x4, offset = 0x4, fixed_abs, tag = 'smem constant byte address 0x4 - core index']
  #allocation1 [shape = 'u32[144,128]{1,0:T(1,128)}', space=vmem, size = 0x12000, scoped, tag = 'internal scratch']
  #allocation2 [shape = 'bf16[64,32]{1,0:T(16,128)(2,1)}', space=vmem, size = 0x4000, scoped, tag = 'scratch operand']
  %s0 = inlined_call_operand.hbm [shape: f32[4,4,2,4,32], index: 0, kind: input, shape index: {}]
  %s1 = inlined_call_operand.hbm [shape: bf16[32,32], index: 1, kind: input, shape index: {}]
  %s2 = inlined_call_operand.hbm [shape: bf16[32,32], index: 2, kind: input, shape index: {}]
  %s3 = inlined_call_operand.hbm [shape: bf16[32,32], index: 3, kind: input, shape index: {}]
  %s4 = inlined_call_operand.hbm [shape: bf16[32,32], index: 4, kind: input, shape index: {}]
  %s5 = inlined_call_operand.hbm [shape: bf16[32,64], index: 5, kind: input, shape index: {}]
  %s6 = inlined_call_operand.vmem [shape: bf16[64,32], index: 6, kind: input, shape index: {}]
  %s7 = inlined_call_operand.vmem [shape: f32[4,16,16], index: 7, kind: input, shape index: {}]
  %s8 = inlined_call_operand.hbm [shape: f32[9,32], index: 8, kind: input, shape index: {}]
  %s9 = inlined_call_operand.vmem [shape: f32[1,64], index: 9, kind: input, shape index: {}]
  %s10 = inlined_call_operand.hbm [shape: f32[4,4,2,4,32], index: 10, kind: output, shape index: {}]
  %s11 = sld [smem:[#allocation0]]
  $region101: #{tpu_custom_call.1} parent=0
    _
  %s13 = ssub.s32 1, %s11
  %s14 = scalar_select 0, %s13, %s11
  $region1: #{tpu_custom_call.1} parent=0
    #allocation3 [shape = 'u8[65536]{0}', space=vmem, size = 0x10000, scoped, tag = 'input window, operand 0']
    #allocation4 [shape = 's32[2]{0}', space=sflag, size = 0x8, scoped, tag = 'scoped memory for tpu_custom_call.1']
    #allocation5 [shape = 's32[2]{0}', space=sflag, size = 0x8, scoped, tag = 'scoped memory for tpu_custom_call.1']
    #allocation6 [shape = 'u8[8192]{0}', space=vmem, size = 0x2000, scoped, tag = 'input window, operand 1, single buffered']
    #allocation7 [shape = 's32[1]{0}', space=sflag, size = 0x4, scoped, tag = 'scoped memory for tpu_custom_call.1']
    #allocation8 [shape = 'u8[8192]{0}', space=vmem, size = 0x2000, scoped, tag = 'input window, operand 2, single buffered']
    #allocation9 [shape = 'u8[8192]{0}', space=vmem, size = 0x2000, scoped, tag = 'input window, operand 3, single buffered']
    #allocation10 [shape = 's32[1]{0}', space=sflag, size = 0x4, scoped, tag = 'scoped memory for tpu_custom_call.1']
    #allocation11 [shape = 'u8[8192]{0}', space=vmem, size = 0x2000, scoped, tag = 'input window, operand 4, single buffered']
    #allocation12 [shape = 'u8[8192]{0}', space=vmem, size = 0x2000, scoped, tag = 'input window, operand 5, single buffered']
    #allocation13 [shape = 's32[1]{0}', space=sflag, size = 0x4, scoped, tag = 'scoped memory for tpu_custom_call.1']
    #allocation14 [shape = 'u8[8192]{0}', space=vmem, size = 0x2000, scoped, tag = 'input window, operand 8, single buffered']
    #allocation15 [shape = 'u8[65536]{0}', space=vmem, size = 0x10000, scoped, tag = 'output window, operand 0']
    %15 = vsyncpa [#allocation4], 0
    %s16 = scalar_lea.sflag [#allocation4], 1
    %17 = vsyncpa %s16, 0
    %18 = vsyncpa [#allocation7], 0
    %19 = vsyncpa [#allocation10], 0
    %20 = vsyncpa [#allocation13], 0
    %21 = vsyncpa [#allocation5], 0
    %s22 = scalar_lea.sflag [#allocation5], 1
    %23 = vsyncpa %s22, 0
    loop: start=0, step=1, limit=4
    $region2: #{tpu_custom_call.1} parent=1 // loop_pre_header
      _
    $region3: #{tpu_custom_call.1} parent=1 // loop_header
      %s25 = sphi 0, %s29
      %p26 = scmp.ge.s32.totalorder %s25, 4
      %s35 = sphi 0, %s37
      %s38 = sphi 0, %s35
      %s39 = sphi 0, %s38
      %s55 = sphi 0, %s39
      %s59 = sphi 0, %s59
      %s61 = sphi 0, %s59
      %s62 = sphi 0, %s61
      %s76 = sphi 0, %s62
      %s80 = sphi 0, %s80
      %s82 = sphi 0, %s80
      %s83 = sphi 0, %s82
      %s97 = sphi 0, %s83
      %s101 = sphi 0, %s101
      %s103 = sphi 0, %s101
      %s104 = sphi 0, %s103
      %s118 = sphi 0, %s104
      %s122 = sphi 0, %s122
      %s124 = sphi 0, %s122
      %s125 = sphi 0, %s124
      %s139 = sphi 0, %s125
      %s143 = sphi 0, %s143
      %s145 = sphi 0, %s143
      %s146 = sphi 0, %s145
      %s160 = sphi 0, %s146
      %s164 = sphi 0, %s164
      %s166 = sphi 0, %s164
      %s167 = sphi 0, %s166
      %s181 = sphi 0, %s167
      %s185 = sphi 0, %s185
      %s187 = sphi 0, %s185
      %s188 = sphi 0, %s187
      %s202 = sphi 0, %s188
      %s206 = sphi 0, %s206
      %s208 = sphi 0, %s206
      %s209 = sphi 0, %s208
      %s223 = sphi 0, %s209
      %s227 = sphi 0, %s227
      %s229 = sphi 0, %s227
      %s230 = sphi 0, %s229
      %s244 = sphi 0, %s230
      %s250 = sphi 0, %s252
      %s253 = sphi 0, %s250
      %s254 = sphi 0, %s253
      %s270 = sphi 0, %s254
    $region4: #{tpu_custom_call.1} parent=1 // loop_header_branch
      %28 = sbr.rel (%p26) target = $region8
    $region5: #{tpu_custom_call.1} parent=1 // loop_body
      %s30 = ssub.s32 %s25, 1
      %s31 = ssub.s32 %s25, 2
      %s32 = sadd.s32 %s25, 1
      %s33 = ssub.s32 %s25, %s32
      %p34 = scmp.eq.s32.totalorder %s33, 0
      %s36 = sadd.s32 %s35, 1
      %s37 = scalar_select %p34, %s35, %s36
      %p40 = pneg %p34
      %p41 = scmp.eq.s32.totalorder %s25, 1
      %p42 = por %p40, %p41
      %p43 = scmp.ne.s32.totalorder %s35, %s38
      %p44 = scmp.eq.s32.totalorder %s25, 0
      %p45 = por %p43, %p44
      %p46 = scmp.ne.s32.totalorder %s35, %s38
      %p47 = scmp.eq.s32.totalorder %s30, 1
      %p48 = por %p46, %p47
      %p49 = scmp.ne.s32.totalorder %s38, %s39
      %p50 = scmp.eq.s32.totalorder %s30, 0
      %p51 = por %p49, %p50
      %p52 = scmp.ne.s32.totalorder %s38, %s39
      %p53 = scmp.eq.s32.totalorder %s31, 1
      %p54 = por %p52, %p53
      %p56 = scmp.ne.s32.totalorder %s39, %s55
      %p57 = scmp.eq.s32.totalorder %s31, 0
      %p58 = por %p56, %p57
      %s60 = sadd.s32 %s59, 1
      %p63 = scmp.eq.s32.totalorder %s25, 1
      %p64 = scmp.ne.s32.totalorder %s59, %s61
      %p65 = scmp.eq.s32.totalorder %s25, 0
      %p66 = por %p64, %p65
      %p67 = scmp.ne.s32.totalorder %s59, %s61
      %p68 = scmp.eq.s32.totalorder %s30, 1
      %p69 = por %p67, %p68
      %p70 = scmp.ne.s32.totalorder %s61, %s62
      %p71 = scmp.eq.s32.totalorder %s30, 0
      %p72 = por %p70, %p71
      %p73 = scmp.ne.s32.totalorder %s61, %s62
      %p74 = scmp.eq.s32.totalorder %s31, 1
      %p75 = por %p73, %p74
      %p77 = scmp.ne.s32.totalorder %s62, %s76
      %p78 = scmp.eq.s32.totalorder %s31, 0
      %p79 = por %p77, %p78
      %s81 = sadd.s32 %s80, 1
      %p84 = scmp.eq.s32.totalorder %s25, 1
      %p85 = scmp.ne.s32.totalorder %s80, %s82
      %p86 = scmp.eq.s32.totalorder %s25, 0
      %p87 = por %p85, %p86
      %p88 = scmp.ne.s32.totalorder %s80, %s82
      %p89 = scmp.eq.s32.totalorder %s30, 1
      %p90 = por %p88, %p89
      %p91 = scmp.ne.s32.totalorder %s82, %s83
      %p92 = scmp.eq.s32.totalorder %s30, 0
      %p93 = por %p91, %p92
      %p94 = scmp.ne.s32.totalorder %s82, %s83
      %p95 = scmp.eq.s32.totalorder %s31, 1
      %p96 = por %p94, %p95
      %p98 = scmp.ne.s32.totalorder %s83, %s97
      %p99 = scmp.eq.s32.totalorder %s31, 0
      %p100 = por %p98, %p99
      %s102 = sadd.s32 %s101, 1
      %p105 = scmp.eq.s32.totalorder %s25, 1
      %p106 = scmp.ne.s32.totalorder %s101, %s103
      %p107 = scmp.eq.s32.totalorder %s25, 0
      %p108 = por %p106, %p107
      %p109 = scmp.ne.s32.totalorder %s101, %s103
      %p110 = scmp.eq.s32.totalorder %s30, 1
      %p111 = por %p109, %p110
      %p112 = scmp.ne.s32.totalorder %s103, %s104
      %p113 = scmp.eq.s32.totalorder %s30, 0
      %p114 = por %p112, %p113
      %p115 = scmp.ne.s32.totalorder %s103, %s104
      %p116 = scmp.eq.s32.totalorder %s31, 1
      %p117 = por %p115, %p116
      %p119 = scmp.ne.s32.totalorder %s104, %s118
      %p120 = scmp.eq.s32.totalorder %s31, 0
      %p121 = por %p119, %p120
      %s123 = sadd.s32 %s122, 1
      %p126 = scmp.eq.s32.totalorder %s25, 1
      %p127 = scmp.ne.s32.totalorder %s122, %s124
      %p128 = scmp.eq.s32.totalorder %s25, 0
      %p129 = por %p127, %p128
      %p130 = scmp.ne.s32.totalorder %s122, %s124
      %p131 = scmp.eq.s32.totalorder %s30, 1
      %p132 = por %p130, %p131
      %p133 = scmp.ne.s32.totalorder %s124, %s125
      %p134 = scmp.eq.s32.totalorder %s30, 0
      %p135 = por %p133, %p134
      %p136 = scmp.ne.s32.totalorder %s124, %s125
      %p137 = scmp.eq.s32.totalorder %s31, 1
      %p138 = por %p136, %p137
      %p140 = scmp.ne.s32.totalorder %s125, %s139
      %p141 = scmp.eq.s32.totalorder %s31, 0
      %p142 = por %p140, %p141
      %s144 = sadd.s32 %s143, 1
      %p147 = scmp.eq.s32.totalorder %s25, 1
      %p148 = scmp.ne.s32.totalorder %s143, %s145
      %p149 = scmp.eq.s32.totalorder %s25, 0
      %p150 = por %p148, %p149
      %p151 = scmp.ne.s32.totalorder %s143, %s145
      %p152 = scmp.eq.s32.totalorder %s30, 1
      %p153 = por %p151, %p152
      %p154 = scmp.ne.s32.totalorder %s145, %s146
      %p155 = scmp.eq.s32.totalorder %s30, 0
      %p156 = por %p154, %p155
      %p157 = scmp.ne.s32.totalorder %s145, %s146
      %p158 = scmp.eq.s32.totalorder %s31, 1
      %p159 = por %p157, %p158
      %p161 = scmp.ne.s32.totalorder %s146, %s160
      %p162 = scmp.eq.s32.totalorder %s31, 0
      %p163 = por %p161, %p162
      %s165 = sadd.s32 %s164, 1
      %p168 = scmp.eq.s32.totalorder %s25, 1
      %p169 = scmp.ne.s32.totalorder %s164, %s166
      %p170 = scmp.eq.s32.totalorder %s25, 0
      %p171 = por %p169, %p170
      %p172 = scmp.ne.s32.totalorder %s164, %s166
      %p173 = scmp.eq.s32.totalorder %s30, 1
      %p174 = por %p172, %p173
      %p175 = scmp.ne.s32.totalorder %s166, %s167
      %p176 = scmp.eq.s32.totalorder %s30, 0
      %p177 = por %p175, %p176
      %p178 = scmp.ne.s32.totalorder %s166, %s167
      %p179 = scmp.eq.s32.totalorder %s31, 1
      %p180 = por %p178, %p179
      %p182 = scmp.ne.s32.totalorder %s167, %s181
      %p183 = scmp.eq.s32.totalorder %s31, 0
      %p184 = por %p182, %p183
      %s186 = sadd.s32 %s185, 1
      %p189 = scmp.eq.s32.totalorder %s25, 1
      %p190 = scmp.ne.s32.totalorder %s185, %s187
      %p191 = scmp.eq.s32.totalorder %s25, 0
      %p192 = por %p190, %p191
      %p193 = scmp.ne.s32.totalorder %s185, %s187
      %p194 = scmp.eq.s32.totalorder %s30, 1
      %p195 = por %p193, %p194
      %p196 = scmp.ne.s32.totalorder %s187, %s188
      %p197 = scmp.eq.s32.totalorder %s30, 0
      %p198 = por %p196, %p197
      %p199 = scmp.ne.s32.totalorder %s187, %s188
      %p200 = scmp.eq.s32.totalorder %s31, 1
      %p201 = por %p199, %p200
      %p203 = scmp.ne.s32.totalorder %s188, %s202
      %p204 = scmp.eq.s32.totalorder %s31, 0
      %p205 = por %p203, %p204
      %s207 = sadd.s32 %s206, 1
      %p210 = scmp.eq.s32.totalorder %s25, 1
      %p211 = scmp.ne.s32.totalorder %s206, %s208
      %p212 = scmp.eq.s32.totalorder %s25, 0
      %p213 = por %p211, %p212
      %p214 = scmp.ne.s32.totalorder %s206, %s208
      %p215 = scmp.eq.s32.totalorder %s30, 1
      %p216 = por %p214, %p215
      %p217 = scmp.ne.s32.totalorder %s208, %s209
      %p218 = scmp.eq.s32.totalorder %s30, 0
      %p219 = por %p217, %p218
      %p220 = scmp.ne.s32.totalorder %s208, %s209
      %p221 = scmp.eq.s32.totalorder %s31, 1
      %p222 = por %p220, %p221
      %p224 = scmp.ne.s32.totalorder %s209, %s223
      %p225 = scmp.eq.s32.totalorder %s31, 0
      %p226 = por %p224, %p225
      %s228 = sadd.s32 %s227, 1
      %p231 = scmp.eq.s32.totalorder %s25, 1
      %p232 = scmp.ne.s32.totalorder %s227, %s229
      %p233 = scmp.eq.s32.totalorder %s25, 0
      %p234 = por %p232, %p233
      %p235 = scmp.ne.s32.totalorder %s227, %s229
      %p236 = scmp.eq.s32.totalorder %s30, 1
      %p237 = por %p235, %p236
      %p238 = scmp.ne.s32.totalorder %s229, %s230
      %p239 = scmp.eq.s32.totalorder %s30, 0
      %p240 = por %p238, %p239
      %p241 = scmp.ne.s32.totalorder %s229, %s230
      %p242 = scmp.eq.s32.totalorder %s31, 1
      %p243 = por %p241, %p242
      %p245 = scmp.ne.s32.totalorder %s230, %s244
      %p246 = scmp.eq.s32.totalorder %s31, 0
      %p247 = por %p245, %p246
      %s248 = ssub.s32 %s25, %s32
      %p249 = scmp.eq.s32.totalorder %s248, 0
      %s251 = sadd.s32 %s250, 1
      %s252 = scalar_select %p249, %s250, %s251
      %p255 = pneg %p249
      %p256 = scmp.eq.s32.totalorder %s25, 1
      %p257 = por %p255, %p256
      %p258 = scmp.ne.s32.totalorder %s250, %s253
      %p259 = scmp.eq.s32.totalorder %s25, 0
      %p260 = por %p258, %p259
      %p261 = scmp.ne.s32.totalorder %s250, %s253
      %p262 = scmp.eq.s32.totalorder %s30, 1
      %p263 = por %p261, %p262
      %p264 = scmp.ne.s32.totalorder %s253, %s254
      %p265 = scmp.eq.s32.totalorder %s30, 0
      %p266 = por %p264, %p265
      %p267 = scmp.ne.s32.totalorder %s253, %s254
      %p268 = scmp.eq.s32.totalorder %s31, 1
      %p269 = por %p267, %p268
      %p271 = scmp.ne.s32.totalorder %s254, %s270
      %p272 = scmp.eq.s32.totalorder %s31, 0
      %p273 = por %p271, %p272
      %p274 = scmp.le.s32.totalorder 1, %s25
      %p275 = scmp.lt.s32.totalorder %s25, 3
      %p276 = pnand %p274, %p275
      %p277 = pneg %p276
      // Predicated region
      $region9: #{tpu_custom_call.1} parent=5 // pred_check
        _
      $region10: #{tpu_custom_call.1} parent=5 // pred_check_branch
        %279 = sbr.rel (%p276) target = $region12
      $region11: #{tpu_custom_call.1} parent=5 // pred_region
        %s280 = ssub.s32 %s25, 1
        // Predicated region
        $region13: #{tpu_custom_call.1} parent=11 // pred_check
          %p281 = pneg %p72
        $region14: #{tpu_custom_call.1} parent=11 // pred_check_branch
          %283 = sbr.rel (%p281) target = $region16
        $region15: #{tpu_custom_call.1} parent=11 // pred_region
          %s285 = ssub.s32 256, 256
          %286 = vsyncadd [#allocation7], %s285
          %s287 = sshll.u32 [#allocation6], 4
          %s288 = int_to_ptr.vmem [resolvable:$true] %s287
          %293 = dma.hbm_to_vmem [thread:$0]  %s1, 256, %s288, [#allocation7], 64, 64, 4
        $region16: #{tpu_custom_call.1} parent=11 // pred_fallthru
          _
        // Predicated region
        $region17: #{tpu_custom_call.1} parent=11 // pred_check
          %p294 = pneg %p93
        $region18: #{tpu_custom_call.1} parent=11 // pred_check_branch
          %296 = sbr.rel (%p294) target = $region20
        $region19: #{tpu_custom_call.1} parent=11 // pred_region
          %s298 = ssub.s32 256, 256
          %299 = vsyncadd [#allocation7], %s298
          %s300 = sshll.u32 [#allocation8], 4
          %s301 = int_to_ptr.vmem [resolvable:$true] %s300
          %306 = dma.hbm_to_vmem [thread:$0]  %s2, 256, %s301, [#allocation7], 64, 64, 4
        $region20: #{tpu_custom_call.1} parent=11 // pred_fallthru
          _
        // Predicated region
        $region21: #{tpu_custom_call.1} parent=11 // pred_check
          %p307 = pneg %p114
        $region22: #{tpu_custom_call.1} parent=11 // pred_check_branch
          %309 = sbr.rel (%p307) target = $region24
        $region23: #{tpu_custom_call.1} parent=11 // pred_region
          %s311 = ssub.s32 256, 256
          %312 = vsyncadd [#allocation10], %s311
          %s313 = sshll.u32 [#allocation9], 4
          %s314 = int_to_ptr.vmem [resolvable:$true] %s313
          %319 = dma.hbm_to_vmem [thread:$0]  %s3, 256, %s314, [#allocation10], 64, 64, 4
        $region24: #{tpu_custom_call.1} parent=11 // pred_fallthru
          _
        // Predicated region
        $region25: #{tpu_custom_call.1} parent=11 // pred_check
          %p320 = pneg %p135
        $region26: #{tpu_custom_call.1} parent=11 // pred_check_branch
          %322 = sbr.rel (%p320) target = $region28
        $region27: #{tpu_custom_call.1} parent=11 // pred_region
          %s324 = ssub.s32 256, 256
          %325 = vsyncadd [#allocation10], %s324
          %s326 = sshll.u32 [#allocation11], 4
          %s327 = int_to_ptr.vmem [resolvable:$true] %s326
          %332 = dma.hbm_to_vmem [thread:$0]  %s4, 256, %s327, [#allocation10], 64, 64, 4
        $region28: #{tpu_custom_call.1} parent=11 // pred_fallthru
          _
        // Predicated region
        $region29: #{tpu_custom_call.1} parent=11 // pred_check
          %p333 = pneg %p156
        $region30: #{tpu_custom_call.1} parent=11 // pred_check_branch
          %335 = sbr.rel (%p333) target = $region32
        $region31: #{tpu_custom_call.1} parent=11 // pred_region
          %s337 = ssub.s32 256, 256
          %338 = vsyncadd [#allocation13], %s337
          %s339 = sshll.u32 [#allocation12], 4
          %s340 = int_to_ptr.vmem [resolvable:$true] %s339
          %345 = dma.hbm_to_vmem [thread:$0]  %s5, 256, %s340, [#allocation13], 64, 64, 4
        $region32: #{tpu_custom_call.1} parent=11 // pred_fallthru
          _
        // Predicated region
        $region33: #{tpu_custom_call.1} parent=11 // pred_check
          %p346 = pneg %p177
        $region34: #{tpu_custom_call.1} parent=11 // pred_check_branch
          %348 = sbr.rel (%p346) target = $region36
        $region35: #{tpu_custom_call.1} parent=11 // pred_region
          _
        $region36: #{tpu_custom_call.1} parent=11 // pred_fallthru
          _
        // Predicated region
        $region37: #{tpu_custom_call.1} parent=11 // pred_check
          %p349 = pneg %p198
        $region38: #{tpu_custom_call.1} parent=11 // pred_check_branch
          %351 = sbr.rel (%p349) target = $region40
        $region39: #{tpu_custom_call.1} parent=11 // pred_region
          _
        $region40: #{tpu_custom_call.1} parent=11 // pred_fallthru
          _
        // Predicated region
        $region41: #{tpu_custom_call.1} parent=11 // pred_check
          %p352 = pneg %p219
        $region42: #{tpu_custom_call.1} parent=11 // pred_check_branch
          %354 = sbr.rel (%p352) target = $region44
        $region43: #{tpu_custom_call.1} parent=11 // pred_region
          %s356 = ssub.s32 256, 256
          %357 = vsyncadd [#allocation13], %s356
          %s358 = sshll.u32 [#allocation14], 4
          %s359 = int_to_ptr.vmem [resolvable:$true] %s358
          %364 = dma.hbm_to_vmem [thread:$0]  %s8, 256, %s359, [#allocation13], 128, 128, 8
        $region44: #{tpu_custom_call.1} parent=11 // pred_fallthru
          _
        // Predicated region
        $region45: #{tpu_custom_call.1} parent=11 // pred_check
          %p365 = pneg %p240
        $region46: #{tpu_custom_call.1} parent=11 // pred_check_branch
          %367 = sbr.rel (%p365) target = $region48
        $region47: #{tpu_custom_call.1} parent=11 // pred_region
          _
        $region48: #{tpu_custom_call.1} parent=11 // pred_fallthru
          _
      $region12: #{tpu_custom_call.1} parent=5 // pred_fallthru
        _
      %p368 = scmp.lt.s32.totalorder %s25, 2
      // Predicated region
      $region49: #{tpu_custom_call.1} parent=5 // pred_check
        %p369 = pneg %p368
      $region50: #{tpu_custom_call.1} parent=5 // pred_check_branch
        %371 = sbr.rel (%p369) target = $region52
      $region51: #{tpu_custom_call.1} parent=5 // pred_region
        // Predicated region
        $region53: #{tpu_custom_call.1} parent=51 // pred_check
          %p372 = pneg %p45
        $region54: #{tpu_custom_call.1} parent=51 // pred_check_branch
          %374 = sbr.rel (%p372) target = $region56
        $region55: #{tpu_custom_call.1} parent=51 // pred_region
          %s375 = sand.u32 %s35, 1
          %s376 = scalar_lea.sflag [#allocation4], %s375
          %s377 = sand.u32 %s35, 1
          %s378 = smul.addr %s377, 64
          %s379 = scalar_lea.vmem [#allocation3], %s378
          %s380 = smul.u32 2, %s25
          %s382 = ssub.s32 1024, 1024
          %383 = vsyncadd %s376, %s382
          %s384 = smul.addr %s380, 8
          %s385 = smul.addr %s384, 64
          %s386 = scalar_lea.hbm %s0, %s385
          %s387 = sshll.u32 %s379, 4
          %s388 = int_to_ptr.vmem [resolvable:$true] %s387
          %393 = dma.hbm_to_vmem [thread:$0]  %s386, 1024, %s388, %s376, 64, 64, 4
        $region56: #{tpu_custom_call.1} parent=51 // pred_fallthru
          _
      $region52: #{tpu_custom_call.1} parent=5 // pred_fallthru
        _
      %p394 = scmp.le.s32.totalorder 1, %s25
      %p395 = scmp.lt.s32.totalorder %s25, 3
      %p396 = pnand %p394, %p395
      %p397 = pneg %p396
      // Predicated region
      $region57: #{tpu_custom_call.1} parent=5 // pred_check
        _
      $region58: #{tpu_custom_call.1} parent=5 // pred_check_branch
        %399 = sbr.rel (%p396) target = $region60
      $region59: #{tpu_custom_call.1} parent=5 // pred_region
        %s400 = ssub.s32 %s25, 1
        %s401 = sand.u32 %s38, 1
        %s402 = scalar_lea.sflag [#allocation4], %s401
        %s403 = sand.u32 %s38, 1
        %s404 = smul.addr %s403, 64
        %s405 = scalar_lea.vmem [#allocation3], %s404
        // Predicated region
        $region61: #{tpu_custom_call.1} parent=59 // pred_check
          %p406 = pneg %p51
        $region62: #{tpu_custom_call.1} parent=59 // pred_check_branch
          %408 = sbr.rel (%p406) target = $region64
        $region63: #{tpu_custom_call.1} parent=59 // pred_region
          %409 = dma.done %s402, 1024
        $region64: #{tpu_custom_call.1} parent=59 // pred_fallthru
          _
        // Predicated region
        $region65: #{tpu_custom_call.1} parent=59 // pred_check
          %p410 = pneg %p72
        $region66: #{tpu_custom_call.1} parent=59 // pred_check_branch
          %412 = sbr.rel (%p410) target = $region68
        $region67: #{tpu_custom_call.1} parent=59 // pred_region
          %413 = dma.done [#allocation7], 256
        $region68: #{tpu_custom_call.1} parent=59 // pred_fallthru
          _
        // Predicated region
        $region69: #{tpu_custom_call.1} parent=59 // pred_check
          %p414 = pneg %p93
        $region70: #{tpu_custom_call.1} parent=59 // pred_check_branch
          %416 = sbr.rel (%p414) target = $region72
        $region71: #{tpu_custom_call.1} parent=59 // pred_region
          %417 = dma.done [#allocation7], 256
        $region72: #{tpu_custom_call.1} parent=59 // pred_fallthru
          _
        // Predicated region
        $region73: #{tpu_custom_call.1} parent=59 // pred_check
          %p418 = pneg %p114
        $region74: #{tpu_custom_call.1} parent=59 // pred_check_branch
          %420 = sbr.rel (%p418) target = $region76
        $region75: #{tpu_custom_call.1} parent=59 // pred_region
          %421 = dma.done [#allocation10], 256
        $region76: #{tpu_custom_call.1} parent=59 // pred_fallthru
          _
        // Predicated region
        $region77: #{tpu_custom_call.1} parent=59 // pred_check
          %p422 = pneg %p135
        $region78: #{tpu_custom_call.1} parent=59 // pred_check_branch
          %424 = sbr.rel (%p422) target = $region80
        $region79: #{tpu_custom_call.1} parent=59 // pred_region
          %425 = dma.done [#allocation10], 256
        $region80: #{tpu_custom_call.1} parent=59 // pred_fallthru
          _
        // Predicated region
        $region81: #{tpu_custom_call.1} parent=59 // pred_check
          %p426 = pneg %p156
        $region82: #{tpu_custom_call.1} parent=59 // pred_check_branch
          %428 = sbr.rel (%p426) target = $region84
        $region83: #{tpu_custom_call.1} parent=59 // pred_region
          %429 = dma.done [#allocation13], 256
        $region84: #{tpu_custom_call.1} parent=59 // pred_fallthru
          _
        // Predicated region
        $region85: #{tpu_custom_call.1} parent=59 // pred_check
          %p430 = pneg %p219
        $region86: #{tpu_custom_call.1} parent=59 // pred_check_branch
          %432 = sbr.rel (%p430) target = $region88
        $region87: #{tpu_custom_call.1} parent=59 // pred_region
          %433 = dma.done [#allocation13], 256
        $region88: #{tpu_custom_call.1} parent=59 // pred_fallthru
          _
        %s434 = sand.u32 %s38, 1
        %s435 = scalar_lea.sflag [#allocation4], %s434
        %s436 = sand.u32 %s38, 1
        %s437 = smul.addr %s436, 64
        %s438 = scalar_lea.vmem [#allocation3], %s437
        %p439 = pneg %p51
        %p440 = pneg %p48
        %p441 = pneg %p72
        %p442 = pneg %p69
        %p443 = pneg %p93
        %p444 = pneg %p90
        %p445 = pneg %p114
        %p446 = pneg %p111
        %p447 = pneg %p135
        %p448 = pneg %p132
        %p449 = pneg %p156
        %p450 = pneg %p153
        %p451 = pneg %p177
        %p452 = pneg %p174
        %p453 = pneg %p198
        %p454 = pneg %p195
        %p455 = pneg %p219
        %p456 = pneg %p216
        %p457 = pneg %p240
        %p458 = pneg %p237
        %p459 = pneg %p266
        %p460 = pneg %p263
        %s461 = sand.u32 %s253, 1
        %s462 = scalar_lea.sflag [#allocation5], %s461
        %s463 = sand.u32 %s253, 1
        %s464 = smul.addr %s463, 64
        %s465 = scalar_lea.vmem [#allocation15], %s464
        %s466 = smul.u32 2, %s30
        %s467 = smul.u32 2, %s30
        %v469 = vld [vmem:[#allocation14] sm:$0x1]
        %v470 = vld [vmem:[#allocation14 + $0x1] sm:$0x1]
        %v471 = vld [vmem:[#allocation14 + $0x2] sm:$0x1]
        %v472 = vld [vmem:[#allocation14 + $0x3] sm:$0x1]
        %v473 = vld [vmem:[#allocation14 + $0x4] sm:$0x1]
        %v474 = vld [vmem:[#allocation14 + $0x5] sm:$0x1]
        %v475 = vld [vmem:[#allocation14 + $0x6] sm:$0x1]
        %v476 = vld [vmem:[#allocation14 + $0x7] sm:$0x1]
        %v477 = vld [vmem:[#allocation14 + $0x8] sm:$0x1]
        %v478 = vld [vmem:[%s405] sm:$0xf]
        %v479 = vld [vmem:[%s405 + $0x8] sm:$0xf]
        %v480 = vld [vmem:[%s405 + $0x10] sm:$0xf]
        %v481 = vld [vmem:[%s405 + $0x18] sm:$0xf]
        %v482 = vld [vmem:[%s405 + $0x20] sm:$0xf]
        %v483 = vld [vmem:[%s405 + $0x28] sm:$0xf]
        %v484 = vld [vmem:[%s405 + $0x30] sm:$0xf]
        %v485 = vld [vmem:[%s405 + $0x38] sm:$0xf]
        %s486 = scalar_lea.vmem %s405, 4 [#allocation3]
        %v487 = vld [vmem:[%s486] sm:$0xf]
        %v488 = vld [vmem:[%s486 + $0x8] sm:$0xf]
        %v489 = vld [vmem:[%s486 + $0x10] sm:$0xf]
        %v490 = vld [vmem:[%s486 + $0x18] sm:$0xf]
        %v491 = vld [vmem:[%s486 + $0x20] sm:$0xf]
        %v492 = vld [vmem:[%s486 + $0x28] sm:$0xf]
        %v493 = vld [vmem:[%s486 + $0x30] sm:$0xf]
        %v494 = vld [vmem:[%s486 + $0x38] sm:$0xf]
        %v503 = vcombine.low %v478, %v479
        %v504 = vcombine.low %v480, %v481
        %v505 = vcombine.low %v482, %v483
        %v506 = vcombine.low %v484, %v485
        %v519 = vcombine.low %v487, %v488
        %v520 = vcombine.low %v489, %v490
        %v521 = vcombine.low %v491, %v492
        %v522 = vcombine.low %v493, %v494
        %vm527 = vcmask 261120
        %v528 = vsel %vm527, %v503, 0.0
        %529 = vadd.xlane.f32.xlu0 %v528
        %v530 = vpop.xlane.xlu0 %529
        %v531 = vsel %vm527, %v504, 0.0
        %532 = vadd.xlane.f32.xlu0 %v531
        %v533 = vpop.xlane.xlu0 %532
        %v534 = vsel %vm527, %v505, 0.0
        %535 = vadd.xlane.f32.xlu0 %v534
        %v536 = vpop.xlane.xlu0 %535
        %v537 = vsel %vm527, %v506, 0.0
        %538 = vadd.xlane.f32.xlu0 %v537
        %v539 = vpop.xlane.xlu0 %538
        %v540 = vsel %vm527, %v519, 0.0
        %541 = vadd.xlane.f32.xlu0 %v540
        %v542 = vpop.xlane.xlu0 %541
        %v543 = vsel %vm527, %v520, 0.0
        %544 = vadd.xlane.f32.xlu0 %v543
        %v545 = vpop.xlane.xlu0 %544
        %v546 = vsel %vm527, %v521, 0.0
        %547 = vadd.xlane.f32.xlu0 %v546
        %v548 = vpop.xlane.xlu0 %547
        %v549 = vsel %vm527, %v522, 0.0
        %550 = vadd.xlane.f32.xlu0 %v549
        %v551 = vpop.xlane.xlu0 %550
        %v552 = vrcp.pop 32.0
        %v553 = vmul.f32 %v530, %v552
        %v554 = vmul.f32 %v533, %v552
        %v555 = vmul.f32 %v536, %v552
        %v556 = vmul.f32 %v539, %v552
        %v557 = vmul.f32 %v542, %v552
        %v558 = vmul.f32 %v545, %v552
        %v559 = vmul.f32 %v548, %v552
        %v560 = vmul.f32 %v551, %v552
        %v561 = vsub.f32 %v503, %v553
        %v562 = vsub.f32 %v504, %v554
        %v563 = vsub.f32 %v505, %v555
        %v564 = vsub.f32 %v506, %v556
        %v565 = vsub.f32 %v519, %v557
        %v566 = vsub.f32 %v520, %v558
        %v567 = vsub.f32 %v521, %v559
        %v568 = vsub.f32 %v522, %v560
        %v569 = vmul.f32 %v561, %v561
        %v570 = vmul.f32 %v562, %v562
        %v571 = vmul.f32 %v563, %v563
        %v572 = vmul.f32 %v564, %v564
        %v573 = vmul.f32 %v565, %v565
        %v574 = vmul.f32 %v566, %v566
        %v575 = vmul.f32 %v567, %v567
        %v576 = vmul.f32 %v568, %v568
        %v577 = vsel %vm527, %v569, 0.0
        %578 = vadd.xlane.f32.xlu0 %v577
        %v579 = vpop.xlane.xlu0 %578
        %v580 = vsel %vm527, %v570, 0.0
        %581 = vadd.xlane.f32.xlu0 %v580
        %v582 = vpop.xlane.xlu0 %581
        %v583 = vsel %vm527, %v571, 0.0
        %584 = vadd.xlane.f32.xlu0 %v583
        %v585 = vpop.xlane.xlu0 %584
        %v586 = vsel %vm527, %v572, 0.0
        %587 = vadd.xlane.f32.xlu0 %v586
        %v588 = vpop.xlane.xlu0 %587
        %v589 = vsel %vm527, %v573, 0.0
        %590 = vadd.xlane.f32.xlu0 %v589
        %v591 = vpop.xlane.xlu0 %590
        %v592 = vsel %vm527, %v574, 0.0
        %593 = vadd.xlane.f32.xlu0 %v592
        %v594 = vpop.xlane.xlu0 %593
        %v595 = vsel %vm527, %v575, 0.0
        %596 = vadd.xlane.f32.xlu0 %v595
        %v597 = vpop.xlane.xlu0 %596
        %v598 = vsel %vm527, %v576, 0.0
        %599 = vadd.xlane.f32.xlu0 %v598
        %v600 = vpop.xlane.xlu0 %599
        %v601 = vmul.f32 %v579, %v552
        %v602 = vmul.f32 %v582, %v552
        %v603 = vmul.f32 %v585, %v552
        %v604 = vmul.f32 %v588, %v552
        %v605 = vmul.f32 %v591, %v552
        %v606 = vmul.f32 %v594, %v552
        %v607 = vmul.f32 %v597, %v552
        %v608 = vmul.f32 %v600, %v552
        %v609 = vadd.f32 %v601, 1e-05
        %v610 = vadd.f32 %v602, 1e-05
        %v611 = vadd.f32 %v603, 1e-05
        %v612 = vadd.f32 %v604, 1e-05
        %v613 = vadd.f32 %v605, 1e-05
        %v614 = vadd.f32 %v606, 1e-05
        %v615 = vadd.f32 %v607, 1e-05
        %v616 = vadd.f32 %v608, 1e-05
        %v617 = vrsqrt.pop %v609
        %v618 = vrsqrt.pop %v610
        %v619 = vrsqrt.pop %v611
        %v620 = vrsqrt.pop %v612
        %v621 = vrsqrt.pop %v613
        %v622 = vrsqrt.pop %v614
        %v623 = vrsqrt.pop %v615
        %v624 = vrsqrt.pop %v616
        %v625 = vmul.f32 %v561, %v617
        %v626 = vmul.f32 %v562, %v618
        %v627 = vmul.f32 %v563, %v619
        %v628 = vmul.f32 %v564, %v620
        %v629 = vmul.f32 %v565, %v621
        %v630 = vmul.f32 %v566, %v622
        %v631 = vmul.f32 %v567, %v623
        %v632 = vmul.f32 %v568, %v624
        %v633 = vlaneseq
        %v634 = vshrl.u32 %v633, 7
        %v635 = vsub.s32 0, %v634
        %v636 = vrot.slane %v474, %v635
        %v637 = vmul.f32 %v625, %v636
        %v638 = vmul.f32 %v626, %v636
        %v639 = vmul.f32 %v627, %v636
        %v640 = vmul.f32 %v628, %v636
        %v641 = vmul.f32 %v629, %v636
        %v642 = vmul.f32 %v630, %v636
        %v643 = vmul.f32 %v631, %v636
        %v644 = vmul.f32 %v632, %v636
        %v645 = vlaneseq
        %v646 = vshrl.u32 %v645, 7
        %v647 = vsub.s32 0, %v646
        %v648 = vrot.slane %v475, %v647
        %v649 = vadd.f32 %v637, %v648
        %v650 = vadd.f32 %v638, %v648
        %v651 = vadd.f32 %v639, %v648
        %v652 = vadd.f32 %v640, %v648
        %v653 = vadd.f32 %v641, %v648
        %v654 = vadd.f32 %v642, %v648
        %v655 = vadd.f32 %v643, %v648
        %v656 = vadd.f32 %v644, %v648
        %v657 = vpack.c.bf16 %v650, %v649
        %v658 = vpack.c.bf16 %v652, %v651
        %v659 = vpack.c.bf16 %v654, %v653
        %v660 = vpack.c.bf16 %v656, %v655
        %v661 = vld [vmem:[#allocation6] sm:$0xf]
        %v662 = vld [vmem:[#allocation6 + $0x4] sm:$0xf]
        %v663 = vld [vmem:[#allocation6 + $0x8] sm:$0xf]
        %v664 = vld [vmem:[#allocation6 + $0xc] sm:$0xf]
        %v665 = vlaneseq
        %v666 = vshrl.u32 %v665, 7
        %v667 = vsub.s32 0, %v666
        %v668 = vrot.slane %v469, %v667
        %v673 = vunpack.c.l.b16 %v661
        %v674 = vunpack.c.l.b16 %v662
        %v675 = vunpack.c.l.b16 %v663
        %v676 = vunpack.c.l.b16 %v664
        %v677 = vpack.c.b16 %v674, %v673
        %v678 = vpack.c.b16 %v676, %v675
        %v682 = vsel %vm527, %v657, 0
        %v685 = vsel %vm527, %v658, 0
        %v688 = vsel %vm527, %v659, 0
        %v691 = vsel %vm527, %v660, 0
        %693 = vmatprep.subr.bf16.mxu0 0
        %694 = vmatpush1.bf16.msra.mxu0 %v677
        %695 = vmatprep.subr.bf16.mxu0 0
        %696 = vmatpush1.bf16.msra.mxu0 %v678
        %697 = vmatprep.subr.bf16.mxu0 0
        %698 = vmatpush1.bf16.msra.mxu0 0
        %699 = vmatprep.subr.bf16.mxu0 0
        %700 = vmatpush1.bf16.msra.mxu0 0
        %701 = vmatprep.subr.bf16.mxu0 0
        %702 = vmatpush1.bf16.msra.mxu0 0
        %703 = vmatprep.subr.bf16.mxu0 0
        %704 = vmatpush1.bf16.msra.mxu0 0
        %705 = vmatprep.subr.bf16.mxu0 0
        %706 = vmatpush1.bf16.msra.mxu0 0
        %707 = vmatprep.subr.bf16.mxu0 0
        %708 = vmatpush1.bf16.msra.mxu0 0
        %709 = vmatprep.subr.bf16.mxu0 0
        %710 = vmatpush1.bf16.msra.mxu0 0
        %711 = vmatprep.subr.bf16.mxu0 0
        %712 = vmatpush1.bf16.msra.mxu0 0
        %713 = vmatprep.subr.bf16.mxu0 0
        %714 = vmatpush1.bf16.msra.mxu0 0
        %715 = vmatprep.subr.bf16.mxu0 0
        %716 = vmatpush1.bf16.msra.mxu0 0
        %717 = vmatprep.subr.bf16.mxu0 0
        %718 = vmatpush1.bf16.msra.mxu0 0
        %719 = vmatprep.subr.bf16.mxu0 0
        %720 = vmatpush1.bf16.msra.mxu0 0
        %721 = vmatprep.subr.bf16.mxu0 0
        %722 = vmatpush1.bf16.msra.mxu0 0
        %723 = vmatprep.subr.bf16.mxu0 0
        %724 = vmatpush1.bf16.msra.mxu0 0
        %725 = vmatprep.mubr.bf16.mxu0 0
        %726 = vmatmul.mubr.bf16.gmra.mrb[0].mxu0 %v682
        %v727 = vpop.f32.mrb[0].mxu0
        %v728 = vadd.f32 %v668, %v727
        %v729 = vpop.f32.mrb[0].mxu0
        %v730 = vpop.f32.mrb[0].mxu0
        %v731 = vadd.f32 %v668, %v730
        %v732 = vpop.f32.mrb[0].mxu0
        %733 = vmatprep.mubr.bf16.mxu0 0
        %734 = vmatmul.mubr.bf16.gmra.mrb[0].mxu0 %v685
        %v735 = vpop.f32.mrb[0].mxu0
        %v736 = vadd.f32 %v668, %v735
        %v737 = vpop.f32.mrb[0].mxu0
        %v738 = vpop.f32.mrb[0].mxu0
        %v739 = vadd.f32 %v668, %v738
        %v740 = vpop.f32.mrb[0].mxu0
        %741 = vmatprep.mubr.bf16.mxu0 0
        %742 = vmatmul.mubr.bf16.gmra.mrb[0].mxu0 %v688
        %v743 = vpop.f32.mrb[0].mxu0
        %v744 = vadd.f32 %v668, %v743
        %v745 = vpop.f32.mrb[0].mxu0
        %v746 = vpop.f32.mrb[0].mxu0
        %v747 = vadd.f32 %v668, %v746
        %v748 = vpop.f32.mrb[0].mxu0
        %749 = vmatprep.mubr.bf16.mxu0 0
        %750 = vmatmul.mubr.bf16.gmra.mrb[0].mxu0 %v691
        %v751 = vpop.f32.mrb[0].mxu0
        %v752 = vadd.f32 %v668, %v751
        %v753 = vpop.f32.mrb[0].mxu0
        %v754 = vpop.f32.mrb[0].mxu0
        %v755 = vadd.f32 %v668, %v754
        %v756 = vpop.f32.mrb[0].mxu0
        %757 = vdwg.mxu0
        %v758 = vld [vmem:[#allocation8] sm:$0xf]
        %v759 = vld [vmem:[#allocation8 + $0x4] sm:$0xf]
        %v760 = vld [vmem:[#allocation8 + $0x8] sm:$0xf]
        %v761 = vld [vmem:[#allocation8 + $0xc] sm:$0xf]
        %v762 = vlaneseq
        %v763 = vshrl.u32 %v762, 7
        %v764 = vsub.s32 0, %v763
        %v765 = vrot.slane %v470, %v764
        %v770 = vunpack.c.l.b16 %v758
        %v771 = vunpack.c.l.b16 %v759
        %v772 = vunpack.c.l.b16 %v760
        %v773 = vunpack.c.l.b16 %v761
        %v774 = vpack.c.b16 %v771, %v770
        %v775 = vpack.c.b16 %v773, %v772
        %778 = vmatprep.subr.bf16.mxu0 0
        %779 = vmatpush1.bf16.msra.mxu0 %v774
        %780 = vmatprep.subr.bf16.mxu0 0
        %781 = vmatpush1.bf16.msra.mxu0 %v775
        %782 = vmatprep.subr.bf16.mxu0 0
        %783 = vmatpush1.bf16.msra.mxu0 0
        %784 = vmatprep.subr.bf16.mxu0 0
        %785 = vmatpush1.bf16.msra.mxu0 0
        %786 = vmatprep.subr.bf16.mxu0 0
        %787 = vmatpush1.bf16.msra.mxu0 0
        %788 = vmatprep.subr.bf16.mxu0 0
        %789 = vmatpush1.bf16.msra.mxu0 0
        %790 = vmatprep.subr.bf16.mxu0 0
        %791 = vmatpush1.bf16.msra.mxu0 0
        %792 = vmatprep.subr.bf16.mxu0 0
        %793 = vmatpush1.bf16.msra.mxu0 0
        %794 = vmatprep.subr.bf16.mxu0 0
        %795 = vmatpush1.bf16.msra.mxu0 0
        %796 = vmatprep.subr.bf16.mxu0 0
        %797 = vmatpush1.bf16.msra.mxu0 0
        %798 = vmatprep.subr.bf16.mxu0 0
        %799 = vmatpush1.bf16.msra.mxu0 0
        %800 = vmatprep.subr.bf16.mxu0 0
        %801 = vmatpush1.bf16.msra.mxu0 0
        %802 = vmatprep.subr.bf16.mxu0 0
        %803 = vmatpush1.bf16.msra.mxu0 0
        %804 = vmatprep.subr.bf16.mxu0 0
        %805 = vmatpush1.bf16.msra.mxu0 0
        %806 = vmatprep.subr.bf16.mxu0 0
        %807 = vmatpush1.bf16.msra.mxu0 0
        %808 = vmatprep.subr.bf16.mxu0 0
        %809 = vmatpush1.bf16.msra.mxu0 0
        %810 = vmatprep.mubr.bf16.mxu0 0
        %811 = vmatmul.mubr.bf16.gmra.mrb[0].mxu0 %v682
        %v812 = vpop.f32.mrb[0].mxu0
        %v813 = vadd.f32 %v765, %v812
        %v814 = vpop.f32.mrb[0].mxu0
        %v815 = vpop.f32.mrb[0].mxu0
        %v816 = vadd.f32 %v765, %v815
        %v817 = vpop.f32.mrb[0].mxu0
        %818 = vmatprep.mubr.bf16.mxu0 0
        %819 = vmatmul.mubr.bf16.gmra.mrb[0].mxu0 %v685
        %v820 = vpop.f32.mrb[0].mxu0
        %v821 = vadd.f32 %v765, %v820
        %v822 = vpop.f32.mrb[0].mxu0
        %v823 = vpop.f32.mrb[0].mxu0
        %v824 = vadd.f32 %v765, %v823
        %v825 = vpop.f32.mrb[0].mxu0
        %826 = vmatprep.mubr.bf16.mxu0 0
        %827 = vmatmul.mubr.bf16.gmra.mrb[0].mxu0 %v688
        %v828 = vpop.f32.mrb[0].mxu0
        %v829 = vadd.f32 %v765, %v828
        %v830 = vpop.f32.mrb[0].mxu0
        %v831 = vpop.f32.mrb[0].mxu0
        %v832 = vadd.f32 %v765, %v831
        %v833 = vpop.f32.mrb[0].mxu0
        %834 = vmatprep.mubr.bf16.mxu0 0
        %835 = vmatmul.mubr.bf16.gmra.mrb[0].mxu0 %v691
        %v836 = vpop.f32.mrb[0].mxu0
        %v837 = vadd.f32 %v765, %v836
        %v838 = vpop.f32.mrb[0].mxu0
        %v839 = vpop.f32.mrb[0].mxu0
        %v840 = vadd.f32 %v765, %v839
        %v841 = vpop.f32.mrb[0].mxu0
        %842 = vdwg.mxu0
        %v843 = vld [vmem:[#allocation9] sm:$0xf]
        %v844 = vld [vmem:[#allocation9 + $0x4] sm:$0xf]
        %v845 = vld [vmem:[#allocation9 + $0x8] sm:$0xf]
        %v846 = vld [vmem:[#allocation9 + $0xc] sm:$0xf]
        %v847 = vlaneseq
        %v848 = vshrl.u32 %v847, 7
        %v849 = vsub.s32 0, %v848
        %v850 = vrot.slane %v471, %v849
        %v855 = vunpack.c.l.b16 %v843
        %v856 = vunpack.c.l.b16 %v844
        %v857 = vunpack.c.l.b16 %v845
        %v858 = vunpack.c.l.b16 %v846
        %v859 = vpack.c.b16 %v856, %v855
        %v860 = vpack.c.b16 %v858, %v857
        %863 = vmatprep.subr.bf16.mxu0 0
        %864 = vmatpush1.bf16.msra.mxu0 %v859
        %865 = vmatprep.subr.bf16.mxu0 0
        %866 = vmatpush1.bf16.msra.mxu0 %v860
        %867 = vmatprep.subr.bf16.mxu0 0
        %868 = vmatpush1.bf16.msra.mxu0 0
        %869 = vmatprep.subr.bf16.mxu0 0
        %870 = vmatpush1.bf16.msra.mxu0 0
        %871 = vmatprep.subr.bf16.mxu0 0
        %872 = vmatpush1.bf16.msra.mxu0 0
        %873 = vmatprep.subr.bf16.mxu0 0
        %874 = vmatpush1.bf16.msra.mxu0 0
        %875 = vmatprep.subr.bf16.mxu0 0
        %876 = vmatpush1.bf16.msra.mxu0 0
        %877 = vmatprep.subr.bf16.mxu0 0
        %878 = vmatpush1.bf16.msra.mxu0 0
        %879 = vmatprep.subr.bf16.mxu0 0
        %880 = vmatpush1.bf16.msra.mxu0 0
        %881 = vmatprep.subr.bf16.mxu0 0
        %882 = vmatpush1.bf16.msra.mxu0 0
        %883 = vmatprep.subr.bf16.mxu0 0
        %884 = vmatpush1.bf16.msra.mxu0 0
        %885 = vmatprep.subr.bf16.mxu0 0
        %886 = vmatpush1.bf16.msra.mxu0 0
        %887 = vmatprep.subr.bf16.mxu0 0
        %888 = vmatpush1.bf16.msra.mxu0 0
        %889 = vmatprep.subr.bf16.mxu0 0
        %890 = vmatpush1.bf16.msra.mxu0 0
        %891 = vmatprep.subr.bf16.mxu0 0
        %892 = vmatpush1.bf16.msra.mxu0 0
        %893 = vmatprep.subr.bf16.mxu0 0
        %894 = vmatpush1.bf16.msra.mxu0 0
        %895 = vmatprep.mubr.bf16.mxu0 0
        %896 = vmatmul.mubr.bf16.gmra.mrb[0].mxu0 %v682
        %v897 = vpop.f32.mrb[0].mxu0
        %v898 = vadd.f32 %v850, %v897
        %v899 = vpop.f32.mrb[0].mxu0
        %v900 = vpop.f32.mrb[0].mxu0
        %v901 = vadd.f32 %v850, %v900
        %v902 = vpop.f32.mrb[0].mxu0
        %903 = vmatprep.mubr.bf16.mxu0 0
        %904 = vmatmul.mubr.bf16.gmra.mrb[0].mxu0 %v685
        %v905 = vpop.f32.mrb[0].mxu0
        %v906 = vadd.f32 %v850, %v905
        %v907 = vpop.f32.mrb[0].mxu0
        %v908 = vpop.f32.mrb[0].mxu0
        %v909 = vadd.f32 %v850, %v908
        %v910 = vpop.f32.mrb[0].mxu0
        %911 = vmatprep.mubr.bf16.mxu0 0
        %912 = vmatmul.mubr.bf16.gmra.mrb[0].mxu0 %v688
        %v913 = vpop.f32.mrb[0].mxu0
        %v914 = vadd.f32 %v850, %v913
        %v915 = vpop.f32.mrb[0].mxu0
        %v916 = vpop.f32.mrb[0].mxu0
        %v917 = vadd.f32 %v850, %v916
        %v918 = vpop.f32.mrb[0].mxu0
        %919 = vmatprep.mubr.bf16.mxu0 0
        %920 = vmatmul.mubr.bf16.gmra.mrb[0].mxu0 %v691
        %v921 = vpop.f32.mrb[0].mxu0
        %v922 = vadd.f32 %v850, %v921
        %v923 = vpop.f32.mrb[0].mxu0
        %v924 = vpop.f32.mrb[0].mxu0
        %v925 = vadd.f32 %v850, %v924
        %v926 = vpop.f32.mrb[0].mxu0
        %927 = vdwg.mxu0
        %v928 = vpack.c.bf16 %v731, %v728
        %v929 = vpack.c.bf16 %v739, %v736
        %v930 = vpack.c.bf16 %v747, %v744
        %v931 = vpack.c.bf16 %v755, %v752
        %v932 = vpack.c.bf16 %v816, %v813
        %v933 = vpack.c.bf16 %v824, %v821
        %v934 = vpack.c.bf16 %v832, %v829
        %v935 = vpack.c.bf16 %v840, %v837
        %v936 = vpack.c.bf16 %v901, %v898
        %v937 = vpack.c.bf16 %v909, %v906
        %v938 = vpack.c.bf16 %v917, %v914
        %v939 = vpack.c.bf16 %v925, %v922
        %v940 = vld [vmem:[%s7] sm:$0xff]
        %v941 = vld [vmem:[%s7 + $0x8] sm:$0xff]
        %vm942 = vcmask 64512
        %v944 = vsel %vm942, %v928, 0
        %v947 = vsel %vm942, %v932, 0
        %949 = vmatprep.subr.bf16.mxu0 0
        %950 = vmatpush1.bf16.xpose.msra.mxu0 %v947
        %951 = vmatprep.subr.bf16.mxu0 0
        %952 = vmatpush1.bf16.xpose.msra.mxu0 0
        %953 = vmatprep.subr.bf16.mxu0 0
        %954 = vmatpush1.bf16.xpose.msra.mxu0 0
        %955 = vmatprep.subr.bf16.mxu0 0
        %956 = vmatpush1.bf16.xpose.msra.mxu0 0
        %957 = vmatprep.subr.bf16.mxu0 0
        %958 = vmatpush1.bf16.xpose.msra.mxu0 0
        %959 = vmatprep.subr.bf16.mxu0 0
        %960 = vmatpush1.bf16.xpose.msra.mxu0 0
        %961 = vmatprep.subr.bf16.mxu0 0
        %962 = vmatpush1.bf16.xpose.msra.mxu0 0
        %963 = vmatprep.subr.bf16.mxu0 0
        %964 = vmatpush1.bf16.xpose.msra.mxu0 0
        %965 = vmatprep.subr.bf16.mxu0 0
        %966 = vmatpush1.bf16.xpose.msra.mxu0 0
        %967 = vmatprep.subr.bf16.mxu0 0
        %968 = vmatpush1.bf16.xpose.msra.mxu0 0
        %969 = vmatprep.subr.bf16.mxu0 0
        %970 = vmatpush1.bf16.xpose.msra.mxu0 0
        %971 = vmatprep.subr.bf16.mxu0 0
        %972 = vmatpush1.bf16.xpose.msra.mxu0 0
        %973 = vmatprep.subr.bf16.mxu0 0
        %974 = vmatpush1.bf16.xpose.msra.mxu0 0
        %975 = vmatprep.subr.bf16.mxu0 0
        %976 = vmatpush1.bf16.xpose.msra.mxu0 0
        %977 = vmatprep.subr.bf16.mxu0 0
        %978 = vmatpush1.bf16.xpose.msra.mxu0 0
        %979 = vmatprep.subr.bf16.mxu0 0
        %980 = vmatpush1.bf16.xpose.msra.mxu0 0
        %981 = vmatprep.mubr.bf16.mxu0 0
        %982 = vmatmul.mubr.bf16.gmra.mrb[0].mxu0 %v944
        %v983 = vpop.f32.mrb[0].mxu0
        %v984 = vadd.f32 %v940, %v983
        %v985 = vpop.f32.mrb[0].mxu0
        %v986 = vpop.f32.mrb[0].mxu0
        %v987 = vadd.f32 %v941, %v986
        %v988 = vpop.f32.mrb[0].mxu0
        %989 = vdwg.mxu0
        %v991 = vsel %vm942, %v929, 0
        %v994 = vsel %vm942, %v933, 0
        %996 = vmatprep.subr.bf16.mxu0 0
        %997 = vmatpush1.bf16.xpose.msra.mxu0 %v994
        %998 = vmatprep.subr.bf16.mxu0 0
        %999 = vmatpush1.bf16.xpose.msra.mxu0 0
        %1000 = vmatprep.subr.bf16.mxu0 0
        %1001 = vmatpush1.bf16.xpose.msra.mxu0 0
        %1002 = vmatprep.subr.bf16.mxu0 0
        %1003 = vmatpush1.bf16.xpose.msra.mxu0 0
        %1004 = vmatprep.subr.bf16.mxu0 0
        %1005 = vmatpush1.bf16.xpose.msra.mxu0 0
        %1006 = vmatprep.subr.bf16.mxu0 0
        %1007 = vmatpush1.bf16.xpose.msra.mxu0 0
        %1008 = vmatprep.subr.bf16.mxu0 0
        %1009 = vmatpush1.bf16.xpose.msra.mxu0 0
        %1010 = vmatprep.subr.bf16.mxu0 0
        %1011 = vmatpush1.bf16.xpose.msra.mxu0 0
        %1012 = vmatprep.subr.bf16.mxu0 0
        %1013 = vmatpush1.bf16.xpose.msra.mxu0 0
        %1014 = vmatprep.subr.bf16.mxu0 0
        %1015 = vmatpush1.bf16.xpose.msra.mxu0 0
        %1016 = vmatprep.subr.bf16.mxu0 0
        %1017 = vmatpush1.bf16.xpose.msra.mxu0 0
        %1018 = vmatprep.subr.bf16.mxu0 0
        %1019 = vmatpush1.bf16.xpose.msra.mxu0 0
        %1020 = vmatprep.subr.bf16.mxu0 0
        %1021 = vmatpush1.bf16.xpose.msra.mxu0 0
        %1022 = vmatprep.subr.bf16.mxu0 0
        %1023 = vmatpush1.bf16.xpose.msra.mxu0 0
        %1024 = vmatprep.subr.bf16.mxu0 0
        %1025 = vmatpush1.bf16.xpose.msra.mxu0 0
        %1026 = vmatprep.subr.bf16.mxu0 0
        %1027 = vmatpush1.bf16.xpose.msra.mxu0 0
        %1028 = vmatprep.mubr.bf16.mxu0 0
        %1029 = vmatmul.mubr.bf16.gmra.mrb[0].mxu0 %v991
        %v1030 = vpop.f32.mrb[0].mxu0
        %v1031 = vadd.f32 %v940, %v1030
        %v1032 = vpop.f32.mrb[0].mxu0
        %v1033 = vpop.f32.mrb[0].mxu0
        %v1034 = vadd.f32 %v941, %v1033
        %v1035 = vpop.f32.mrb[0].mxu0
        %1036 = vdwg.mxu0
        %v1038 = vsel %vm942, %v930, 0
        %v1041 = vsel %vm942, %v934, 0
        %1043 = vmatprep.subr.bf16.mxu0 0
        %1044 = vmatpush1.bf16.xpose.msra.mxu0 %v1041
        %1045 = vmatprep.subr.bf16.mxu0 0
        %1046 = vmatpush1.bf16.xpose.msra.mxu0 0
        %1047 = vmatprep.subr.bf16.mxu0 0
        %1048 = vmatpush1.bf16.xpose.msra.mxu0 0
        %1049 = vmatprep.subr.bf16.mxu0 0
        %1050 = vmatpush1.bf16.xpose.msra.mxu0 0
        %1051 = vmatprep.subr.bf16.mxu0 0
        %1052 = vmatpush1.bf16.xpose.msra.mxu0 0
        %1053 = vmatprep.subr.bf16.mxu0 0
        %1054 = vmatpush1.bf16.xpose.msra.mxu0 0
        %1055 = vmatprep.subr.bf16.mxu0 0
        %1056 = vmatpush1.bf16.xpose.msra.mxu0 0
        %1057 = vmatprep.subr.bf16.mxu0 0
        %1058 = vmatpush1.bf16.xpose.msra.mxu0 0
        %1059 = vmatprep.subr.bf16.mxu0 0
        %1060 = vmatpush1.bf16.xpose.msra.mxu0 0
        %1061 = vmatprep.subr.bf16.mxu0 0
        %1062 = vmatpush1.bf16.xpose.msra.mxu0 0
        %1063 = vmatprep.subr.bf16.mxu0 0
        %1064 = vmatpush1.bf16.xpose.msra.mxu0 0
        %1065 = vmatprep.subr.bf16.mxu0 0
        %1066 = vmatpush1.bf16.xpose.msra.mxu0 0
        %1067 = vmatprep.subr.bf16.mxu0 0
        %1068 = vmatpush1.bf16.xpose.msra.mxu0 0
        %1069 = vmatprep.subr.bf16.mxu0 0
        %1070 = vmatpush1.bf16.xpose.msra.mxu0 0
        %1071 = vmatprep.subr.bf16.mxu0 0
        %1072 = vmatpush1.bf16.xpose.msra.mxu0 0
        %1073 = vmatprep.subr.bf16.mxu0 0
        %1074 = vmatpush1.bf16.xpose.msra.mxu0 0
        %1075 = vmatprep.mubr.bf16.mxu0 0
        %1076 = vmatmul.mubr.bf16.gmra.mrb[0].mxu0 %v1038
        %v1077 = vpop.f32.mrb[0].mxu0
        %v1078 = vadd.f32 %v940, %v1077
        %v1079 = vpop.f32.mrb[0].mxu0
        %v1080 = vpop.f32.mrb[0].mxu0
        %v1081 = vadd.f32 %v941, %v1080
        %v1082 = vpop.f32.mrb[0].mxu0
        %1083 = vdwg.mxu0
        %v1085 = vsel %vm942, %v931, 0
        %v1088 = vsel %vm942, %v935, 0
        %1090 = vmatprep.subr.bf16.mxu0 0
        %1091 = vmatpush1.bf16.xpose.msra.mxu0 %v1088
        %1092 = vmatprep.subr.bf16.mxu0 0
        %1093 = vmatpush1.bf16.xpose.msra.mxu0 0
        %1094 = vmatprep.subr.bf16.mxu0 0
        %1095 = vmatpush1.bf16.xpose.msra.mxu0 0
        %1096 = vmatprep.subr.bf16.mxu0 0
        %1097 = vmatpush1.bf16.xpose.msra.mxu0 0
        %1098 = vmatprep.subr.bf16.mxu0 0
        %1099 = vmatpush1.bf16.xpose.msra.mxu0 0
        %1100 = vmatprep.subr.bf16.mxu0 0
        %1101 = vmatpush1.bf16.xpose.msra.mxu0 0
        %1102 = vmatprep.subr.bf16.mxu0 0
        %1103 = vmatpush1.bf16.xpose.msra.mxu0 0
        %1104 = vmatprep.subr.bf16.mxu0 0
        %1105 = vmatpush1.bf16.xpose.msra.mxu0 0
        %1106 = vmatprep.subr.bf16.mxu0 0
        %1107 = vmatpush1.bf16.xpose.msra.mxu0 0
        %1108 = vmatprep.subr.bf16.mxu0 0
        %1109 = vmatpush1.bf16.xpose.msra.mxu0 0
        %1110 = vmatprep.subr.bf16.mxu0 0
        %1111 = vmatpush1.bf16.xpose.msra.mxu0 0
        %1112 = vmatprep.subr.bf16.mxu0 0
        %1113 = vmatpush1.bf16.xpose.msra.mxu0 0
        %1114 = vmatprep.subr.bf16.mxu0 0
        %1115 = vmatpush1.bf16.xpose.msra.mxu0 0
        %1116 = vmatprep.subr.bf16.mxu0 0
        %1117 = vmatpush1.bf16.xpose.msra.mxu0 0
        %1118 = vmatprep.subr.bf16.mxu0 0
        %1119 = vmatpush1.bf16.xpose.msra.mxu0 0
        %1120 = vmatprep.subr.bf16.mxu0 0
        %1121 = vmatpush1.bf16.xpose.msra.mxu0 0
        %1122 = vmatprep.mubr.bf16.mxu0 0
        %1123 = vmatmul.mubr.bf16.gmra.mrb[0].mxu0 %v1085
        %v1124 = vpop.f32.mrb[0].mxu0
        %v1125 = vadd.f32 %v940, %v1124
        %v1126 = vpop.f32.mrb[0].mxu0
        %v1127 = vpop.f32.mrb[0].mxu0
        %v1128 = vadd.f32 %v941, %v1127
        %v1129 = vpop.f32.mrb[0].mxu0
        %1130 = vdwg.mxu0
        %vm1131 = vcmask 130048
        %v1132 = vsel %vm1131, %v984, -inf
        %1133 = vmax.xlane.f32.xlu0 %v1132
        %v1134 = vpop.xlane.xlu0 %1133
        %v1135 = vsel %vm1131, %v987, -inf
        %1136 = vmax.xlane.f32.xlu0 %v1135
        %v1137 = vpop.xlane.xlu0 %1136
        %v1138 = vsel %vm1131, %v1031, -inf
        %1139 = vmax.xlane.f32.xlu0 %v1138
        %v1140 = vpop.xlane.xlu0 %1139
        %v1141 = vsel %vm1131, %v1034, -inf
        %1142 = vmax.xlane.f32.xlu0 %v1141
        %v1143 = vpop.xlane.xlu0 %1142
        %v1144 = vsel %vm1131, %v1078, -inf
        %1145 = vmax.xlane.f32.xlu0 %v1144
        %v1146 = vpop.xlane.xlu0 %1145
        %v1147 = vsel %vm1131, %v1081, -inf
        %1148 = vmax.xlane.f32.xlu0 %v1147
        %v1149 = vpop.xlane.xlu0 %1148
        %v1150 = vsel %vm1131, %v1125, -inf
        %1151 = vmax.xlane.f32.xlu0 %v1150
        %v1152 = vpop.xlane.xlu0 %1151
        %v1153 = vsel %vm1131, %v1128, -inf
        %1154 = vmax.xlane.f32.xlu0 %v1153
        %v1155 = vpop.xlane.xlu0 %1154
        %v1156 = vsub.f32 %v984, %v1134
        %v1157 = vsub.f32 %v987, %v1137
        %v1158 = vsub.f32 %v1031, %v1140
        %v1159 = vsub.f32 %v1034, %v1143
        %v1160 = vsub.f32 %v1078, %v1146
        %v1161 = vsub.f32 %v1081, %v1149
        %v1162 = vsub.f32 %v1125, %v1152
        %v1163 = vsub.f32 %v1128, %v1155
        %v1164 = vmul.f32 %v1156, 1.442695
        %v1165 = vpow.pop %v1164
        %v1166 = vmul.f32 %v1157, 1.442695
        %v1167 = vpow.pop %v1166
        %v1168 = vmul.f32 %v1158, 1.442695
        %v1169 = vpow.pop %v1168
        %v1170 = vmul.f32 %v1159, 1.442695
        %v1171 = vpow.pop %v1170
        %v1172 = vmul.f32 %v1160, 1.442695
        %v1173 = vpow.pop %v1172
        %v1174 = vmul.f32 %v1161, 1.442695
        %v1175 = vpow.pop %v1174
        %v1176 = vmul.f32 %v1162, 1.442695
        %v1177 = vpow.pop %v1176
        %v1178 = vmul.f32 %v1163, 1.442695
        %v1179 = vpow.pop %v1178
        %v1180 = vsel %vm1131, %v1165, 0.0
        %1181 = vadd.xlane.f32.xlu0 %v1180
        %v1182 = vpop.xlane.xlu0 %1181
        %v1183 = vsel %vm1131, %v1167, 0.0
        %1184 = vadd.xlane.f32.xlu0 %v1183
        %v1185 = vpop.xlane.xlu0 %1184
        %v1186 = vsel %vm1131, %v1169, 0.0
        %1187 = vadd.xlane.f32.xlu0 %v1186
        %v1188 = vpop.xlane.xlu0 %1187
        %v1189 = vsel %vm1131, %v1171, 0.0
        %1190 = vadd.xlane.f32.xlu0 %v1189
        %v1191 = vpop.xlane.xlu0 %1190
        %v1192 = vsel %vm1131, %v1173, 0.0
        %1193 = vadd.xlane.f32.xlu0 %v1192
        %v1194 = vpop.xlane.xlu0 %1193
        %v1195 = vsel %vm1131, %v1175, 0.0
        %1196 = vadd.xlane.f32.xlu0 %v1195
        %v1197 = vpop.xlane.xlu0 %1196
        %v1198 = vsel %vm1131, %v1177, 0.0
        %1199 = vadd.xlane.f32.xlu0 %v1198
        %v1200 = vpop.xlane.xlu0 %1199
        %v1201 = vsel %vm1131, %v1179, 0.0
        %1202 = vadd.xlane.f32.xlu0 %v1201
        %v1203 = vpop.xlane.xlu0 %1202
        %v1204 = vrcp.pop %v1182
        %v1205 = vrcp.pop %v1185
        %v1206 = vrcp.pop %v1188
        %v1207 = vrcp.pop %v1191
        %v1208 = vrcp.pop %v1194
        %v1209 = vrcp.pop %v1197
        %v1210 = vrcp.pop %v1200
        %v1211 = vrcp.pop %v1203
        %v1212 = vmul.f32 %v1165, %v1204
        %v1213 = vmul.f32 %v1167, %v1205
        %v1214 = vmul.f32 %v1169, %v1206
        %v1215 = vmul.f32 %v1171, %v1207
        %v1216 = vmul.f32 %v1173, %v1208
        %v1217 = vmul.f32 %v1175, %v1209
        %v1218 = vmul.f32 %v1177, %v1210
        %v1219 = vmul.f32 %v1179, %v1211
        %v1220 = vpack.c.bf16 %v1213, %v1212
        %v1221 = vpack.c.bf16 %v1215, %v1214
        %v1222 = vpack.c.bf16 %v1217, %v1216
        %v1223 = vpack.c.bf16 %v1219, %v1218
        %v1225 = vsel %vm1131, %v1220, 0
        %1227 = vmatprep.subr.bf16.mxu0 0
        %1228 = vmatpush1.bf16.msra.mxu0 %v936
        %1229 = vmatprep.subr.bf16.mxu0 0
        %1230 = vmatpush1.bf16.msra.mxu0 0
        %1231 = vmatprep.subr.bf16.mxu0 0
        %1232 = vmatpush1.bf16.msra.mxu0 0
        %1233 = vmatprep.subr.bf16.mxu0 0
        %1234 = vmatpush1.bf16.msra.mxu0 0
        %1235 = vmatprep.subr.bf16.mxu0 0
        %1236 = vmatpush1.bf16.msra.mxu0 0
        %1237 = vmatprep.subr.bf16.mxu0 0
        %1238 = vmatpush1.bf16.msra.mxu0 0
        %1239 = vmatprep.subr.bf16.mxu0 0
        %1240 = vmatpush1.bf16.msra.mxu0 0
        %1241 = vmatprep.subr.bf16.mxu0 0
        %1242 = vmatpush1.bf16.msra.mxu0 0
        %1243 = vmatprep.subr.bf16.mxu0 0
        %1244 = vmatpush1.bf16.msra.mxu0 0
        %1245 = vmatprep.subr.bf16.mxu0 0
        %1246 = vmatpush1.bf16.msra.mxu0 0
        %1247 = vmatprep.subr.bf16.mxu0 0
        %1248 = vmatpush1.bf16.msra.mxu0 0
        %1249 = vmatprep.subr.bf16.mxu0 0
        %1250 = vmatpush1.bf16.msra.mxu0 0
        %1251 = vmatprep.subr.bf16.mxu0 0
        %1252 = vmatpush1.bf16.msra.mxu0 0
        %1253 = vmatprep.subr.bf16.mxu0 0
        %1254 = vmatpush1.bf16.msra.mxu0 0
        %1255 = vmatprep.subr.bf16.mxu0 0
        %1256 = vmatpush1.bf16.msra.mxu0 0
        %1257 = vmatprep.subr.bf16.mxu0 0
        %1258 = vmatpush1.bf16.msra.mxu0 0
        %1259 = vmatprep.mubr.bf16.mxu0 0
        %1260 = vmatmul.mubr.bf16.gmra.mrb[0].mxu0 %v1225
        %v1261 = vpop.f32.mrb[0].mxu0
        %v1262 = vadd.f32 0.0, %v1261
        %v1263 = vpop.f32.mrb[0].mxu0
        %v1264 = vpop.f32.mrb[0].mxu0
        %v1265 = vadd.f32 0.0, %v1264
        %v1266 = vpop.f32.mrb[0].mxu0
        %1267 = vdwg.mxu0
        %v1269 = vsel %vm1131, %v1221, 0
        %1271 = vmatprep.subr.bf16.mxu0 0
        %1272 = vmatpush1.bf16.msra.mxu0 %v937
        %1273 = vmatprep.subr.bf16.mxu0 0
        %1274 = vmatpush1.bf16.msra.mxu0 0
        %1275 = vmatprep.subr.bf16.mxu0 0
        %1276 = vmatpush1.bf16.msra.mxu0 0
        %1277 = vmatprep.subr.bf16.mxu0 0
        %1278 = vmatpush1.bf16.msra.mxu0 0
        %1279 = vmatprep.subr.bf16.mxu0 0
        %1280 = vmatpush1.bf16.msra.mxu0 0
        %1281 = vmatprep.subr.bf16.mxu0 0
        %1282 = vmatpush1.bf16.msra.mxu0 0
        %1283 = vmatprep.subr.bf16.mxu0 0
        %1284 = vmatpush1.bf16.msra.mxu0 0
        %1285 = vmatprep.subr.bf16.mxu0 0
        %1286 = vmatpush1.bf16.msra.mxu0 0
        %1287 = vmatprep.subr.bf16.mxu0 0
        %1288 = vmatpush1.bf16.msra.mxu0 0
        %1289 = vmatprep.subr.bf16.mxu0 0
        %1290 = vmatpush1.bf16.msra.mxu0 0
        %1291 = vmatprep.subr.bf16.mxu0 0
        %1292 = vmatpush1.bf16.msra.mxu0 0
        %1293 = vmatprep.subr.bf16.mxu0 0
        %1294 = vmatpush1.bf16.msra.mxu0 0
        %1295 = vmatprep.subr.bf16.mxu0 0
        %1296 = vmatpush1.bf16.msra.mxu0 0
        %1297 = vmatprep.subr.bf16.mxu0 0
        %1298 = vmatpush1.bf16.msra.mxu0 0
        %1299 = vmatprep.subr.bf16.mxu0 0
        %1300 = vmatpush1.bf16.msra.mxu0 0
        %1301 = vmatprep.subr.bf16.mxu0 0
        %1302 = vmatpush1.bf16.msra.mxu0 0
        %1303 = vmatprep.mubr.bf16.mxu0 0
        %1304 = vmatmul.mubr.bf16.gmra.mrb[0].mxu0 %v1269
        %v1305 = vpop.f32.mrb[0].mxu0
        %v1306 = vadd.f32 0.0, %v1305
        %v1307 = vpop.f32.mrb[0].mxu0
        %v1308 = vpop.f32.mrb[0].mxu0
        %v1309 = vadd.f32 0.0, %v1308
        %v1310 = vpop.f32.mrb[0].mxu0
        %1311 = vdwg.mxu0
        %v1313 = vsel %vm1131, %v1222, 0
        %1315 = vmatprep.subr.bf16.mxu0 0
        %1316 = vmatpush1.bf16.msra.mxu0 %v938
        %1317 = vmatprep.subr.bf16.mxu0 0
        %1318 = vmatpush1.bf16.msra.mxu0 0
        %1319 = vmatprep.subr.bf16.mxu0 0
        %1320 = vmatpush1.bf16.msra.mxu0 0
        %1321 = vmatprep.subr.bf16.mxu0 0
        %1322 = vmatpush1.bf16.msra.mxu0 0
        %1323 = vmatprep.subr.bf16.mxu0 0
        %1324 = vmatpush1.bf16.msra.mxu0 0
        %1325 = vmatprep.subr.bf16.mxu0 0
        %1326 = vmatpush1.bf16.msra.mxu0 0
        %1327 = vmatprep.subr.bf16.mxu0 0
        %1328 = vmatpush1.bf16.msra.mxu0 0
        %1329 = vmatprep.subr.bf16.mxu0 0
        %1330 = vmatpush1.bf16.msra.mxu0 0
        %1331 = vmatprep.subr.bf16.mxu0 0
        %1332 = vmatpush1.bf16.msra.mxu0 0
        %1333 = vmatprep.subr.bf16.mxu0 0
        %1334 = vmatpush1.bf16.msra.mxu0 0
        %1335 = vmatprep.subr.bf16.mxu0 0
        %1336 = vmatpush1.bf16.msra.mxu0 0
        %1337 = vmatprep.subr.bf16.mxu0 0
        %1338 = vmatpush1.bf16.msra.mxu0 0
        %1339 = vmatprep.subr.bf16.mxu0 0
        %1340 = vmatpush1.bf16.msra.mxu0 0
        %1341 = vmatprep.subr.bf16.mxu0 0
        %1342 = vmatpush1.bf16.msra.mxu0 0
        %1343 = vmatprep.subr.bf16.mxu0 0
        %1344 = vmatpush1.bf16.msra.mxu0 0
        %1345 = vmatprep.subr.bf16.mxu0 0
        %1346 = vmatpush1.bf16.msra.mxu0 0
        %1347 = vmatprep.mubr.bf16.mxu0 0
        %1348 = vmatmul.mubr.bf16.gmra.mrb[0].mxu0 %v1313
        %v1349 = vpop.f32.mrb[0].mxu0
        %v1350 = vadd.f32 0.0, %v1349
        %v1351 = vpop.f32.mrb[0].mxu0
        %v1352 = vpop.f32.mrb[0].mxu0
        %v1353 = vadd.f32 0.0, %v1352
        %v1354 = vpop.f32.mrb[0].mxu0
        %1355 = vdwg.mxu0
        %v1357 = vsel %vm1131, %v1223, 0
        %1359 = vmatprep.subr.bf16.mxu0 0
        %1360 = vmatpush1.bf16.msra.mxu0 %v939
        %1361 = vmatprep.subr.bf16.mxu0 0
        %1362 = vmatpush1.bf16.msra.mxu0 0
        %1363 = vmatprep.subr.bf16.mxu0 0
        %1364 = vmatpush1.bf16.msra.mxu0 0
        %1365 = vmatprep.subr.bf16.mxu0 0
        %1366 = vmatpush1.bf16.msra.mxu0 0
        %1367 = vmatprep.subr.bf16.mxu0 0
        %1368 = vmatpush1.bf16.msra.mxu0 0
        %1369 = vmatprep.subr.bf16.mxu0 0
        %1370 = vmatpush1.bf16.msra.mxu0 0
        %1371 = vmatprep.subr.bf16.mxu0 0
        %1372 = vmatpush1.bf16.msra.mxu0 0
        %1373 = vmatprep.subr.bf16.mxu0 0
        %1374 = vmatpush1.bf16.msra.mxu0 0
        %1375 = vmatprep.subr.bf16.mxu0 0
        %1376 = vmatpush1.bf16.msra.mxu0 0
        %1377 = vmatprep.subr.bf16.mxu0 0
        %1378 = vmatpush1.bf16.msra.mxu0 0
        %1379 = vmatprep.subr.bf16.mxu0 0
        %1380 = vmatpush1.bf16.msra.mxu0 0
        %1381 = vmatprep.subr.bf16.mxu0 0
        %1382 = vmatpush1.bf16.msra.mxu0 0
        %1383 = vmatprep.subr.bf16.mxu0 0
        %1384 = vmatpush1.bf16.msra.mxu0 0
        %1385 = vmatprep.subr.bf16.mxu0 0
        %1386 = vmatpush1.bf16.msra.mxu0 0
        %1387 = vmatprep.subr.bf16.mxu0 0
        %1388 = vmatpush1.bf16.msra.mxu0 0
        %1389 = vmatprep.subr.bf16.mxu0 0
        %1390 = vmatpush1.bf16.msra.mxu0 0
        %1391 = vmatprep.mubr.bf16.mxu0 0
        %1392 = vmatmul.mubr.bf16.gmra.mrb[0].mxu0 %v1357
        %v1393 = vpop.f32.mrb[0].mxu0
        %v1394 = vadd.f32 0.0, %v1393
        %v1395 = vpop.f32.mrb[0].mxu0
        %v1396 = vpop.f32.mrb[0].mxu0
        %v1397 = vadd.f32 0.0, %v1396
        %v1398 = vpop.f32.mrb[0].mxu0
        %1399 = vdwg.mxu0
        %v1400 = vpack.c.bf16 %v1265, %v1262
        %v1401 = vpack.c.bf16 %v1309, %v1306
        %v1402 = vpack.c.bf16 %v1353, %v1350
        %v1403 = vpack.c.bf16 %v1397, %v1394
        %1404 = vst.msk [vmem:[#allocation2] sm:$0xff] %vm942, %v1400
        %1405 = vst.msk [vmem:[#allocation2 + $0x8] sm:$0xff] %vm942, %v1401
        %1406 = vst.msk [vmem:[#allocation2 + $0x10] sm:$0xff] %vm942, %v1402
        %1407 = vst.msk [vmem:[#allocation2 + $0x18] sm:$0xff] %vm942, %v1403
        %s1408 = scalar_lea.vmem %s7, 16
        %v1409 = vld [vmem:[%s1408] sm:$0xff]
        %v1410 = vld [vmem:[%s1408 + $0x8] sm:$0xff]
        %1412 = vrot.lane.b32.xlu0 %v928, 120
        %v1413 = vpop.permute.xlu0 %1412
        %1415 = vrot.lane.b32.xlu0 %v932, 120
        %v1416 = vpop.permute.xlu0 %1415
        %v1418 = vsel %vm942, %v1413, 0
        %v1421 = vsel %vm942, %v1416, 0
        %1423 = vmatprep.subr.bf16.mxu0 0
        %1424 = vmatpush1.bf16.xpose.msra.mxu0 %v1421
        %1425 = vmatprep.subr.bf16.mxu0 0
        %1426 = vmatpush1.bf16.xpose.msra.mxu0 0
        %1427 = vmatprep.subr.bf16.mxu0 0
        %1428 = vmatpush1.bf16.xpose.msra.mxu0 0
        %1429 = vmatprep.subr.bf16.mxu0 0
        %1430 = vmatpush1.bf16.xpose.msra.mxu0 0
        %1431 = vmatprep.subr.bf16.mxu0 0
        %1432 = vmatpush1.bf16.xpose.msra.mxu0 0
        %1433 = vmatprep.subr.bf16.mxu0 0
        %1434 = vmatpush1.bf16.xpose.msra.mxu0 0
        %1435 = vmatprep.subr.bf16.mxu0 0
        %1436 = vmatpush1.bf16.xpose.msra.mxu0 0
        %1437 = vmatprep.subr.bf16.mxu0 0
        %1438 = vmatpush1.bf16.xpose.msra.mxu0 0
        %1439 = vmatprep.subr.bf16.mxu0 0
        %1440 = vmatpush1.bf16.xpose.msra.mxu0 0
        %1441 = vmatprep.subr.bf16.mxu0 0
        %1442 = vmatpush1.bf16.xpose.msra.mxu0 0
        %1443 = vmatprep.subr.bf16.mxu0 0
        %1444 = vmatpush1.bf16.xpose.msra.mxu0 0
        %1445 = vmatprep.subr.bf16.mxu0 0
        %1446 = vmatpush1.bf16.xpose.msra.mxu0 0
        %1447 = vmatprep.subr.bf16.mxu0 0
        %1448 = vmatpush1.bf16.xpose.msra.mxu0 0
        %1449 = vmatprep.subr.bf16.mxu0 0
        %1450 = vmatpush1.bf16.xpose.msra.mxu0 0
        %1451 = vmatprep.subr.bf16.mxu0 0
        %1452 = vmatpush1.bf16.xpose.msra.mxu0 0
        %1453 = vmatprep.subr.bf16.mxu0 0
        %1454 = vmatpush1.bf16.xpose.msra.mxu0 0
        %1455 = vmatprep.mubr.bf16.mxu0 0
        %1456 = vmatmul.mubr.bf16.gmra.mrb[0].mxu0 %v1418
        %v1457 = vpop.f32.mrb[0].mxu0
        %v1458 = vadd.f32 %v1409, %v1457
        %v1459 = vpop.f32.mrb[0].mxu0
        %v1460 = vpop.f32.mrb[0].mxu0
        %v1461 = vadd.f32 %v1410, %v1460
        %v1462 = vpop.f32.mrb[0].mxu0
        %1463 = vdwg.mxu0
        %1465 = vrot.lane.b32.xlu0 %v929, 120
        %v1466 = vpop.permute.xlu0 %1465
        %1468 = vrot.lane.b32.xlu0 %v933, 120
        %v1469 = vpop.permute.xlu0 %1468
        %v1471 = vsel %vm942, %v1466, 0
        %v1474 = vsel %vm942, %v1469, 0
        %1476 = vmatprep.subr.bf16.mxu0 0
        %1477 = vmatpush1.bf16.xpose.msra.mxu0 %v1474
        %1478 = vmatprep.subr.bf16.mxu0 0
        %1479 = vmatpush1.bf16.xpose.msra.mxu0 0
        %1480 = vmatprep.subr.bf16.mxu0 0
        %1481 = vmatpush1.bf16.xpose.msra.mxu0 0
        %1482 = vmatprep.subr.bf16.mxu0 0
        %1483 = vmatpush1.bf16.xpose.msra.mxu0 0
        %1484 = vmatprep.subr.bf16.mxu0 0
        %1485 = vmatpush1.bf16.xpose.msra.mxu0 0
        %1486 = vmatprep.subr.bf16.mxu0 0
        %1487 = vmatpush1.bf16.xpose.msra.mxu0 0
        %1488 = vmatprep.subr.bf16.mxu0 0
        %1489 = vmatpush1.bf16.xpose.msra.mxu0 0
        %1490 = vmatprep.subr.bf16.mxu0 0
        %1491 = vmatpush1.bf16.xpose.msra.mxu0 0
        %1492 = vmatprep.subr.bf16.mxu0 0
        %1493 = vmatpush1.bf16.xpose.msra.mxu0 0
        %1494 = vmatprep.subr.bf16.mxu0 0
        %1495 = vmatpush1.bf16.xpose.msra.mxu0 0
        %1496 = vmatprep.subr.bf16.mxu0 0
        %1497 = vmatpush1.bf16.xpose.msra.mxu0 0
        %1498 = vmatprep.subr.bf16.mxu0 0
        %1499 = vmatpush1.bf16.xpose.msra.mxu0 0
        %1500 = vmatprep.subr.bf16.mxu0 0
        %1501 = vmatpush1.bf16.xpose.msra.mxu0 0
        %1502 = vmatprep.subr.bf16.mxu0 0
        %1503 = vmatpush1.bf16.xpose.msra.mxu0 0
        %1504 = vmatprep.subr.bf16.mxu0 0
        %1505 = vmatpush1.bf16.xpose.msra.mxu0 0
        %1506 = vmatprep.subr.bf16.mxu0 0
        %1507 = vmatpush1.bf16.xpose.msra.mxu0 0
        %1508 = vmatprep.mubr.bf16.mxu0 0
        %1509 = vmatmul.mubr.bf16.gmra.mrb[0].mxu0 %v1471
        %v1510 = vpop.f32.mrb[0].mxu0
        %v1511 = vadd.f32 %v1409, %v1510
        %v1512 = vpop.f32.mrb[0].mxu0
        %v1513 = vpop.f32.mrb[0].mxu0
        %v1514 = vadd.f32 %v1410, %v1513
        %v1515 = vpop.f32.mrb[0].mxu0
        %1516 = vdwg.mxu0
        %1518 = vrot.lane.b32.xlu0 %v930, 120
        %v1519 = vpop.permute.xlu0 %1518
        %1521 = vrot.lane.b32.xlu0 %v934, 120
        %v1522 = vpop.permute.xlu0 %1521
        %v1524 = vsel %vm942, %v1519, 0
        %v1527 = vsel %vm942, %v1522, 0
        %1529 = vmatprep.subr.bf16.mxu0 0
        %1530 = vmatpush1.bf16.xpose.msra.mxu0 %v1527
        %1531 = vmatprep.subr.bf16.mxu0 0
        %1532 = vmatpush1.bf16.xpose.msra.mxu0 0
        %1533 = vmatprep.subr.bf16.mxu0 0
        %1534 = vmatpush1.bf16.xpose.msra.mxu0 0
        %1535 = vmatprep.subr.bf16.mxu0 0
        %1536 = vmatpush1.bf16.xpose.msra.mxu0 0
        %1537 = vmatprep.subr.bf16.mxu0 0
        %1538 = vmatpush1.bf16.xpose.msra.mxu0 0
        %1539 = vmatprep.subr.bf16.mxu0 0
        %1540 = vmatpush1.bf16.xpose.msra.mxu0 0
        %1541 = vmatprep.subr.bf16.mxu0 0
        %1542 = vmatpush1.bf16.xpose.msra.mxu0 0
        %1543 = vmatprep.subr.bf16.mxu0 0
        %1544 = vmatpush1.bf16.xpose.msra.mxu0 0
        %1545 = vmatprep.subr.bf16.mxu0 0
        %1546 = vmatpush1.bf16.xpose.msra.mxu0 0
        %1547 = vmatprep.subr.bf16.mxu0 0
        %1548 = vmatpush1.bf16.xpose.msra.mxu0 0
        %1549 = vmatprep.subr.bf16.mxu0 0
        %1550 = vmatpush1.bf16.xpose.msra.mxu0 0
        %1551 = vmatprep.subr.bf16.mxu0 0
        %1552 = vmatpush1.bf16.xpose.msra.mxu0 0
        %1553 = vmatprep.subr.bf16.mxu0 0
        %1554 = vmatpush1.bf16.xpose.msra.mxu0 0
        %1555 = vmatprep.subr.bf16.mxu0 0
        %1556 = vmatpush1.bf16.xpose.msra.mxu0 0
        %1557 = vmatprep.subr.bf16.mxu0 0
        %1558 = vmatpush1.bf16.xpose.msra.mxu0 0
        %1559 = vmatprep.subr.bf16.mxu0 0
        %1560 = vmatpush1.bf16.xpose.msra.mxu0 0
        %1561 = vmatprep.mubr.bf16.mxu0 0
        %1562 = vmatmul.mubr.bf16.gmra.mrb[0].mxu0 %v1524
        %v1563 = vpop.f32.mrb[0].mxu0
        %v1564 = vadd.f32 %v1409, %v1563
        %v1565 = vpop.f32.mrb[0].mxu0
        %v1566 = vpop.f32.mrb[0].mxu0
        %v1567 = vadd.f32 %v1410, %v1566
        %v1568 = vpop.f32.mrb[0].mxu0
        %1569 = vdwg.mxu0
        %1571 = vrot.lane.b32.xlu0 %v931, 120
        %v1572 = vpop.permute.xlu0 %1571
        %1574 = vrot.lane.b32.xlu0 %v935, 120
        %v1575 = vpop.permute.xlu0 %1574
        %v1577 = vsel %vm942, %v1572, 0
        %v1580 = vsel %vm942, %v1575, 0
        %1582 = vmatprep.subr.bf16.mxu0 0
        %1583 = vmatpush1.bf16.xpose.msra.mxu0 %v1580
        %1584 = vmatprep.subr.bf16.mxu0 0
        %1585 = vmatpush1.bf16.xpose.msra.mxu0 0
        %1586 = vmatprep.subr.bf16.mxu0 0
        %1587 = vmatpush1.bf16.xpose.msra.mxu0 0
        %1588 = vmatprep.subr.bf16.mxu0 0
        %1589 = vmatpush1.bf16.xpose.msra.mxu0 0
        %1590 = vmatprep.subr.bf16.mxu0 0
        %1591 = vmatpush1.bf16.xpose.msra.mxu0 0
        %1592 = vmatprep.subr.bf16.mxu0 0
        %1593 = vmatpush1.bf16.xpose.msra.mxu0 0
        %1594 = vmatprep.subr.bf16.mxu0 0
        %1595 = vmatpush1.bf16.xpose.msra.mxu0 0
        %1596 = vmatprep.subr.bf16.mxu0 0
        %1597 = vmatpush1.bf16.xpose.msra.mxu0 0
        %1598 = vmatprep.subr.bf16.mxu0 0
        %1599 = vmatpush1.bf16.xpose.msra.mxu0 0
        %1600 = vmatprep.subr.bf16.mxu0 0
        %1601 = vmatpush1.bf16.xpose.msra.mxu0 0
        %1602 = vmatprep.subr.bf16.mxu0 0
        %1603 = vmatpush1.bf16.xpose.msra.mxu0 0
        %1604 = vmatprep.subr.bf16.mxu0 0
        %1605 = vmatpush1.bf16.xpose.msra.mxu0 0
        %1606 = vmatprep.subr.bf16.mxu0 0
        %1607 = vmatpush1.bf16.xpose.msra.mxu0 0
        %1608 = vmatprep.subr.bf16.mxu0 0
        %1609 = vmatpush1.bf16.xpose.msra.mxu0 0
        %1610 = vmatprep.subr.bf16.mxu0 0
        %1611 = vmatpush1.bf16.xpose.msra.mxu0 0
        %1612 = vmatprep.subr.bf16.mxu0 0
        %1613 = vmatpush1.bf16.xpose.msra.mxu0 0
        %1614 = vmatprep.mubr.bf16.mxu0 0
        %1615 = vmatmul.mubr.bf16.gmra.mrb[0].mxu0 %v1577
        %v1616 = vpop.f32.mrb[0].mxu0
        %v1617 = vadd.f32 %v1409, %v1616
        %v1618 = vpop.f32.mrb[0].mxu0
        %v1619 = vpop.f32.mrb[0].mxu0
        %v1620 = vadd.f32 %v1410, %v1619
        %v1621 = vpop.f32.mrb[0].mxu0
        %1622 = vdwg.mxu0
        %v1623 = vsel %vm1131, %v1458, -inf
        %1624 = vmax.xlane.f32.xlu0 %v1623
        %v1625 = vpop.xlane.xlu0 %1624
        %v1626 = vsel %vm1131, %v1461, -inf
        %1627 = vmax.xlane.f32.xlu0 %v1626
        %v1628 = vpop.xlane.xlu0 %1627
        %v1629 = vsel %vm1131, %v1511, -inf
        %1630 = vmax.xlane.f32.xlu0 %v1629
        %v1631 = vpop.xlane.xlu0 %1630
        %v1632 = vsel %vm1131, %v1514, -inf
        %1633 = vmax.xlane.f32.xlu0 %v1632
        %v1634 = vpop.xlane.xlu0 %1633
        %v1635 = vsel %vm1131, %v1564, -inf
        %1636 = vmax.xlane.f32.xlu0 %v1635
        %v1637 = vpop.xlane.xlu0 %1636
        %v1638 = vsel %vm1131, %v1567, -inf
        %1639 = vmax.xlane.f32.xlu0 %v1638
        %v1640 = vpop.xlane.xlu0 %1639
        %v1641 = vsel %vm1131, %v1617, -inf
        %1642 = vmax.xlane.f32.xlu0 %v1641
        %v1643 = vpop.xlane.xlu0 %1642
        %v1644 = vsel %vm1131, %v1620, -inf
        %1645 = vmax.xlane.f32.xlu0 %v1644
        %v1646 = vpop.xlane.xlu0 %1645
        %v1647 = vsub.f32 %v1458, %v1625
        %v1648 = vsub.f32 %v1461, %v1628
        %v1649 = vsub.f32 %v1511, %v1631
        %v1650 = vsub.f32 %v1514, %v1634
        %v1651 = vsub.f32 %v1564, %v1637
        %v1652 = vsub.f32 %v1567, %v1640
        %v1653 = vsub.f32 %v1617, %v1643
        %v1654 = vsub.f32 %v1620, %v1646
        %v1655 = vmul.f32 %v1647, 1.442695
        %v1656 = vpow.pop %v1655
        %v1657 = vmul.f32 %v1648, 1.442695
        %v1658 = vpow.pop %v1657
        %v1659 = vmul.f32 %v1649, 1.442695
        %v1660 = vpow.pop %v1659
        %v1661 = vmul.f32 %v1650, 1.442695
        %v1662 = vpow.pop %v1661
        %v1663 = vmul.f32 %v1651, 1.442695
        %v1664 = vpow.pop %v1663
        %v1665 = vmul.f32 %v1652, 1.442695
        %v1666 = vpow.pop %v1665
        %v1667 = vmul.f32 %v1653, 1.442695
        %v1668 = vpow.pop %v1667
        %v1669 = vmul.f32 %v1654, 1.442695
        %v1670 = vpow.pop %v1669
        %v1671 = vsel %vm1131, %v1656, 0.0
        %1672 = vadd.xlane.f32.xlu0 %v1671
        %v1673 = vpop.xlane.xlu0 %1672
        %v1674 = vsel %vm1131, %v1658, 0.0
        %1675 = vadd.xlane.f32.xlu0 %v1674
        %v1676 = vpop.xlane.xlu0 %1675
        %v1677 = vsel %vm1131, %v1660, 0.0
        %1678 = vadd.xlane.f32.xlu0 %v1677
        %v1679 = vpop.xlane.xlu0 %1678
        %v1680 = vsel %vm1131, %v1662, 0.0
        %1681 = vadd.xlane.f32.xlu0 %v1680
        %v1682 = vpop.xlane.xlu0 %1681
        %v1683 = vsel %vm1131, %v1664, 0.0
        %1684 = vadd.xlane.f32.xlu0 %v1683
        %v1685 = vpop.xlane.xlu0 %1684
        %v1686 = vsel %vm1131, %v1666, 0.0
        %1687 = vadd.xlane.f32.xlu0 %v1686
        %v1688 = vpop.xlane.xlu0 %1687
        %v1689 = vsel %vm1131, %v1668, 0.0
        %1690 = vadd.xlane.f32.xlu0 %v1689
        %v1691 = vpop.xlane.xlu0 %1690
        %v1692 = vsel %vm1131, %v1670, 0.0
        %1693 = vadd.xlane.f32.xlu0 %v1692
        %v1694 = vpop.xlane.xlu0 %1693
        %v1695 = vrcp.pop %v1673
        %v1696 = vrcp.pop %v1676
        %v1697 = vrcp.pop %v1679
        %v1698 = vrcp.pop %v1682
        %v1699 = vrcp.pop %v1685
        %v1700 = vrcp.pop %v1688
        %v1701 = vrcp.pop %v1691
        %v1702 = vrcp.pop %v1694
        %v1703 = vmul.f32 %v1656, %v1695
        %v1704 = vmul.f32 %v1658, %v1696
        %v1705 = vmul.f32 %v1660, %v1697
        %v1706 = vmul.f32 %v1662, %v1698
        %v1707 = vmul.f32 %v1664, %v1699
        %v1708 = vmul.f32 %v1666, %v1700
        %v1709 = vmul.f32 %v1668, %v1701
        %v1710 = vmul.f32 %v1670, %v1702
        %v1711 = vpack.c.bf16 %v1704, %v1703
        %v1712 = vpack.c.bf16 %v1706, %v1705
        %v1713 = vpack.c.bf16 %v1708, %v1707
        %v1714 = vpack.c.bf16 %v1710, %v1709
        %1716 = vrot.lane.b32.xlu0 %v936, 120
        %v1717 = vpop.permute.xlu0 %1716
        %v1720 = vsel %vm1131, %v1711, 0
        %1722 = vmatprep.subr.bf16.mxu0 0
        %1723 = vmatpush1.bf16.msra.mxu0 %v1717
        %1724 = vmatprep.subr.bf16.mxu0 0
        %1725 = vmatpush1.bf16.msra.mxu0 0
        %1726 = vmatprep.subr.bf16.mxu0 0
        %1727 = vmatpush1.bf16.msra.mxu0 0
        %1728 = vmatprep.subr.bf16.mxu0 0
        %1729 = vmatpush1.bf16.msra.mxu0 0
        %1730 = vmatprep.subr.bf16.mxu0 0
        %1731 = vmatpush1.bf16.msra.mxu0 0
        %1732 = vmatprep.subr.bf16.mxu0 0
        %1733 = vmatpush1.bf16.msra.mxu0 0
        %1734 = vmatprep.subr.bf16.mxu0 0
        %1735 = vmatpush1.bf16.msra.mxu0 0
        %1736 = vmatprep.subr.bf16.mxu0 0
        %1737 = vmatpush1.bf16.msra.mxu0 0
        %1738 = vmatprep.subr.bf16.mxu0 0
        %1739 = vmatpush1.bf16.msra.mxu0 0
        %1740 = vmatprep.subr.bf16.mxu0 0
        %1741 = vmatpush1.bf16.msra.mxu0 0
        %1742 = vmatprep.subr.bf16.mxu0 0
        %1743 = vmatpush1.bf16.msra.mxu0 0
        %1744 = vmatprep.subr.bf16.mxu0 0
        %1745 = vmatpush1.bf16.msra.mxu0 0
        %1746 = vmatprep.subr.bf16.mxu0 0
        %1747 = vmatpush1.bf16.msra.mxu0 0
        %1748 = vmatprep.subr.bf16.mxu0 0
        %1749 = vmatpush1.bf16.msra.mxu0 0
        %1750 = vmatprep.subr.bf16.mxu0 0
        %1751 = vmatpush1.bf16.msra.mxu0 0
        %1752 = vmatprep.subr.bf16.mxu0 0
        %1753 = vmatpush1.bf16.msra.mxu0 0
        %1754 = vmatprep.mubr.bf16.mxu0 0
        %1755 = vmatmul.mubr.bf16.gmra.mrb[0].mxu0 %v1720
        %v1756 = vpop.f32.mrb[0].mxu0
        %v1757 = vadd.f32 0.0, %v1756
        %v1758 = vpop.f32.mrb[0].mxu0
        %v1759 = vpop.f32.mrb[0].mxu0
        %v1760 = vadd.f32 0.0, %v1759
        %v1761 = vpop.f32.mrb[0].mxu0
        %1762 = vdwg.mxu0
        %1764 = vrot.lane.b32.xlu0 %v937, 120
        %v1765 = vpop.permute.xlu0 %1764
        %v1768 = vsel %vm1131, %v1712, 0
        %1770 = vmatprep.subr.bf16.mxu0 0
        %1771 = vmatpush1.bf16.msra.mxu0 %v1765
        %1772 = vmatprep.subr.bf16.mxu0 0
        %1773 = vmatpush1.bf16.msra.mxu0 0
        %1774 = vmatprep.subr.bf16.mxu0 0
        %1775 = vmatpush1.bf16.msra.mxu0 0
        %1776 = vmatprep.subr.bf16.mxu0 0
        %1777 = vmatpush1.bf16.msra.mxu0 0
        %1778 = vmatprep.subr.bf16.mxu0 0
        %1779 = vmatpush1.bf16.msra.mxu0 0
        %1780 = vmatprep.subr.bf16.mxu0 0
        %1781 = vmatpush1.bf16.msra.mxu0 0
        %1782 = vmatprep.subr.bf16.mxu0 0
        %1783 = vmatpush1.bf16.msra.mxu0 0
        %1784 = vmatprep.subr.bf16.mxu0 0
        %1785 = vmatpush1.bf16.msra.mxu0 0
        %1786 = vmatprep.subr.bf16.mxu0 0
        %1787 = vmatpush1.bf16.msra.mxu0 0
        %1788 = vmatprep.subr.bf16.mxu0 0
        %1789 = vmatpush1.bf16.msra.mxu0 0
        %1790 = vmatprep.subr.bf16.mxu0 0
        %1791 = vmatpush1.bf16.msra.mxu0 0
        %1792 = vmatprep.subr.bf16.mxu0 0
        %1793 = vmatpush1.bf16.msra.mxu0 0
        %1794 = vmatprep.subr.bf16.mxu0 0
        %1795 = vmatpush1.bf16.msra.mxu0 0
        %1796 = vmatprep.subr.bf16.mxu0 0
        %1797 = vmatpush1.bf16.msra.mxu0 0
        %1798 = vmatprep.subr.bf16.mxu0 0
        %1799 = vmatpush1.bf16.msra.mxu0 0
        %1800 = vmatprep.subr.bf16.mxu0 0
        %1801 = vmatpush1.bf16.msra.mxu0 0
        %1802 = vmatprep.mubr.bf16.mxu0 0
        %1803 = vmatmul.mubr.bf16.gmra.mrb[0].mxu0 %v1768
        %v1804 = vpop.f32.mrb[0].mxu0
        %v1805 = vadd.f32 0.0, %v1804
        %v1806 = vpop.f32.mrb[0].mxu0
        %v1807 = vpop.f32.mrb[0].mxu0
        %v1808 = vadd.f32 0.0, %v1807
        %v1809 = vpop.f32.mrb[0].mxu0
        %1810 = vdwg.mxu0
        %1812 = vrot.lane.b32.xlu0 %v938, 120
        %v1813 = vpop.permute.xlu0 %1812
        %v1816 = vsel %vm1131, %v1713, 0
        %1818 = vmatprep.subr.bf16.mxu0 0
        %1819 = vmatpush1.bf16.msra.mxu0 %v1813
        %1820 = vmatprep.subr.bf16.mxu0 0
        %1821 = vmatpush1.bf16.msra.mxu0 0
        %1822 = vmatprep.subr.bf16.mxu0 0
        %1823 = vmatpush1.bf16.msra.mxu0 0
        %1824 = vmatprep.subr.bf16.mxu0 0
        %1825 = vmatpush1.bf16.msra.mxu0 0
        %1826 = vmatprep.subr.bf16.mxu0 0
        %1827 = vmatpush1.bf16.msra.mxu0 0
        %1828 = vmatprep.subr.bf16.mxu0 0
        %1829 = vmatpush1.bf16.msra.mxu0 0
        %1830 = vmatprep.subr.bf16.mxu0 0
        %1831 = vmatpush1.bf16.msra.mxu0 0
        %1832 = vmatprep.subr.bf16.mxu0 0
        %1833 = vmatpush1.bf16.msra.mxu0 0
        %1834 = vmatprep.subr.bf16.mxu0 0
        %1835 = vmatpush1.bf16.msra.mxu0 0
        %1836 = vmatprep.subr.bf16.mxu0 0
        %1837 = vmatpush1.bf16.msra.mxu0 0
        %1838 = vmatprep.subr.bf16.mxu0 0
        %1839 = vmatpush1.bf16.msra.mxu0 0
        %1840 = vmatprep.subr.bf16.mxu0 0
        %1841 = vmatpush1.bf16.msra.mxu0 0
        %1842 = vmatprep.subr.bf16.mxu0 0
        %1843 = vmatpush1.bf16.msra.mxu0 0
        %1844 = vmatprep.subr.bf16.mxu0 0
        %1845 = vmatpush1.bf16.msra.mxu0 0
        %1846 = vmatprep.subr.bf16.mxu0 0
        %1847 = vmatpush1.bf16.msra.mxu0 0
        %1848 = vmatprep.subr.bf16.mxu0 0
        %1849 = vmatpush1.bf16.msra.mxu0 0
        %1850 = vmatprep.mubr.bf16.mxu0 0
        %1851 = vmatmul.mubr.bf16.gmra.mrb[0].mxu0 %v1816
        %v1852 = vpop.f32.mrb[0].mxu0
        %v1853 = vadd.f32 0.0, %v1852
        %v1854 = vpop.f32.mrb[0].mxu0
        %v1855 = vpop.f32.mrb[0].mxu0
        %v1856 = vadd.f32 0.0, %v1855
        %v1857 = vpop.f32.mrb[0].mxu0
        %1858 = vdwg.mxu0
        %1860 = vrot.lane.b32.xlu0 %v939, 120
        %v1861 = vpop.permute.xlu0 %1860
        %v1864 = vsel %vm1131, %v1714, 0
        %1866 = vmatprep.subr.bf16.mxu0 0
        %1867 = vmatpush1.bf16.msra.mxu0 %v1861
        %1868 = vmatprep.subr.bf16.mxu0 0
        %1869 = vmatpush1.bf16.msra.mxu0 0
        %1870 = vmatprep.subr.bf16.mxu0 0
        %1871 = vmatpush1.bf16.msra.mxu0 0
        %1872 = vmatprep.subr.bf16.mxu0 0
        %1873 = vmatpush1.bf16.msra.mxu0 0
        %1874 = vmatprep.subr.bf16.mxu0 0
        %1875 = vmatpush1.bf16.msra.mxu0 0
        %1876 = vmatprep.subr.bf16.mxu0 0
        %1877 = vmatpush1.bf16.msra.mxu0 0
        %1878 = vmatprep.subr.bf16.mxu0 0
        %1879 = vmatpush1.bf16.msra.mxu0 0
        %1880 = vmatprep.subr.bf16.mxu0 0
        %1881 = vmatpush1.bf16.msra.mxu0 0
        %1882 = vmatprep.subr.bf16.mxu0 0
        %1883 = vmatpush1.bf16.msra.mxu0 0
        %1884 = vmatprep.subr.bf16.mxu0 0
        %1885 = vmatpush1.bf16.msra.mxu0 0
        %1886 = vmatprep.subr.bf16.mxu0 0
        %1887 = vmatpush1.bf16.msra.mxu0 0
        %1888 = vmatprep.subr.bf16.mxu0 0
        %1889 = vmatpush1.bf16.msra.mxu0 0
        %1890 = vmatprep.subr.bf16.mxu0 0
        %1891 = vmatpush1.bf16.msra.mxu0 0
        %1892 = vmatprep.subr.bf16.mxu0 0
        %1893 = vmatpush1.bf16.msra.mxu0 0
        %1894 = vmatprep.subr.bf16.mxu0 0
        %1895 = vmatpush1.bf16.msra.mxu0 0
        %1896 = vmatprep.subr.bf16.mxu0 0
        %1897 = vmatpush1.bf16.msra.mxu0 0
        %1898 = vmatprep.mubr.bf16.mxu0 0
        %1899 = vmatmul.mubr.bf16.gmra.mrb[0].mxu0 %v1864
        %v1900 = vpop.f32.mrb[0].mxu0
        %v1901 = vadd.f32 0.0, %v1900
        %v1902 = vpop.f32.mrb[0].mxu0
        %v1903 = vpop.f32.mrb[0].mxu0
        %v1904 = vadd.f32 0.0, %v1903
        %v1905 = vpop.f32.mrb[0].mxu0
        %1906 = vdwg.mxu0
        %v1907 = vpack.c.bf16 %v1760, %v1757
        %v1908 = vpack.c.bf16 %v1808, %v1805
        %v1909 = vpack.c.bf16 %v1856, %v1853
        %v1910 = vpack.c.bf16 %v1904, %v1901
        %1915 = vrot.lane.b32.xlu0 %v1907, 8
        %v1916 = vpop.permute.xlu0 %1915
        %1917 = vrot.lane.b32.xlu0 %v1908, 8
        %v1918 = vpop.permute.xlu0 %1917
        %1919 = vrot.lane.b32.xlu0 %v1909, 8
        %v1920 = vpop.permute.xlu0 %1919
        %1921 = vrot.lane.b32.xlu0 %v1910, 8
        %v1922 = vpop.permute.xlu0 %1921
        %vm1927 = vcmask 130112
        %1928 = vst.msk [vmem:[#allocation2] sm:$0xff] %vm1927, %v1916
        %1929 = vst.msk [vmem:[#allocation2 + $0x8] sm:$0xff] %vm1927, %v1918
        %1930 = vst.msk [vmem:[#allocation2 + $0x10] sm:$0xff] %vm1927, %v1920
        %1931 = vst.msk [vmem:[#allocation2 + $0x18] sm:$0xff] %vm1927, %v1922
        %s1932 = scalar_lea.vmem %s7, 32
        %v1933 = vld [vmem:[%s1932] sm:$0xff]
        %v1934 = vld [vmem:[%s1932 + $0x8] sm:$0xff]
        %1935 = vrot.lane.b32.xlu0 %v928, 112
        %v1936 = vpop.permute.xlu0 %1935
        %1937 = vrot.lane.b32.xlu0 %v932, 112
        %v1938 = vpop.permute.xlu0 %1937
        %v1940 = vsel %vm942, %v1936, 0
        %v1943 = vsel %vm942, %v1938, 0
        %1945 = vmatprep.subr.bf16.mxu0 0
        %1946 = vmatpush1.bf16.xpose.msra.mxu0 %v1943
        %1947 = vmatprep.subr.bf16.mxu0 0
        %1948 = vmatpush1.bf16.xpose.msra.mxu0 0
        %1949 = vmatprep.subr.bf16.mxu0 0
        %1950 = vmatpush1.bf16.xpose.msra.mxu0 0
        %1951 = vmatprep.subr.bf16.mxu0 0
        %1952 = vmatpush1.bf16.xpose.msra.mxu0 0
        %1953 = vmatprep.subr.bf16.mxu0 0
        %1954 = vmatpush1.bf16.xpose.msra.mxu0 0
        %1955 = vmatprep.subr.bf16.mxu0 0
        %1956 = vmatpush1.bf16.xpose.msra.mxu0 0
        %1957 = vmatprep.subr.bf16.mxu0 0
        %1958 = vmatpush1.bf16.xpose.msra.mxu0 0
        %1959 = vmatprep.subr.bf16.mxu0 0
        %1960 = vmatpush1.bf16.xpose.msra.mxu0 0
        %1961 = vmatprep.subr.bf16.mxu0 0
        %1962 = vmatpush1.bf16.xpose.msra.mxu0 0
        %1963 = vmatprep.subr.bf16.mxu0 0
        %1964 = vmatpush1.bf16.xpose.msra.mxu0 0
        %1965 = vmatprep.subr.bf16.mxu0 0
        %1966 = vmatpush1.bf16.xpose.msra.mxu0 0
        %1967 = vmatprep.subr.bf16.mxu0 0
        %1968 = vmatpush1.bf16.xpose.msra.mxu0 0
        %1969 = vmatprep.subr.bf16.mxu0 0
        %1970 = vmatpush1.bf16.xpose.msra.mxu0 0
        %1971 = vmatprep.subr.bf16.mxu0 0
        %1972 = vmatpush1.bf16.xpose.msra.mxu0 0
        %1973 = vmatprep.subr.bf16.mxu0 0
        %1974 = vmatpush1.bf16.xpose.msra.mxu0 0
        %1975 = vmatprep.subr.bf16.mxu0 0
        %1976 = vmatpush1.bf16.xpose.msra.mxu0 0
        %1977 = vmatprep.mubr.bf16.mxu0 0
        %1978 = vmatmul.mubr.bf16.gmra.mrb[0].mxu0 %v1940
        %v1979 = vpop.f32.mrb[0].mxu0
        %v1980 = vadd.f32 %v1933, %v1979
        %v1981 = vpop.f32.mrb[0].mxu0
        %v1982 = vpop.f32.mrb[0].mxu0
        %v1983 = vadd.f32 %v1934, %v1982
        %v1984 = vpop.f32.mrb[0].mxu0
        %1985 = vdwg.mxu0
        %1986 = vrot.lane.b32.xlu0 %v929, 112
        %v1987 = vpop.permute.xlu0 %1986
        %1988 = vrot.lane.b32.xlu0 %v933, 112
        %v1989 = vpop.permute.xlu0 %1988
        %v1991 = vsel %vm942, %v1987, 0
        %v1994 = vsel %vm942, %v1989, 0
        %1996 = vmatprep.subr.bf16.mxu0 0
        %1997 = vmatpush1.bf16.xpose.msra.mxu0 %v1994
        %1998 = vmatprep.subr.bf16.mxu0 0
        %1999 = vmatpush1.bf16.xpose.msra.mxu0 0
        %2000 = vmatprep.subr.bf16.mxu0 0
        %2001 = vmatpush1.bf16.xpose.msra.mxu0 0
        %2002 = vmatprep.subr.bf16.mxu0 0
        %2003 = vmatpush1.bf16.xpose.msra.mxu0 0
        %2004 = vmatprep.subr.bf16.mxu0 0
        %2005 = vmatpush1.bf16.xpose.msra.mxu0 0
        %2006 = vmatprep.subr.bf16.mxu0 0
        %2007 = vmatpush1.bf16.xpose.msra.mxu0 0
        %2008 = vmatprep.subr.bf16.mxu0 0
        %2009 = vmatpush1.bf16.xpose.msra.mxu0 0
        %2010 = vmatprep.subr.bf16.mxu0 0
        %2011 = vmatpush1.bf16.xpose.msra.mxu0 0
        %2012 = vmatprep.subr.bf16.mxu0 0
        %2013 = vmatpush1.bf16.xpose.msra.mxu0 0
        %2014 = vmatprep.subr.bf16.mxu0 0
        %2015 = vmatpush1.bf16.xpose.msra.mxu0 0
        %2016 = vmatprep.subr.bf16.mxu0 0
        %2017 = vmatpush1.bf16.xpose.msra.mxu0 0
        %2018 = vmatprep.subr.bf16.mxu0 0
        %2019 = vmatpush1.bf16.xpose.msra.mxu0 0
        %2020 = vmatprep.subr.bf16.mxu0 0
        %2021 = vmatpush1.bf16.xpose.msra.mxu0 0
        %2022 = vmatprep.subr.bf16.mxu0 0
        %2023 = vmatpush1.bf16.xpose.msra.mxu0 0
        %2024 = vmatprep.subr.bf16.mxu0 0
        %2025 = vmatpush1.bf16.xpose.msra.mxu0 0
        %2026 = vmatprep.subr.bf16.mxu0 0
        %2027 = vmatpush1.bf16.xpose.msra.mxu0 0
        %2028 = vmatprep.mubr.bf16.mxu0 0
        %2029 = vmatmul.mubr.bf16.gmra.mrb[0].mxu0 %v1991
        %v2030 = vpop.f32.mrb[0].mxu0
        %v2031 = vadd.f32 %v1933, %v2030
        %v2032 = vpop.f32.mrb[0].mxu0
        %v2033 = vpop.f32.mrb[0].mxu0
        %v2034 = vadd.f32 %v1934, %v2033
        %v2035 = vpop.f32.mrb[0].mxu0
        %2036 = vdwg.mxu0
        %2037 = vrot.lane.b32.xlu0 %v930, 112
        %v2038 = vpop.permute.xlu0 %2037
        %2039 = vrot.lane.b32.xlu0 %v934, 112
        %v2040 = vpop.permute.xlu0 %2039
        %v2042 = vsel %vm942, %v2038, 0
        %v2045 = vsel %vm942, %v2040, 0
        %2047 = vmatprep.subr.bf16.mxu0 0
        %2048 = vmatpush1.bf16.xpose.msra.mxu0 %v2045
        %2049 = vmatprep.subr.bf16.mxu0 0
        %2050 = vmatpush1.bf16.xpose.msra.mxu0 0
        %2051 = vmatprep.subr.bf16.mxu0 0
        %2052 = vmatpush1.bf16.xpose.msra.mxu0 0
        %2053 = vmatprep.subr.bf16.mxu0 0
        %2054 = vmatpush1.bf16.xpose.msra.mxu0 0
        %2055 = vmatprep.subr.bf16.mxu0 0
        %2056 = vmatpush1.bf16.xpose.msra.mxu0 0
        %2057 = vmatprep.subr.bf16.mxu0 0
        %2058 = vmatpush1.bf16.xpose.msra.mxu0 0
        %2059 = vmatprep.subr.bf16.mxu0 0
        %2060 = vmatpush1.bf16.xpose.msra.mxu0 0
        %2061 = vmatprep.subr.bf16.mxu0 0
        %2062 = vmatpush1.bf16.xpose.msra.mxu0 0
        %2063 = vmatprep.subr.bf16.mxu0 0
        %2064 = vmatpush1.bf16.xpose.msra.mxu0 0
        %2065 = vmatprep.subr.bf16.mxu0 0
        %2066 = vmatpush1.bf16.xpose.msra.mxu0 0
        %2067 = vmatprep.subr.bf16.mxu0 0
        %2068 = vmatpush1.bf16.xpose.msra.mxu0 0
        %2069 = vmatprep.subr.bf16.mxu0 0
        %2070 = vmatpush1.bf16.xpose.msra.mxu0 0
        %2071 = vmatprep.subr.bf16.mxu0 0
        %2072 = vmatpush1.bf16.xpose.msra.mxu0 0
        %2073 = vmatprep.subr.bf16.mxu0 0
        %2074 = vmatpush1.bf16.xpose.msra.mxu0 0
        %2075 = vmatprep.subr.bf16.mxu0 0
        %2076 = vmatpush1.bf16.xpose.msra.mxu0 0
        %2077 = vmatprep.subr.bf16.mxu0 0
        %2078 = vmatpush1.bf16.xpose.msra.mxu0 0
        %2079 = vmatprep.mubr.bf16.mxu0 0
        %2080 = vmatmul.mubr.bf16.gmra.mrb[0].mxu0 %v2042
        %v2081 = vpop.f32.mrb[0].mxu0
        %v2082 = vadd.f32 %v1933, %v2081
        %v2083 = vpop.f32.mrb[0].mxu0
        %v2084 = vpop.f32.mrb[0].mxu0
        %v2085 = vadd.f32 %v1934, %v2084
        %v2086 = vpop.f32.mrb[0].mxu0
        %2087 = vdwg.mxu0
        %2088 = vrot.lane.b32.xlu0 %v931, 112
        %v2089 = vpop.permute.xlu0 %2088
        %2090 = vrot.lane.b32.xlu0 %v935, 112
        %v2091 = vpop.permute.xlu0 %2090
        %v2093 = vsel %vm942, %v2089, 0
        %v2096 = vsel %vm942, %v2091, 0
        %2098 = vmatprep.subr.bf16.mxu0 0
        %2099 = vmatpush1.bf16.xpose.msra.mxu0 %v2096
        %2100 = vmatprep.subr.bf16.mxu0 0
        %2101 = vmatpush1.bf16.xpose.msra.mxu0 0
        %2102 = vmatprep.subr.bf16.mxu0 0
        %2103 = vmatpush1.bf16.xpose.msra.mxu0 0
        %2104 = vmatprep.subr.bf16.mxu0 0
        %2105 = vmatpush1.bf16.xpose.msra.mxu0 0
        %2106 = vmatprep.subr.bf16.mxu0 0
        %2107 = vmatpush1.bf16.xpose.msra.mxu0 0
        %2108 = vmatprep.subr.bf16.mxu0 0
        %2109 = vmatpush1.bf16.xpose.msra.mxu0 0
        %2110 = vmatprep.subr.bf16.mxu0 0
        %2111 = vmatpush1.bf16.xpose.msra.mxu0 0
        %2112 = vmatprep.subr.bf16.mxu0 0
        %2113 = vmatpush1.bf16.xpose.msra.mxu0 0
        %2114 = vmatprep.subr.bf16.mxu0 0
        %2115 = vmatpush1.bf16.xpose.msra.mxu0 0
        %2116 = vmatprep.subr.bf16.mxu0 0
        %2117 = vmatpush1.bf16.xpose.msra.mxu0 0
        %2118 = vmatprep.subr.bf16.mxu0 0
        %2119 = vmatpush1.bf16.xpose.msra.mxu0 0
        %2120 = vmatprep.subr.bf16.mxu0 0
        %2121 = vmatpush1.bf16.xpose.msra.mxu0 0
        %2122 = vmatprep.subr.bf16.mxu0 0
        %2123 = vmatpush1.bf16.xpose.msra.mxu0 0
        %2124 = vmatprep.subr.bf16.mxu0 0
        %2125 = vmatpush1.bf16.xpose.msra.mxu0 0
        %2126 = vmatprep.subr.bf16.mxu0 0
        %2127 = vmatpush1.bf16.xpose.msra.mxu0 0
        %2128 = vmatprep.subr.bf16.mxu0 0
        %2129 = vmatpush1.bf16.xpose.msra.mxu0 0
        %2130 = vmatprep.mubr.bf16.mxu0 0
        %2131 = vmatmul.mubr.bf16.gmra.mrb[0].mxu0 %v2093
        %v2132 = vpop.f32.mrb[0].mxu0
        %v2133 = vadd.f32 %v1933, %v2132
        %v2134 = vpop.f32.mrb[0].mxu0
        %v2135 = vpop.f32.mrb[0].mxu0
        %v2136 = vadd.f32 %v1934, %v2135
        %v2137 = vpop.f32.mrb[0].mxu0
        %2138 = vdwg.mxu0
        %v2139 = vsel %vm1131, %v1980, -inf
        %2140 = vmax.xlane.f32.xlu0 %v2139
        %v2141 = vpop.xlane.xlu0 %2140
        %v2142 = vsel %vm1131, %v1983, -inf
        %2143 = vmax.xlane.f32.xlu0 %v2142
        %v2144 = vpop.xlane.xlu0 %2143
        %v2145 = vsel %vm1131, %v2031, -inf
        %2146 = vmax.xlane.f32.xlu0 %v2145
        %v2147 = vpop.xlane.xlu0 %2146
        %v2148 = vsel %vm1131, %v2034, -inf
        %2149 = vmax.xlane.f32.xlu0 %v2148
        %v2150 = vpop.xlane.xlu0 %2149
        %v2151 = vsel %vm1131, %v2082, -inf
        %2152 = vmax.xlane.f32.xlu0 %v2151
        %v2153 = vpop.xlane.xlu0 %2152
        %v2154 = vsel %vm1131, %v2085, -inf
        %2155 = vmax.xlane.f32.xlu0 %v2154
        %v2156 = vpop.xlane.xlu0 %2155
        %v2157 = vsel %vm1131, %v2133, -inf
        %2158 = vmax.xlane.f32.xlu0 %v2157
        %v2159 = vpop.xlane.xlu0 %2158
        %v2160 = vsel %vm1131, %v2136, -inf
        %2161 = vmax.xlane.f32.xlu0 %v2160
        %v2162 = vpop.xlane.xlu0 %2161
        %v2163 = vsub.f32 %v1980, %v2141
        %v2164 = vsub.f32 %v1983, %v2144
        %v2165 = vsub.f32 %v2031, %v2147
        %v2166 = vsub.f32 %v2034, %v2150
        %v2167 = vsub.f32 %v2082, %v2153
        %v2168 = vsub.f32 %v2085, %v2156
        %v2169 = vsub.f32 %v2133, %v2159
        %v2170 = vsub.f32 %v2136, %v2162
        %v2171 = vmul.f32 %v2163, 1.442695
        %v2172 = vpow.pop %v2171
        %v2173 = vmul.f32 %v2164, 1.442695
        %v2174 = vpow.pop %v2173
        %v2175 = vmul.f32 %v2165, 1.442695
        %v2176 = vpow.pop %v2175
        %v2177 = vmul.f32 %v2166, 1.442695
        %v2178 = vpow.pop %v2177
        %v2179 = vmul.f32 %v2167, 1.442695
        %v2180 = vpow.pop %v2179
        %v2181 = vmul.f32 %v2168, 1.442695
        %v2182 = vpow.pop %v2181
        %v2183 = vmul.f32 %v2169, 1.442695
        %v2184 = vpow.pop %v2183
        %v2185 = vmul.f32 %v2170, 1.442695
        %v2186 = vpow.pop %v2185
        %v2187 = vsel %vm1131, %v2172, 0.0
        %2188 = vadd.xlane.f32.xlu0 %v2187
        %v2189 = vpop.xlane.xlu0 %2188
        %v2190 = vsel %vm1131, %v2174, 0.0
        %2191 = vadd.xlane.f32.xlu0 %v2190
        %v2192 = vpop.xlane.xlu0 %2191
        %v2193 = vsel %vm1131, %v2176, 0.0
        %2194 = vadd.xlane.f32.xlu0 %v2193
        %v2195 = vpop.xlane.xlu0 %2194
        %v2196 = vsel %vm1131, %v2178, 0.0
        %2197 = vadd.xlane.f32.xlu0 %v2196
        %v2198 = vpop.xlane.xlu0 %2197
        %v2199 = vsel %vm1131, %v2180, 0.0
        %2200 = vadd.xlane.f32.xlu0 %v2199
        %v2201 = vpop.xlane.xlu0 %2200
        %v2202 = vsel %vm1131, %v2182, 0.0
        %2203 = vadd.xlane.f32.xlu0 %v2202
        %v2204 = vpop.xlane.xlu0 %2203
        %v2205 = vsel %vm1131, %v2184, 0.0
        %2206 = vadd.xlane.f32.xlu0 %v2205
        %v2207 = vpop.xlane.xlu0 %2206
        %v2208 = vsel %vm1131, %v2186, 0.0
        %2209 = vadd.xlane.f32.xlu0 %v2208
        %v2210 = vpop.xlane.xlu0 %2209
        %v2211 = vrcp.pop %v2189
        %v2212 = vrcp.pop %v2192
        %v2213 = vrcp.pop %v2195
        %v2214 = vrcp.pop %v2198
        %v2215 = vrcp.pop %v2201
        %v2216 = vrcp.pop %v2204
        %v2217 = vrcp.pop %v2207
        %v2218 = vrcp.pop %v2210
        %v2219 = vmul.f32 %v2172, %v2211
        %v2220 = vmul.f32 %v2174, %v2212
        %v2221 = vmul.f32 %v2176, %v2213
        %v2222 = vmul.f32 %v2178, %v2214
        %v2223 = vmul.f32 %v2180, %v2215
        %v2224 = vmul.f32 %v2182, %v2216
        %v2225 = vmul.f32 %v2184, %v2217
        %v2226 = vmul.f32 %v2186, %v2218
        %v2227 = vpack.c.bf16 %v2220, %v2219
        %v2228 = vpack.c.bf16 %v2222, %v2221
        %v2229 = vpack.c.bf16 %v2224, %v2223
        %v2230 = vpack.c.bf16 %v2226, %v2225
        %2231 = vrot.lane.b32.xlu0 %v936, 112
        %v2232 = vpop.permute.xlu0 %2231
        %v2235 = vsel %vm1131, %v2227, 0
        %2237 = vmatprep.subr.bf16.mxu0 0
        %2238 = vmatpush1.bf16.msra.mxu0 %v2232
        %2239 = vmatprep.subr.bf16.mxu0 0
        %2240 = vmatpush1.bf16.msra.mxu0 0
        %2241 = vmatprep.subr.bf16.mxu0 0
        %2242 = vmatpush1.bf16.msra.mxu0 0
        %2243 = vmatprep.subr.bf16.mxu0 0
        %2244 = vmatpush1.bf16.msra.mxu0 0
        %2245 = vmatprep.subr.bf16.mxu0 0
        %2246 = vmatpush1.bf16.msra.mxu0 0
        %2247 = vmatprep.subr.bf16.mxu0 0
        %2248 = vmatpush1.bf16.msra.mxu0 0
        %2249 = vmatprep.subr.bf16.mxu0 0
        %2250 = vmatpush1.bf16.msra.mxu0 0
        %2251 = vmatprep.subr.bf16.mxu0 0
        %2252 = vmatpush1.bf16.msra.mxu0 0
        %2253 = vmatprep.subr.bf16.mxu0 0
        %2254 = vmatpush1.bf16.msra.mxu0 0
        %2255 = vmatprep.subr.bf16.mxu0 0
        %2256 = vmatpush1.bf16.msra.mxu0 0
        %2257 = vmatprep.subr.bf16.mxu0 0
        %2258 = vmatpush1.bf16.msra.mxu0 0
        %2259 = vmatprep.subr.bf16.mxu0 0
        %2260 = vmatpush1.bf16.msra.mxu0 0
        %2261 = vmatprep.subr.bf16.mxu0 0
        %2262 = vmatpush1.bf16.msra.mxu0 0
        %2263 = vmatprep.subr.bf16.mxu0 0
        %2264 = vmatpush1.bf16.msra.mxu0 0
        %2265 = vmatprep.subr.bf16.mxu0 0
        %2266 = vmatpush1.bf16.msra.mxu0 0
        %2267 = vmatprep.subr.bf16.mxu0 0
        %2268 = vmatpush1.bf16.msra.mxu0 0
        %2269 = vmatprep.mubr.bf16.mxu0 0
        %2270 = vmatmul.mubr.bf16.gmra.mrb[0].mxu0 %v2235
        %v2271 = vpop.f32.mrb[0].mxu0
        %v2272 = vadd.f32 0.0, %v2271
        %v2273 = vpop.f32.mrb[0].mxu0
        %v2274 = vpop.f32.mrb[0].mxu0
        %v2275 = vadd.f32 0.0, %v2274
        %v2276 = vpop.f32.mrb[0].mxu0
        %2277 = vdwg.mxu0
        %2278 = vrot.lane.b32.xlu0 %v937, 112
        %v2279 = vpop.permute.xlu0 %2278
        %v2282 = vsel %vm1131, %v2228, 0
        %2284 = vmatprep.subr.bf16.mxu0 0
        %2285 = vmatpush1.bf16.msra.mxu0 %v2279
        %2286 = vmatprep.subr.bf16.mxu0 0
        %2287 = vmatpush1.bf16.msra.mxu0 0
        %2288 = vmatprep.subr.bf16.mxu0 0
        %2289 = vmatpush1.bf16.msra.mxu0 0
        %2290 = vmatprep.subr.bf16.mxu0 0
        %2291 = vmatpush1.bf16.msra.mxu0 0
        %2292 = vmatprep.subr.bf16.mxu0 0
        %2293 = vmatpush1.bf16.msra.mxu0 0
        %2294 = vmatprep.subr.bf16.mxu0 0
        %2295 = vmatpush1.bf16.msra.mxu0 0
        %2296 = vmatprep.subr.bf16.mxu0 0
        %2297 = vmatpush1.bf16.msra.mxu0 0
        %2298 = vmatprep.subr.bf16.mxu0 0
        %2299 = vmatpush1.bf16.msra.mxu0 0
        %2300 = vmatprep.subr.bf16.mxu0 0
        %2301 = vmatpush1.bf16.msra.mxu0 0
        %2302 = vmatprep.subr.bf16.mxu0 0
        %2303 = vmatpush1.bf16.msra.mxu0 0
        %2304 = vmatprep.subr.bf16.mxu0 0
        %2305 = vmatpush1.bf16.msra.mxu0 0
        %2306 = vmatprep.subr.bf16.mxu0 0
        %2307 = vmatpush1.bf16.msra.mxu0 0
        %2308 = vmatprep.subr.bf16.mxu0 0
        %2309 = vmatpush1.bf16.msra.mxu0 0
        %2310 = vmatprep.subr.bf16.mxu0 0
        %2311 = vmatpush1.bf16.msra.mxu0 0
        %2312 = vmatprep.subr.bf16.mxu0 0
        %2313 = vmatpush1.bf16.msra.mxu0 0
        %2314 = vmatprep.subr.bf16.mxu0 0
        %2315 = vmatpush1.bf16.msra.mxu0 0
        %2316 = vmatprep.mubr.bf16.mxu0 0
        %2317 = vmatmul.mubr.bf16.gmra.mrb[0].mxu0 %v2282
        %v2318 = vpop.f32.mrb[0].mxu0
        %v2319 = vadd.f32 0.0, %v2318
        %v2320 = vpop.f32.mrb[0].mxu0
        %v2321 = vpop.f32.mrb[0].mxu0
        %v2322 = vadd.f32 0.0, %v2321
        %v2323 = vpop.f32.mrb[0].mxu0
        %2324 = vdwg.mxu0
        %2325 = vrot.lane.b32.xlu0 %v938, 112
        %v2326 = vpop.permute.xlu0 %2325
        %v2329 = vsel %vm1131, %v2229, 0
        %2331 = vmatprep.subr.bf16.mxu0 0
        %2332 = vmatpush1.bf16.msra.mxu0 %v2326
        %2333 = vmatprep.subr.bf16.mxu0 0
        %2334 = vmatpush1.bf16.msra.mxu0 0
        %2335 = vmatprep.subr.bf16.mxu0 0
        %2336 = vmatpush1.bf16.msra.mxu0 0
        %2337 = vmatprep.subr.bf16.mxu0 0
        %2338 = vmatpush1.bf16.msra.mxu0 0
        %2339 = vmatprep.subr.bf16.mxu0 0
        %2340 = vmatpush1.bf16.msra.mxu0 0
        %2341 = vmatprep.subr.bf16.mxu0 0
        %2342 = vmatpush1.bf16.msra.mxu0 0
        %2343 = vmatprep.subr.bf16.mxu0 0
        %2344 = vmatpush1.bf16.msra.mxu0 0
        %2345 = vmatprep.subr.bf16.mxu0 0
        %2346 = vmatpush1.bf16.msra.mxu0 0
        %2347 = vmatprep.subr.bf16.mxu0 0
        %2348 = vmatpush1.bf16.msra.mxu0 0
        %2349 = vmatprep.subr.bf16.mxu0 0
        %2350 = vmatpush1.bf16.msra.mxu0 0
        %2351 = vmatprep.subr.bf16.mxu0 0
        %2352 = vmatpush1.bf16.msra.mxu0 0
        %2353 = vmatprep.subr.bf16.mxu0 0
        %2354 = vmatpush1.bf16.msra.mxu0 0
        %2355 = vmatprep.subr.bf16.mxu0 0
        %2356 = vmatpush1.bf16.msra.mxu0 0
        %2357 = vmatprep.subr.bf16.mxu0 0
        %2358 = vmatpush1.bf16.msra.mxu0 0
        %2359 = vmatprep.subr.bf16.mxu0 0
        %2360 = vmatpush1.bf16.msra.mxu0 0
        %2361 = vmatprep.subr.bf16.mxu0 0
        %2362 = vmatpush1.bf16.msra.mxu0 0
        %2363 = vmatprep.mubr.bf16.mxu0 0
        %2364 = vmatmul.mubr.bf16.gmra.mrb[0].mxu0 %v2329
        %v2365 = vpop.f32.mrb[0].mxu0
        %v2366 = vadd.f32 0.0, %v2365
        %v2367 = vpop.f32.mrb[0].mxu0
        %v2368 = vpop.f32.mrb[0].mxu0
        %v2369 = vadd.f32 0.0, %v2368
        %v2370 = vpop.f32.mrb[0].mxu0
        %2371 = vdwg.mxu0
        %2372 = vrot.lane.b32.xlu0 %v939, 112
        %v2373 = vpop.permute.xlu0 %2372
        %v2376 = vsel %vm1131, %v2230, 0
        %2378 = vmatprep.subr.bf16.mxu0 0
        %2379 = vmatpush1.bf16.msra.mxu0 %v2373
        %2380 = vmatprep.subr.bf16.mxu0 0
        %2381 = vmatpush1.bf16.msra.mxu0 0
        %2382 = vmatprep.subr.bf16.mxu0 0
        %2383 = vmatpush1.bf16.msra.mxu0 0
        %2384 = vmatprep.subr.bf16.mxu0 0
        %2385 = vmatpush1.bf16.msra.mxu0 0
        %2386 = vmatprep.subr.bf16.mxu0 0
        %2387 = vmatpush1.bf16.msra.mxu0 0
        %2388 = vmatprep.subr.bf16.mxu0 0
        %2389 = vmatpush1.bf16.msra.mxu0 0
        %2390 = vmatprep.subr.bf16.mxu0 0
        %2391 = vmatpush1.bf16.msra.mxu0 0
        %2392 = vmatprep.subr.bf16.mxu0 0
        %2393 = vmatpush1.bf16.msra.mxu0 0
        %2394 = vmatprep.subr.bf16.mxu0 0
        %2395 = vmatpush1.bf16.msra.mxu0 0
        %2396 = vmatprep.subr.bf16.mxu0 0
        %2397 = vmatpush1.bf16.msra.mxu0 0
        %2398 = vmatprep.subr.bf16.mxu0 0
        %2399 = vmatpush1.bf16.msra.mxu0 0
        %2400 = vmatprep.subr.bf16.mxu0 0
        %2401 = vmatpush1.bf16.msra.mxu0 0
        %2402 = vmatprep.subr.bf16.mxu0 0
        %2403 = vmatpush1.bf16.msra.mxu0 0
        %2404 = vmatprep.subr.bf16.mxu0 0
        %2405 = vmatpush1.bf16.msra.mxu0 0
        %2406 = vmatprep.subr.bf16.mxu0 0
        %2407 = vmatpush1.bf16.msra.mxu0 0
        %2408 = vmatprep.subr.bf16.mxu0 0
        %2409 = vmatpush1.bf16.msra.mxu0 0
        %2410 = vmatprep.mubr.bf16.mxu0 0
        %2411 = vmatmul.mubr.bf16.gmra.mrb[0].mxu0 %v2376
        %v2412 = vpop.f32.mrb[0].mxu0
        %v2413 = vadd.f32 0.0, %v2412
        %v2414 = vpop.f32.mrb[0].mxu0
        %v2415 = vpop.f32.mrb[0].mxu0
        %v2416 = vadd.f32 0.0, %v2415
        %v2417 = vpop.f32.mrb[0].mxu0
        %2418 = vdwg.mxu0
        %v2419 = vpack.c.bf16 %v2275, %v2272
        %v2420 = vpack.c.bf16 %v2322, %v2319
        %v2421 = vpack.c.bf16 %v2369, %v2366
        %v2422 = vpack.c.bf16 %v2416, %v2413
        %2427 = vrot.lane.b32.xlu0 %v2419, 16
        %v2428 = vpop.permute.xlu0 %2427
        %2429 = vrot.lane.b32.xlu0 %v2420, 16
        %v2430 = vpop.permute.xlu0 %2429
        %2431 = vrot.lane.b32.xlu0 %v2421, 16
        %v2432 = vpop.permute.xlu0 %2431
        %2433 = vrot.lane.b32.xlu0 %v2422, 16
        %v2434 = vpop.permute.xlu0 %2433
        %vm2439 = vcmask 195712
        %2440 = vst.msk [vmem:[#allocation2] sm:$0xff] %vm2439, %v2428
        %2441 = vst.msk [vmem:[#allocation2 + $0x8] sm:$0xff] %vm2439, %v2430
        %2442 = vst.msk [vmem:[#allocation2 + $0x10] sm:$0xff] %vm2439, %v2432
        %2443 = vst.msk [vmem:[#allocation2 + $0x18] sm:$0xff] %vm2439, %v2434
        %s2444 = scalar_lea.vmem %s7, 48
        %v2445 = vld [vmem:[%s2444] sm:$0xff]
        %v2446 = vld [vmem:[%s2444 + $0x8] sm:$0xff]
        %2447 = vrot.lane.b32.xlu0 %v928, 104
        %v2448 = vpop.permute.xlu0 %2447
        %2449 = vrot.lane.b32.xlu0 %v932, 104
        %v2450 = vpop.permute.xlu0 %2449
        %v2452 = vsel %vm942, %v2448, 0
        %v2455 = vsel %vm942, %v2450, 0
        %2457 = vmatprep.subr.bf16.mxu0 0
        %2458 = vmatpush1.bf16.xpose.msra.mxu0 %v2455
        %2459 = vmatprep.subr.bf16.mxu0 0
        %2460 = vmatpush1.bf16.xpose.msra.mxu0 0
        %2461 = vmatprep.subr.bf16.mxu0 0
        %2462 = vmatpush1.bf16.xpose.msra.mxu0 0
        %2463 = vmatprep.subr.bf16.mxu0 0
        %2464 = vmatpush1.bf16.xpose.msra.mxu0 0
        %2465 = vmatprep.subr.bf16.mxu0 0
        %2466 = vmatpush1.bf16.xpose.msra.mxu0 0
        %2467 = vmatprep.subr.bf16.mxu0 0
        %2468 = vmatpush1.bf16.xpose.msra.mxu0 0
        %2469 = vmatprep.subr.bf16.mxu0 0
        %2470 = vmatpush1.bf16.xpose.msra.mxu0 0
        %2471 = vmatprep.subr.bf16.mxu0 0
        %2472 = vmatpush1.bf16.xpose.msra.mxu0 0
        %2473 = vmatprep.subr.bf16.mxu0 0
        %2474 = vmatpush1.bf16.xpose.msra.mxu0 0
        %2475 = vmatprep.subr.bf16.mxu0 0
        %2476 = vmatpush1.bf16.xpose.msra.mxu0 0
        %2477 = vmatprep.subr.bf16.mxu0 0
        %2478 = vmatpush1.bf16.xpose.msra.mxu0 0
        %2479 = vmatprep.subr.bf16.mxu0 0
        %2480 = vmatpush1.bf16.xpose.msra.mxu0 0
        %2481 = vmatprep.subr.bf16.mxu0 0
        %2482 = vmatpush1.bf16.xpose.msra.mxu0 0
        %2483 = vmatprep.subr.bf16.mxu0 0
        %2484 = vmatpush1.bf16.xpose.msra.mxu0 0
        %2485 = vmatprep.subr.bf16.mxu0 0
        %2486 = vmatpush1.bf16.xpose.msra.mxu0 0
        %2487 = vmatprep.subr.bf16.mxu0 0
        %2488 = vmatpush1.bf16.xpose.msra.mxu0 0
        %2489 = vmatprep.mubr.bf16.mxu0 0
        %2490 = vmatmul.mubr.bf16.gmra.mrb[0].mxu0 %v2452
        %v2491 = vpop.f32.mrb[0].mxu0
        %v2492 = vadd.f32 %v2445, %v2491
        %v2493 = vpop.f32.mrb[0].mxu0
        %v2494 = vpop.f32.mrb[0].mxu0
        %v2495 = vadd.f32 %v2446, %v2494
        %v2496 = vpop.f32.mrb[0].mxu0
        %2497 = vdwg.mxu0
        %2498 = vrot.lane.b32.xlu0 %v929, 104
        %v2499 = vpop.permute.xlu0 %2498
        %2500 = vrot.lane.b32.xlu0 %v933, 104
        %v2501 = vpop.permute.xlu0 %2500
        %v2503 = vsel %vm942, %v2499, 0
        %v2506 = vsel %vm942, %v2501, 0
        %2508 = vmatprep.subr.bf16.mxu0 0
        %2509 = vmatpush1.bf16.xpose.msra.mxu0 %v2506
        %2510 = vmatprep.subr.bf16.mxu0 0
        %2511 = vmatpush1.bf16.xpose.msra.mxu0 0
        %2512 = vmatprep.subr.bf16.mxu0 0
        %2513 = vmatpush1.bf16.xpose.msra.mxu0 0
        %2514 = vmatprep.subr.bf16.mxu0 0
        %2515 = vmatpush1.bf16.xpose.msra.mxu0 0
        %2516 = vmatprep.subr.bf16.mxu0 0
        %2517 = vmatpush1.bf16.xpose.msra.mxu0 0
        %2518 = vmatprep.subr.bf16.mxu0 0
        %2519 = vmatpush1.bf16.xpose.msra.mxu0 0
        %2520 = vmatprep.subr.bf16.mxu0 0
        %2521 = vmatpush1.bf16.xpose.msra.mxu0 0
        %2522 = vmatprep.subr.bf16.mxu0 0
        %2523 = vmatpush1.bf16.xpose.msra.mxu0 0
        %2524 = vmatprep.subr.bf16.mxu0 0
        %2525 = vmatpush1.bf16.xpose.msra.mxu0 0
        %2526 = vmatprep.subr.bf16.mxu0 0
        %2527 = vmatpush1.bf16.xpose.msra.mxu0 0
        %2528 = vmatprep.subr.bf16.mxu0 0
        %2529 = vmatpush1.bf16.xpose.msra.mxu0 0
        %2530 = vmatprep.subr.bf16.mxu0 0
        %2531 = vmatpush1.bf16.xpose.msra.mxu0 0
        %2532 = vmatprep.subr.bf16.mxu0 0
        %2533 = vmatpush1.bf16.xpose.msra.mxu0 0
        %2534 = vmatprep.subr.bf16.mxu0 0
        %2535 = vmatpush1.bf16.xpose.msra.mxu0 0
        %2536 = vmatprep.subr.bf16.mxu0 0
        %2537 = vmatpush1.bf16.xpose.msra.mxu0 0
        %2538 = vmatprep.subr.bf16.mxu0 0
        %2539 = vmatpush1.bf16.xpose.msra.mxu0 0
        %2540 = vmatprep.mubr.bf16.mxu0 0
        %2541 = vmatmul.mubr.bf16.gmra.mrb[0].mxu0 %v2503
        %v2542 = vpop.f32.mrb[0].mxu0
        %v2543 = vadd.f32 %v2445, %v2542
        %v2544 = vpop.f32.mrb[0].mxu0
        %v2545 = vpop.f32.mrb[0].mxu0
        %v2546 = vadd.f32 %v2446, %v2545
        %v2547 = vpop.f32.mrb[0].mxu0
        %2548 = vdwg.mxu0
        %2549 = vrot.lane.b32.xlu0 %v930, 104
        %v2550 = vpop.permute.xlu0 %2549
        %2551 = vrot.lane.b32.xlu0 %v934, 104
        %v2552 = vpop.permute.xlu0 %2551
        %v2554 = vsel %vm942, %v2550, 0
        %v2557 = vsel %vm942, %v2552, 0
        %2559 = vmatprep.subr.bf16.mxu0 0
        %2560 = vmatpush1.bf16.xpose.msra.mxu0 %v2557
        %2561 = vmatprep.subr.bf16.mxu0 0
        %2562 = vmatpush1.bf16.xpose.msra.mxu0 0
        %2563 = vmatprep.subr.bf16.mxu0 0
        %2564 = vmatpush1.bf16.xpose.msra.mxu0 0
        %2565 = vmatprep.subr.bf16.mxu0 0
        %2566 = vmatpush1.bf16.xpose.msra.mxu0 0
        %2567 = vmatprep.subr.bf16.mxu0 0
        %2568 = vmatpush1.bf16.xpose.msra.mxu0 0
        %2569 = vmatprep.subr.bf16.mxu0 0
        %2570 = vmatpush1.bf16.xpose.msra.mxu0 0
        %2571 = vmatprep.subr.bf16.mxu0 0
        %2572 = vmatpush1.bf16.xpose.msra.mxu0 0
        %2573 = vmatprep.subr.bf16.mxu0 0
        %2574 = vmatpush1.bf16.xpose.msra.mxu0 0
        %2575 = vmatprep.subr.bf16.mxu0 0
        %2576 = vmatpush1.bf16.xpose.msra.mxu0 0
        %2577 = vmatprep.subr.bf16.mxu0 0
        %2578 = vmatpush1.bf16.xpose.msra.mxu0 0
        %2579 = vmatprep.subr.bf16.mxu0 0
        %2580 = vmatpush1.bf16.xpose.msra.mxu0 0
        %2581 = vmatprep.subr.bf16.mxu0 0
        %2582 = vmatpush1.bf16.xpose.msra.mxu0 0
        %2583 = vmatprep.subr.bf16.mxu0 0
        %2584 = vmatpush1.bf16.xpose.msra.mxu0 0
        %2585 = vmatprep.subr.bf16.mxu0 0
        %2586 = vmatpush1.bf16.xpose.msra.mxu0 0
        %2587 = vmatprep.subr.bf16.mxu0 0
        %2588 = vmatpush1.bf16.xpose.msra.mxu0 0
        %2589 = vmatprep.subr.bf16.mxu0 0
        %2590 = vmatpush1.bf16.xpose.msra.mxu0 0
        %2591 = vmatprep.mubr.bf16.mxu0 0
        %2592 = vmatmul.mubr.bf16.gmra.mrb[0].mxu0 %v2554
        %v2593 = vpop.f32.mrb[0].mxu0
        %v2594 = vadd.f32 %v2445, %v2593
        %v2595 = vpop.f32.mrb[0].mxu0
        %v2596 = vpop.f32.mrb[0].mxu0
        %v2597 = vadd.f32 %v2446, %v2596
        %v2598 = vpop.f32.mrb[0].mxu0
        %2599 = vdwg.mxu0
        %2600 = vrot.lane.b32.xlu0 %v931, 104
        %v2601 = vpop.permute.xlu0 %2600
        %2602 = vrot.lane.b32.xlu0 %v935, 104
        %v2603 = vpop.permute.xlu0 %2602
        %v2605 = vsel %vm942, %v2601, 0
        %v2608 = vsel %vm942, %v2603, 0
        %2610 = vmatprep.subr.bf16.mxu0 0
        %2611 = vmatpush1.bf16.xpose.msra.mxu0 %v2608
        %2612 = vmatprep.subr.bf16.mxu0 0
        %2613 = vmatpush1.bf16.xpose.msra.mxu0 0
        %2614 = vmatprep.subr.bf16.mxu0 0
        %2615 = vmatpush1.bf16.xpose.msra.mxu0 0
        %2616 = vmatprep.subr.bf16.mxu0 0
        %2617 = vmatpush1.bf16.xpose.msra.mxu0 0
        %2618 = vmatprep.subr.bf16.mxu0 0
        %2619 = vmatpush1.bf16.xpose.msra.mxu0 0
        %2620 = vmatprep.subr.bf16.mxu0 0
        %2621 = vmatpush1.bf16.xpose.msra.mxu0 0
        %2622 = vmatprep.subr.bf16.mxu0 0
        %2623 = vmatpush1.bf16.xpose.msra.mxu0 0
        %2624 = vmatprep.subr.bf16.mxu0 0
        %2625 = vmatpush1.bf16.xpose.msra.mxu0 0
        %2626 = vmatprep.subr.bf16.mxu0 0
        %2627 = vmatpush1.bf16.xpose.msra.mxu0 0
        %2628 = vmatprep.subr.bf16.mxu0 0
        %2629 = vmatpush1.bf16.xpose.msra.mxu0 0
        %2630 = vmatprep.subr.bf16.mxu0 0
        %2631 = vmatpush1.bf16.xpose.msra.mxu0 0
        %2632 = vmatprep.subr.bf16.mxu0 0
        %2633 = vmatpush1.bf16.xpose.msra.mxu0 0
        %2634 = vmatprep.subr.bf16.mxu0 0
        %2635 = vmatpush1.bf16.xpose.msra.mxu0 0
        %2636 = vmatprep.subr.bf16.mxu0 0
        %2637 = vmatpush1.bf16.xpose.msra.mxu0 0
        %2638 = vmatprep.subr.bf16.mxu0 0
        %2639 = vmatpush1.bf16.xpose.msra.mxu0 0
        %2640 = vmatprep.subr.bf16.mxu0 0
        %2641 = vmatpush1.bf16.xpose.msra.mxu0 0
        %2642 = vmatprep.mubr.bf16.mxu0 0
        %2643 = vmatmul.mubr.bf16.gmra.mrb[0].mxu0 %v2605
        %v2644 = vpop.f32.mrb[0].mxu0
        %v2645 = vadd.f32 %v2445, %v2644
        %v2646 = vpop.f32.mrb[0].mxu0
        %v2647 = vpop.f32.mrb[0].mxu0
        %v2648 = vadd.f32 %v2446, %v2647
        %v2649 = vpop.f32.mrb[0].mxu0
        %2650 = vdwg.mxu0
        %v2651 = vsel %vm1131, %v2492, -inf
        %2652 = vmax.xlane.f32.xlu0 %v2651
        %v2653 = vpop.xlane.xlu0 %2652
        %v2654 = vsel %vm1131, %v2495, -inf
        %2655 = vmax.xlane.f32.xlu0 %v2654
        %v2656 = vpop.xlane.xlu0 %2655
        %v2657 = vsel %vm1131, %v2543, -inf
        %2658 = vmax.xlane.f32.xlu0 %v2657
        %v2659 = vpop.xlane.xlu0 %2658
        %v2660 = vsel %vm1131, %v2546, -inf
        %2661 = vmax.xlane.f32.xlu0 %v2660
        %v2662 = vpop.xlane.xlu0 %2661
        %v2663 = vsel %vm1131, %v2594, -inf
        %2664 = vmax.xlane.f32.xlu0 %v2663
        %v2665 = vpop.xlane.xlu0 %2664
        %v2666 = vsel %vm1131, %v2597, -inf
        %2667 = vmax.xlane.f32.xlu0 %v2666
        %v2668 = vpop.xlane.xlu0 %2667
        %v2669 = vsel %vm1131, %v2645, -inf
        %2670 = vmax.xlane.f32.xlu0 %v2669
        %v2671 = vpop.xlane.xlu0 %2670
        %v2672 = vsel %vm1131, %v2648, -inf
        %2673 = vmax.xlane.f32.xlu0 %v2672
        %v2674 = vpop.xlane.xlu0 %2673
        %v2675 = vsub.f32 %v2492, %v2653
        %v2676 = vsub.f32 %v2495, %v2656
        %v2677 = vsub.f32 %v2543, %v2659
        %v2678 = vsub.f32 %v2546, %v2662
        %v2679 = vsub.f32 %v2594, %v2665
        %v2680 = vsub.f32 %v2597, %v2668
        %v2681 = vsub.f32 %v2645, %v2671
        %v2682 = vsub.f32 %v2648, %v2674
        %v2683 = vmul.f32 %v2675, 1.442695
        %v2684 = vpow.pop %v2683
        %v2685 = vmul.f32 %v2676, 1.442695
        %v2686 = vpow.pop %v2685
        %v2687 = vmul.f32 %v2677, 1.442695
        %v2688 = vpow.pop %v2687
        %v2689 = vmul.f32 %v2678, 1.442695
        %v2690 = vpow.pop %v2689
        %v2691 = vmul.f32 %v2679, 1.442695
        %v2692 = vpow.pop %v2691
        %v2693 = vmul.f32 %v2680, 1.442695
        %v2694 = vpow.pop %v2693
        %v2695 = vmul.f32 %v2681, 1.442695
        %v2696 = vpow.pop %v2695
        %v2697 = vmul.f32 %v2682, 1.442695
        %v2698 = vpow.pop %v2697
        %v2699 = vsel %vm1131, %v2684, 0.0
        %2700 = vadd.xlane.f32.xlu0 %v2699
        %v2701 = vpop.xlane.xlu0 %2700
        %v2702 = vsel %vm1131, %v2686, 0.0
        %2703 = vadd.xlane.f32.xlu0 %v2702
        %v2704 = vpop.xlane.xlu0 %2703
        %v2705 = vsel %vm1131, %v2688, 0.0
        %2706 = vadd.xlane.f32.xlu0 %v2705
        %v2707 = vpop.xlane.xlu0 %2706
        %v2708 = vsel %vm1131, %v2690, 0.0
        %2709 = vadd.xlane.f32.xlu0 %v2708
        %v2710 = vpop.xlane.xlu0 %2709
        %v2711 = vsel %vm1131, %v2692, 0.0
        %2712 = vadd.xlane.f32.xlu0 %v2711
        %v2713 = vpop.xlane.xlu0 %2712
        %v2714 = vsel %vm1131, %v2694, 0.0
        %2715 = vadd.xlane.f32.xlu0 %v2714
        %v2716 = vpop.xlane.xlu0 %2715
        %v2717 = vsel %vm1131, %v2696, 0.0
        %2718 = vadd.xlane.f32.xlu0 %v2717
        %v2719 = vpop.xlane.xlu0 %2718
        %v2720 = vsel %vm1131, %v2698, 0.0
        %2721 = vadd.xlane.f32.xlu0 %v2720
        %v2722 = vpop.xlane.xlu0 %2721
        %v2723 = vrcp.pop %v2701
        %v2724 = vrcp.pop %v2704
        %v2725 = vrcp.pop %v2707
        %v2726 = vrcp.pop %v2710
        %v2727 = vrcp.pop %v2713
        %v2728 = vrcp.pop %v2716
        %v2729 = vrcp.pop %v2719
        %v2730 = vrcp.pop %v2722
        %v2731 = vmul.f32 %v2684, %v2723
        %v2732 = vmul.f32 %v2686, %v2724
        %v2733 = vmul.f32 %v2688, %v2725
        %v2734 = vmul.f32 %v2690, %v2726
        %v2735 = vmul.f32 %v2692, %v2727
        %v2736 = vmul.f32 %v2694, %v2728
        %v2737 = vmul.f32 %v2696, %v2729
        %v2738 = vmul.f32 %v2698, %v2730
        %v2739 = vpack.c.bf16 %v2732, %v2731
        %v2740 = vpack.c.bf16 %v2734, %v2733
        %v2741 = vpack.c.bf16 %v2736, %v2735
        %v2742 = vpack.c.bf16 %v2738, %v2737
        %2743 = vrot.lane.b32.xlu0 %v936, 104
        %v2744 = vpop.permute.xlu0 %2743
        %v2747 = vsel %vm1131, %v2739, 0
        %2749 = vmatprep.subr.bf16.mxu0 0
        %2750 = vmatpush1.bf16.msra.mxu0 %v2744
        %2751 = vmatprep.subr.bf16.mxu0 0
        %2752 = vmatpush1.bf16.msra.mxu0 0
        %2753 = vmatprep.subr.bf16.mxu0 0
        %2754 = vmatpush1.bf16.msra.mxu0 0
        %2755 = vmatprep.subr.bf16.mxu0 0
        %2756 = vmatpush1.bf16.msra.mxu0 0
        %2757 = vmatprep.subr.bf16.mxu0 0
        %2758 = vmatpush1.bf16.msra.mxu0 0
        %2759 = vmatprep.subr.bf16.mxu0 0
        %2760 = vmatpush1.bf16.msra.mxu0 0
        %2761 = vmatprep.subr.bf16.mxu0 0
        %2762 = vmatpush1.bf16.msra.mxu0 0
        %2763 = vmatprep.subr.bf16.mxu0 0
        %2764 = vmatpush1.bf16.msra.mxu0 0
        %2765 = vmatprep.subr.bf16.mxu0 0
        %2766 = vmatpush1.bf16.msra.mxu0 0
        %2767 = vmatprep.subr.bf16.mxu0 0
        %2768 = vmatpush1.bf16.msra.mxu0 0
        %2769 = vmatprep.subr.bf16.mxu0 0
        %2770 = vmatpush1.bf16.msra.mxu0 0
        %2771 = vmatprep.subr.bf16.mxu0 0
        %2772 = vmatpush1.bf16.msra.mxu0 0
        %2773 = vmatprep.subr.bf16.mxu0 0
        %2774 = vmatpush1.bf16.msra.mxu0 0
        %2775 = vmatprep.subr.bf16.mxu0 0
        %2776 = vmatpush1.bf16.msra.mxu0 0
        %2777 = vmatprep.subr.bf16.mxu0 0
        %2778 = vmatpush1.bf16.msra.mxu0 0
        %2779 = vmatprep.subr.bf16.mxu0 0
        %2780 = vmatpush1.bf16.msra.mxu0 0
        %2781 = vmatprep.mubr.bf16.mxu0 0
        %2782 = vmatmul.mubr.bf16.gmra.mrb[0].mxu0 %v2747
        %v2783 = vpop.f32.mrb[0].mxu0
        %v2784 = vadd.f32 0.0, %v2783
        %v2785 = vpop.f32.mrb[0].mxu0
        %v2786 = vpop.f32.mrb[0].mxu0
        %v2787 = vadd.f32 0.0, %v2786
        %v2788 = vpop.f32.mrb[0].mxu0
        %2789 = vdwg.mxu0
        %2790 = vrot.lane.b32.xlu0 %v937, 104
        %v2791 = vpop.permute.xlu0 %2790
        %v2794 = vsel %vm1131, %v2740, 0
        %2796 = vmatprep.subr.bf16.mxu0 0
        %2797 = vmatpush1.bf16.msra.mxu0 %v2791
        %2798 = vmatprep.subr.bf16.mxu0 0
        %2799 = vmatpush1.bf16.msra.mxu0 0
        %2800 = vmatprep.subr.bf16.mxu0 0
        %2801 = vmatpush1.bf16.msra.mxu0 0
        %2802 = vmatprep.subr.bf16.mxu0 0
        %2803 = vmatpush1.bf16.msra.mxu0 0
        %2804 = vmatprep.subr.bf16.mxu0 0
        %2805 = vmatpush1.bf16.msra.mxu0 0
        %2806 = vmatprep.subr.bf16.mxu0 0
        %2807 = vmatpush1.bf16.msra.mxu0 0
        %2808 = vmatprep.subr.bf16.mxu0 0
        %2809 = vmatpush1.bf16.msra.mxu0 0
        %2810 = vmatprep.subr.bf16.mxu0 0
        %2811 = vmatpush1.bf16.msra.mxu0 0
        %2812 = vmatprep.subr.bf16.mxu0 0
        %2813 = vmatpush1.bf16.msra.mxu0 0
        %2814 = vmatprep.subr.bf16.mxu0 0
        %2815 = vmatpush1.bf16.msra.mxu0 0
        %2816 = vmatprep.subr.bf16.mxu0 0
        %2817 = vmatpush1.bf16.msra.mxu0 0
        %2818 = vmatprep.subr.bf16.mxu0 0
        %2819 = vmatpush1.bf16.msra.mxu0 0
        %2820 = vmatprep.subr.bf16.mxu0 0
        %2821 = vmatpush1.bf16.msra.mxu0 0
        %2822 = vmatprep.subr.bf16.mxu0 0
        %2823 = vmatpush1.bf16.msra.mxu0 0
        %2824 = vmatprep.subr.bf16.mxu0 0
        %2825 = vmatpush1.bf16.msra.mxu0 0
        %2826 = vmatprep.subr.bf16.mxu0 0
        %2827 = vmatpush1.bf16.msra.mxu0 0
        %2828 = vmatprep.mubr.bf16.mxu0 0
        %2829 = vmatmul.mubr.bf16.gmra.mrb[0].mxu0 %v2794
        %v2830 = vpop.f32.mrb[0].mxu0
        %v2831 = vadd.f32 0.0, %v2830
        %v2832 = vpop.f32.mrb[0].mxu0
        %v2833 = vpop.f32.mrb[0].mxu0
        %v2834 = vadd.f32 0.0, %v2833
        %v2835 = vpop.f32.mrb[0].mxu0
        %2836 = vdwg.mxu0
        %2837 = vrot.lane.b32.xlu0 %v938, 104
        %v2838 = vpop.permute.xlu0 %2837
        %v2841 = vsel %vm1131, %v2741, 0
        %2843 = vmatprep.subr.bf16.mxu0 0
        %2844 = vmatpush1.bf16.msra.mxu0 %v2838
        %2845 = vmatprep.subr.bf16.mxu0 0
        %2846 = vmatpush1.bf16.msra.mxu0 0
        %2847 = vmatprep.subr.bf16.mxu0 0
        %2848 = vmatpush1.bf16.msra.mxu0 0
        %2849 = vmatprep.subr.bf16.mxu0 0
        %2850 = vmatpush1.bf16.msra.mxu0 0
        %2851 = vmatprep.subr.bf16.mxu0 0
        %2852 = vmatpush1.bf16.msra.mxu0 0
        %2853 = vmatprep.subr.bf16.mxu0 0
        %2854 = vmatpush1.bf16.msra.mxu0 0
        %2855 = vmatprep.subr.bf16.mxu0 0
        %2856 = vmatpush1.bf16.msra.mxu0 0
        %2857 = vmatprep.subr.bf16.mxu0 0
        %2858 = vmatpush1.bf16.msra.mxu0 0
        %2859 = vmatprep.subr.bf16.mxu0 0
        %2860 = vmatpush1.bf16.msra.mxu0 0
        %2861 = vmatprep.subr.bf16.mxu0 0
        %2862 = vmatpush1.bf16.msra.mxu0 0
        %2863 = vmatprep.subr.bf16.mxu0 0
        %2864 = vmatpush1.bf16.msra.mxu0 0
        %2865 = vmatprep.subr.bf16.mxu0 0
        %2866 = vmatpush1.bf16.msra.mxu0 0
        %2867 = vmatprep.subr.bf16.mxu0 0
        %2868 = vmatpush1.bf16.msra.mxu0 0
        %2869 = vmatprep.subr.bf16.mxu0 0
        %2870 = vmatpush1.bf16.msra.mxu0 0
        %2871 = vmatprep.subr.bf16.mxu0 0
        %2872 = vmatpush1.bf16.msra.mxu0 0
        %2873 = vmatprep.subr.bf16.mxu0 0
        %2874 = vmatpush1.bf16.msra.mxu0 0
        %2875 = vmatprep.mubr.bf16.mxu0 0
        %2876 = vmatmul.mubr.bf16.gmra.mrb[0].mxu0 %v2841
        %v2877 = vpop.f32.mrb[0].mxu0
        %v2878 = vadd.f32 0.0, %v2877
        %v2879 = vpop.f32.mrb[0].mxu0
        %v2880 = vpop.f32.mrb[0].mxu0
        %v2881 = vadd.f32 0.0, %v2880
        %v2882 = vpop.f32.mrb[0].mxu0
        %2883 = vdwg.mxu0
        %2884 = vrot.lane.b32.xlu0 %v939, 104
        %v2885 = vpop.permute.xlu0 %2884
        %v2888 = vsel %vm1131, %v2742, 0
        %2890 = vmatprep.subr.bf16.mxu0 0
        %2891 = vmatpush1.bf16.msra.mxu0 %v2885
        %2892 = vmatprep.subr.bf16.mxu0 0
        %2893 = vmatpush1.bf16.msra.mxu0 0
        %2894 = vmatprep.subr.bf16.mxu0 0
        %2895 = vmatpush1.bf16.msra.mxu0 0
        %2896 = vmatprep.subr.bf16.mxu0 0
        %2897 = vmatpush1.bf16.msra.mxu0 0
        %2898 = vmatprep.subr.bf16.mxu0 0
        %2899 = vmatpush1.bf16.msra.mxu0 0
        %2900 = vmatprep.subr.bf16.mxu0 0
        %2901 = vmatpush1.bf16.msra.mxu0 0
        %2902 = vmatprep.subr.bf16.mxu0 0
        %2903 = vmatpush1.bf16.msra.mxu0 0
        %2904 = vmatprep.subr.bf16.mxu0 0
        %2905 = vmatpush1.bf16.msra.mxu0 0
        %2906 = vmatprep.subr.bf16.mxu0 0
        %2907 = vmatpush1.bf16.msra.mxu0 0
        %2908 = vmatprep.subr.bf16.mxu0 0
        %2909 = vmatpush1.bf16.msra.mxu0 0
        %2910 = vmatprep.subr.bf16.mxu0 0
        %2911 = vmatpush1.bf16.msra.mxu0 0
        %2912 = vmatprep.subr.bf16.mxu0 0
        %2913 = vmatpush1.bf16.msra.mxu0 0
        %2914 = vmatprep.subr.bf16.mxu0 0
        %2915 = vmatpush1.bf16.msra.mxu0 0
        %2916 = vmatprep.subr.bf16.mxu0 0
        %2917 = vmatpush1.bf16.msra.mxu0 0
        %2918 = vmatprep.subr.bf16.mxu0 0
        %2919 = vmatpush1.bf16.msra.mxu0 0
        %2920 = vmatprep.subr.bf16.mxu0 0
        %2921 = vmatpush1.bf16.msra.mxu0 0
        %2922 = vmatprep.mubr.bf16.mxu0 0
        %2923 = vmatmul.mubr.bf16.gmra.mrb[0].mxu0 %v2888
        %v2924 = vpop.f32.mrb[0].mxu0
        %v2925 = vadd.f32 0.0, %v2924
        %v2926 = vpop.f32.mrb[0].mxu0
        %v2927 = vpop.f32.mrb[0].mxu0
        %v2928 = vadd.f32 0.0, %v2927
        %v2929 = vpop.f32.mrb[0].mxu0
        %2930 = vdwg.mxu0
        %v2931 = vpack.c.bf16 %v2787, %v2784
        %v2932 = vpack.c.bf16 %v2834, %v2831
        %v2933 = vpack.c.bf16 %v2881, %v2878
        %v2934 = vpack.c.bf16 %v2928, %v2925
        %2939 = vrot.lane.b32.xlu0 %v2931, 24
        %v2940 = vpop.permute.xlu0 %2939
        %2941 = vrot.lane.b32.xlu0 %v2932, 24
        %v2942 = vpop.permute.xlu0 %2941
        %2943 = vrot.lane.b32.xlu0 %v2933, 24
        %v2944 = vpop.permute.xlu0 %2943
        %2945 = vrot.lane.b32.xlu0 %v2934, 24
        %v2946 = vpop.permute.xlu0 %2945
        %vm2951 = vcmask 261312
        %2952 = vst.msk [vmem:[#allocation2] sm:$0xff] %vm2951, %v2940
        %2953 = vst.msk [vmem:[#allocation2 + $0x8] sm:$0xff] %vm2951, %v2942
        %2954 = vst.msk [vmem:[#allocation2 + $0x10] sm:$0xff] %vm2951, %v2944
        %2955 = vst.msk [vmem:[#allocation2 + $0x18] sm:$0xff] %vm2951, %v2946
        %v2956 = vld [vmem:[#allocation2] sm:$0xff]
        %v2957 = vld [vmem:[#allocation2 + $0x8] sm:$0xff]
        %v2958 = vld [vmem:[#allocation2 + $0x10] sm:$0xff]
        %v2959 = vld [vmem:[#allocation2 + $0x18] sm:$0xff]
        %v2960 = vld [vmem:[#allocation11] sm:$0xf]
        %v2961 = vld [vmem:[#allocation11 + $0x4] sm:$0xf]
        %v2962 = vld [vmem:[#allocation11 + $0x8] sm:$0xf]
        %v2963 = vld [vmem:[#allocation11 + $0xc] sm:$0xf]
        %v2964 = vlaneseq
        %v2965 = vshrl.u32 %v2964, 7
        %v2966 = vsub.s32 0, %v2965
        %v2967 = vrot.slane %v472, %v2966
        %v2972 = vunpack.c.l.b16 %v2960
        %v2973 = vunpack.c.l.b16 %v2961
        %v2974 = vunpack.c.l.b16 %v2962
        %v2975 = vunpack.c.l.b16 %v2963
        %v2976 = vpack.c.b16 %v2973, %v2972
        %v2977 = vpack.c.b16 %v2975, %v2974
        %v2981 = vsel %vm527, %v2956, 0
        %v2984 = vsel %vm527, %v2957, 0
        %v2987 = vsel %vm527, %v2958, 0
        %v2990 = vsel %vm527, %v2959, 0
        %2992 = vmatprep.subr.bf16.mxu0 0
        %2993 = vmatpush1.bf16.msra.mxu0 %v2976
        %2994 = vmatprep.subr.bf16.mxu0 0
        %2995 = vmatpush1.bf16.msra.mxu0 %v2977
        %2996 = vmatprep.subr.bf16.mxu0 0
        %2997 = vmatpush1.bf16.msra.mxu0 0
        %2998 = vmatprep.subr.bf16.mxu0 0
        %2999 = vmatpush1.bf16.msra.mxu0 0
        %3000 = vmatprep.subr.bf16.mxu0 0
        %3001 = vmatpush1.bf16.msra.mxu0 0
        %3002 = vmatprep.subr.bf16.mxu0 0
        %3003 = vmatpush1.bf16.msra.mxu0 0
        %3004 = vmatprep.subr.bf16.mxu0 0
        %3005 = vmatpush1.bf16.msra.mxu0 0
        %3006 = vmatprep.subr.bf16.mxu0 0
        %3007 = vmatpush1.bf16.msra.mxu0 0
        %3008 = vmatprep.subr.bf16.mxu0 0
        %3009 = vmatpush1.bf16.msra.mxu0 0
        %3010 = vmatprep.subr.bf16.mxu0 0
        %3011 = vmatpush1.bf16.msra.mxu0 0
        %3012 = vmatprep.subr.bf16.mxu0 0
        %3013 = vmatpush1.bf16.msra.mxu0 0
        %3014 = vmatprep.subr.bf16.mxu0 0
        %3015 = vmatpush1.bf16.msra.mxu0 0
        %3016 = vmatprep.subr.bf16.mxu0 0
        %3017 = vmatpush1.bf16.msra.mxu0 0
        %3018 = vmatprep.subr.bf16.mxu0 0
        %3019 = vmatpush1.bf16.msra.mxu0 0
        %3020 = vmatprep.subr.bf16.mxu0 0
        %3021 = vmatpush1.bf16.msra.mxu0 0
        %3022 = vmatprep.subr.bf16.mxu0 0
        %3023 = vmatpush1.bf16.msra.mxu0 0
        %3024 = vmatprep.mubr.bf16.mxu0 0
        %3025 = vmatmul.mubr.bf16.gmra.mrb[0].mxu0 %v2981
        %v3026 = vpop.f32.mrb[0].mxu0
        %v3027 = vadd.f32 %v2967, %v3026
        %v3028 = vpop.f32.mrb[0].mxu0
        %v3029 = vpop.f32.mrb[0].mxu0
        %v3030 = vadd.f32 %v2967, %v3029
        %v3031 = vpop.f32.mrb[0].mxu0
        %3032 = vmatprep.mubr.bf16.mxu0 0
        %3033 = vmatmul.mubr.bf16.gmra.mrb[0].mxu0 %v2984
        %v3034 = vpop.f32.mrb[0].mxu0
        %v3035 = vadd.f32 %v2967, %v3034
        %v3036 = vpop.f32.mrb[0].mxu0
        %v3037 = vpop.f32.mrb[0].mxu0
        %v3038 = vadd.f32 %v2967, %v3037
        %v3039 = vpop.f32.mrb[0].mxu0
        %3040 = vmatprep.mubr.bf16.mxu0 0
        %3041 = vmatmul.mubr.bf16.gmra.mrb[0].mxu0 %v2987
        %v3042 = vpop.f32.mrb[0].mxu0
        %v3043 = vadd.f32 %v2967, %v3042
        %v3044 = vpop.f32.mrb[0].mxu0
        %v3045 = vpop.f32.mrb[0].mxu0
        %v3046 = vadd.f32 %v2967, %v3045
        %v3047 = vpop.f32.mrb[0].mxu0
        %3048 = vmatprep.mubr.bf16.mxu0 0
        %3049 = vmatmul.mubr.bf16.gmra.mrb[0].mxu0 %v2990
        %v3050 = vpop.f32.mrb[0].mxu0
        %v3051 = vadd.f32 %v2967, %v3050
        %v3052 = vpop.f32.mrb[0].mxu0
        %v3053 = vpop.f32.mrb[0].mxu0
        %v3054 = vadd.f32 %v2967, %v3053
        %v3055 = vpop.f32.mrb[0].mxu0
        %3056 = vdwg.mxu0
        %v3057 = vadd.f32 %v503, %v3027
        %v3058 = vadd.f32 %v504, %v3030
        %v3059 = vadd.f32 %v505, %v3035
        %v3060 = vadd.f32 %v506, %v3038
        %v3061 = vadd.f32 %v519, %v3043
        %v3062 = vadd.f32 %v520, %v3046
        %v3063 = vadd.f32 %v521, %v3051
        %v3064 = vadd.f32 %v522, %v3054
        %v3065 = vsel %vm527, %v3057, 0.0
        %3066 = vadd.xlane.f32.xlu0 %v3065
        %v3067 = vpop.xlane.xlu0 %3066
        %v3068 = vsel %vm527, %v3058, 0.0
        %3069 = vadd.xlane.f32.xlu0 %v3068
        %v3070 = vpop.xlane.xlu0 %3069
        %v3071 = vsel %vm527, %v3059, 0.0
        %3072 = vadd.xlane.f32.xlu0 %v3071
        %v3073 = vpop.xlane.xlu0 %3072
        %v3074 = vsel %vm527, %v3060, 0.0
        %3075 = vadd.xlane.f32.xlu0 %v3074
        %v3076 = vpop.xlane.xlu0 %3075
        %v3077 = vsel %vm527, %v3061, 0.0
        %3078 = vadd.xlane.f32.xlu0 %v3077
        %v3079 = vpop.xlane.xlu0 %3078
        %v3080 = vsel %vm527, %v3062, 0.0
        %3081 = vadd.xlane.f32.xlu0 %v3080
        %v3082 = vpop.xlane.xlu0 %3081
        %v3083 = vsel %vm527, %v3063, 0.0
        %3084 = vadd.xlane.f32.xlu0 %v3083
        %v3085 = vpop.xlane.xlu0 %3084
        %v3086 = vsel %vm527, %v3064, 0.0
        %3087 = vadd.xlane.f32.xlu0 %v3086
        %v3088 = vpop.xlane.xlu0 %3087
        %v3089 = vmul.f32 %v3067, %v552
        %v3090 = vmul.f32 %v3070, %v552
        %v3091 = vmul.f32 %v3073, %v552
        %v3092 = vmul.f32 %v3076, %v552
        %v3093 = vmul.f32 %v3079, %v552
        %v3094 = vmul.f32 %v3082, %v552
        %v3095 = vmul.f32 %v3085, %v552
        %v3096 = vmul.f32 %v3088, %v552
        %v3097 = vsub.f32 %v3057, %v3089
        %v3098 = vsub.f32 %v3058, %v3090
        %v3099 = vsub.f32 %v3059, %v3091
        %v3100 = vsub.f32 %v3060, %v3092
        %v3101 = vsub.f32 %v3061, %v3093
        %v3102 = vsub.f32 %v3062, %v3094
        %v3103 = vsub.f32 %v3063, %v3095
        %v3104 = vsub.f32 %v3064, %v3096
        %v3105 = vmul.f32 %v3097, %v3097
        %v3106 = vmul.f32 %v3098, %v3098
        %v3107 = vmul.f32 %v3099, %v3099
        %v3108 = vmul.f32 %v3100, %v3100
        %v3109 = vmul.f32 %v3101, %v3101
        %v3110 = vmul.f32 %v3102, %v3102
        %v3111 = vmul.f32 %v3103, %v3103
        %v3112 = vmul.f32 %v3104, %v3104
        %v3113 = vsel %vm527, %v3105, 0.0
        %3114 = vadd.xlane.f32.xlu0 %v3113
        %v3115 = vpop.xlane.xlu0 %3114
        %v3116 = vsel %vm527, %v3106, 0.0
        %3117 = vadd.xlane.f32.xlu0 %v3116
        %v3118 = vpop.xlane.xlu0 %3117
        %v3119 = vsel %vm527, %v3107, 0.0
        %3120 = vadd.xlane.f32.xlu0 %v3119
        %v3121 = vpop.xlane.xlu0 %3120
        %v3122 = vsel %vm527, %v3108, 0.0
        %3123 = vadd.xlane.f32.xlu0 %v3122
        %v3124 = vpop.xlane.xlu0 %3123
        %v3125 = vsel %vm527, %v3109, 0.0
        %3126 = vadd.xlane.f32.xlu0 %v3125
        %v3127 = vpop.xlane.xlu0 %3126
        %v3128 = vsel %vm527, %v3110, 0.0
        %3129 = vadd.xlane.f32.xlu0 %v3128
        %v3130 = vpop.xlane.xlu0 %3129
        %v3131 = vsel %vm527, %v3111, 0.0
        %3132 = vadd.xlane.f32.xlu0 %v3131
        %v3133 = vpop.xlane.xlu0 %3132
        %v3134 = vsel %vm527, %v3112, 0.0
        %3135 = vadd.xlane.f32.xlu0 %v3134
        %v3136 = vpop.xlane.xlu0 %3135
        %v3137 = vmul.f32 %v3115, %v552
        %v3138 = vmul.f32 %v3118, %v552
        %v3139 = vmul.f32 %v3121, %v552
        %v3140 = vmul.f32 %v3124, %v552
        %v3141 = vmul.f32 %v3127, %v552
        %v3142 = vmul.f32 %v3130, %v552
        %v3143 = vmul.f32 %v3133, %v552
        %v3144 = vmul.f32 %v3136, %v552
        %v3145 = vadd.f32 %v3137, 1e-05
        %v3146 = vadd.f32 %v3138, 1e-05
        %v3147 = vadd.f32 %v3139, 1e-05
        %v3148 = vadd.f32 %v3140, 1e-05
        %v3149 = vadd.f32 %v3141, 1e-05
        %v3150 = vadd.f32 %v3142, 1e-05
        %v3151 = vadd.f32 %v3143, 1e-05
        %v3152 = vadd.f32 %v3144, 1e-05
        %v3153 = vrsqrt.pop %v3145
        %v3154 = vrsqrt.pop %v3146
        %v3155 = vrsqrt.pop %v3147
        %v3156 = vrsqrt.pop %v3148
        %v3157 = vrsqrt.pop %v3149
        %v3158 = vrsqrt.pop %v3150
        %v3159 = vrsqrt.pop %v3151
        %v3160 = vrsqrt.pop %v3152
        %v3161 = vmul.f32 %v3097, %v3153
        %v3162 = vmul.f32 %v3098, %v3154
        %v3163 = vmul.f32 %v3099, %v3155
        %v3164 = vmul.f32 %v3100, %v3156
        %v3165 = vmul.f32 %v3101, %v3157
        %v3166 = vmul.f32 %v3102, %v3158
        %v3167 = vmul.f32 %v3103, %v3159
        %v3168 = vmul.f32 %v3104, %v3160
        %v3169 = vlaneseq
        %v3170 = vshrl.u32 %v3169, 7
        %v3171 = vsub.s32 0, %v3170
        %v3172 = vrot.slane %v476, %v3171
        %v3173 = vmul.f32 %v3161, %v3172
        %v3174 = vmul.f32 %v3162, %v3172
        %v3175 = vmul.f32 %v3163, %v3172
        %v3176 = vmul.f32 %v3164, %v3172
        %v3177 = vmul.f32 %v3165, %v3172
        %v3178 = vmul.f32 %v3166, %v3172
        %v3179 = vmul.f32 %v3167, %v3172
        %v3180 = vmul.f32 %v3168, %v3172
        %v3181 = vlaneseq
        %v3182 = vshrl.u32 %v3181, 7
        %v3183 = vsub.s32 0, %v3182
        %v3184 = vrot.slane %v477, %v3183
        %v3185 = vadd.f32 %v3173, %v3184
        %v3186 = vadd.f32 %v3174, %v3184
        %v3187 = vadd.f32 %v3175, %v3184
        %v3188 = vadd.f32 %v3176, %v3184
        %v3189 = vadd.f32 %v3177, %v3184
        %v3190 = vadd.f32 %v3178, %v3184
        %v3191 = vadd.f32 %v3179, %v3184
        %v3192 = vadd.f32 %v3180, %v3184
        %v3193 = vpack.c.bf16 %v3186, %v3185
        %v3194 = vpack.c.bf16 %v3188, %v3187
        %v3195 = vpack.c.bf16 %v3190, %v3189
        %v3196 = vpack.c.bf16 %v3192, %v3191
        %v3197 = vld [vmem:[#allocation12] sm:$0xf]
        %v3198 = vld [vmem:[#allocation12 + $0x4] sm:$0xf]
        %v3199 = vld [vmem:[#allocation12 + $0x8] sm:$0xf]
        %v3200 = vld [vmem:[#allocation12 + $0xc] sm:$0xf]
        %v3201 = vld [vmem:[%s9] sm:$0x1]
        %v3203 = vlaneseq
        %v3204 = vshrl.u32 %v3203, 7
        %v3205 = vsub.s32 0, %v3204
        %v3206 = vrot.slane %v3201, %v3205
        %v3212 = vunpack.c.l.b16 %v3197
        %v3213 = vunpack.c.l.b16 %v3198
        %v3214 = vunpack.c.l.b16 %v3199
        %v3215 = vunpack.c.l.b16 %v3200
        %v3216 = vpack.c.b16 %v3213, %v3212
        %v3217 = vpack.c.b16 %v3215, %v3214
        %v3221 = vsel %vm527, %v3193, 0
        %v3224 = vsel %vm527, %v3194, 0
        %v3227 = vsel %vm527, %v3195, 0
        %v3230 = vsel %vm527, %v3196, 0
        %3232 = vmatprep.subr.bf16.mxu0 0
        %3233 = vmatpush1.bf16.msra.mxu0 %v3216
        %3234 = vmatprep.subr.bf16.mxu0 0
        %3235 = vmatpush1.bf16.msra.mxu0 %v3217
        %3236 = vmatprep.subr.bf16.mxu0 0
        %3237 = vmatpush1.bf16.msra.mxu0 0
        %3238 = vmatprep.subr.bf16.mxu0 0
        %3239 = vmatpush1.bf16.msra.mxu0 0
        %3240 = vmatprep.subr.bf16.mxu0 0
        %3241 = vmatpush1.bf16.msra.mxu0 0
        %3242 = vmatprep.subr.bf16.mxu0 0
        %3243 = vmatpush1.bf16.msra.mxu0 0
        %3244 = vmatprep.subr.bf16.mxu0 0
        %3245 = vmatpush1.bf16.msra.mxu0 0
        %3246 = vmatprep.subr.bf16.mxu0 0
        %3247 = vmatpush1.bf16.msra.mxu0 0
        %3248 = vmatprep.subr.bf16.mxu0 0
        %3249 = vmatpush1.bf16.msra.mxu0 0
        %3250 = vmatprep.subr.bf16.mxu0 0
        %3251 = vmatpush1.bf16.msra.mxu0 0
        %3252 = vmatprep.subr.bf16.mxu0 0
        %3253 = vmatpush1.bf16.msra.mxu0 0
        %3254 = vmatprep.subr.bf16.mxu0 0
        %3255 = vmatpush1.bf16.msra.mxu0 0
        %3256 = vmatprep.subr.bf16.mxu0 0
        %3257 = vmatpush1.bf16.msra.mxu0 0
        %3258 = vmatprep.subr.bf16.mxu0 0
        %3259 = vmatpush1.bf16.msra.mxu0 0
        %3260 = vmatprep.subr.bf16.mxu0 0
        %3261 = vmatpush1.bf16.msra.mxu0 0
        %3262 = vmatprep.subr.bf16.mxu0 0
        %3263 = vmatpush1.bf16.msra.mxu0 0
        %3264 = vmatprep.mubr.bf16.mxu0 0
        %3265 = vmatmul.mubr.bf16.gmra.mrb[0].mxu0 %v3221
        %v3266 = vpop.f32.mrb[0].mxu0
        %v3267 = vadd.f32 %v3206, %v3266
        %v3268 = vpop.f32.mrb[0].mxu0
        %v3269 = vpop.f32.mrb[0].mxu0
        %v3270 = vadd.f32 %v3206, %v3269
        %v3271 = vpop.f32.mrb[0].mxu0
        %3272 = vmatprep.mubr.bf16.mxu0 0
        %3273 = vmatmul.mubr.bf16.gmra.mrb[0].mxu0 %v3224
        %v3274 = vpop.f32.mrb[0].mxu0
        %v3275 = vadd.f32 %v3206, %v3274
        %v3276 = vpop.f32.mrb[0].mxu0
        %v3277 = vpop.f32.mrb[0].mxu0
        %v3278 = vadd.f32 %v3206, %v3277
        %v3279 = vpop.f32.mrb[0].mxu0
        %3280 = vmatprep.mubr.bf16.mxu0 0
        %3281 = vmatmul.mubr.bf16.gmra.mrb[0].mxu0 %v3227
        %v3282 = vpop.f32.mrb[0].mxu0
        %v3283 = vadd.f32 %v3206, %v3282
        %v3284 = vpop.f32.mrb[0].mxu0
        %v3285 = vpop.f32.mrb[0].mxu0
        %v3286 = vadd.f32 %v3206, %v3285
        %v3287 = vpop.f32.mrb[0].mxu0
        %3288 = vmatprep.mubr.bf16.mxu0 0
        %3289 = vmatmul.mubr.bf16.gmra.mrb[0].mxu0 %v3230
        %v3290 = vpop.f32.mrb[0].mxu0
        %v3291 = vadd.f32 %v3206, %v3290
        %v3292 = vpop.f32.mrb[0].mxu0
        %v3293 = vpop.f32.mrb[0].mxu0
        %v3294 = vadd.f32 %v3206, %v3293
        %v3295 = vpop.f32.mrb[0].mxu0
        %3296 = vdwg.mxu0
        %v3297 = vmul.f32 %v3267, 0.70710677
        %v3298 = vmul.f32 %v3270, 0.70710677
        %v3299 = vmul.f32 %v3275, 0.70710677
        %v3300 = vmul.f32 %v3278, 0.70710677
        %v3301 = vmul.f32 %v3283, 0.70710677
        %v3302 = vmul.f32 %v3286, 0.70710677
        %v3303 = vmul.f32 %v3291, 0.70710677
        %v3304 = vmul.f32 %v3294, 0.70710677
        %v3305 = vand.u32 2147483647, %v3297
        %v3306 = vand.u32 2147483647, %v3298
        %v3307 = vand.u32 2147483647, %v3299
        %v3308 = vand.u32 2147483647, %v3300
        %v3309 = vand.u32 2147483647, %v3301
        %v3310 = vand.u32 2147483647, %v3302
        %v3311 = vand.u32 2147483647, %v3303
        %v3312 = vand.u32 2147483647, %v3304
        %v3313 = vmul.f32 %v3305, 0.3275911
        %v3314 = vmul.f32 %v3306, 0.3275911
        %v3315 = vmul.f32 %v3307, 0.3275911
        %v3316 = vmul.f32 %v3308, 0.3275911
        %v3317 = vmul.f32 %v3309, 0.3275911
        %v3318 = vmul.f32 %v3310, 0.3275911
        %v3319 = vmul.f32 %v3311, 0.3275911
        %v3320 = vmul.f32 %v3312, 0.3275911
        %v3321 = vadd.f32 %v3313, 1.0
        %v3322 = vadd.f32 %v3314, 1.0
        %v3323 = vadd.f32 %v3315, 1.0
        %v3324 = vadd.f32 %v3316, 1.0
        %v3325 = vadd.f32 %v3317, 1.0
        %v3326 = vadd.f32 %v3318, 1.0
        %v3327 = vadd.f32 %v3319, 1.0
        %v3328 = vadd.f32 %v3320, 1.0
        %v3329 = vrcp.pop %v3321
        %v3330 = vmul.f32 1.0, %v3329
        %v3331 = vrcp.pop %v3322
        %v3332 = vmul.f32 1.0, %v3331
        %v3333 = vrcp.pop %v3323
        %v3334 = vmul.f32 1.0, %v3333
        %v3335 = vrcp.pop %v3324
        %v3336 = vmul.f32 1.0, %v3335
        %v3337 = vrcp.pop %v3325
        %v3338 = vmul.f32 1.0, %v3337
        %v3339 = vrcp.pop %v3326
        %v3340 = vmul.f32 1.0, %v3339
        %v3341 = vrcp.pop %v3327
        %v3342 = vmul.f32 1.0, %v3341
        %v3343 = vrcp.pop %v3328
        %v3344 = vmul.f32 1.0, %v3343
        %v3345 = vmul.f32 %v3330, 1.0614054
        %v3346 = vmul.f32 %v3332, 1.0614054
        %v3347 = vmul.f32 %v3334, 1.0614054
        %v3348 = vmul.f32 %v3336, 1.0614054
        %v3349 = vmul.f32 %v3338, 1.0614054
        %v3350 = vmul.f32 %v3340, 1.0614054
        %v3351 = vmul.f32 %v3342, 1.0614054
        %v3352 = vmul.f32 %v3344, 1.0614054
        %v3353 = vadd.f32 %v3345, -1.4531521
        %v3354 = vadd.f32 %v3346, -1.4531521
        %v3355 = vadd.f32 %v3347, -1.4531521
        %v3356 = vadd.f32 %v3348, -1.4531521
        %v3357 = vadd.f32 %v3349, -1.4531521
        %v3358 = vadd.f32 %v3350, -1.4531521
        %v3359 = vadd.f32 %v3351, -1.4531521
        %v3360 = vadd.f32 %v3352, -1.4531521
        %v3361 = vmul.f32 %v3330, %v3353
        %v3362 = vmul.f32 %v3332, %v3354
        %v3363 = vmul.f32 %v3334, %v3355
        %v3364 = vmul.f32 %v3336, %v3356
        %v3365 = vmul.f32 %v3338, %v3357
        %v3366 = vmul.f32 %v3340, %v3358
        %v3367 = vmul.f32 %v3342, %v3359
        %v3368 = vmul.f32 %v3344, %v3360
        %v3369 = vadd.f32 %v3361, 1.4214138
        %v3370 = vadd.f32 %v3362, 1.4214138
        %v3371 = vadd.f32 %v3363, 1.4214138
        %v3372 = vadd.f32 %v3364, 1.4214138
        %v3373 = vadd.f32 %v3365, 1.4214138
        %v3374 = vadd.f32 %v3366, 1.4214138
        %v3375 = vadd.f32 %v3367, 1.4214138
        %v3376 = vadd.f32 %v3368, 1.4214138
        %v3377 = vmul.f32 %v3330, %v3369
        %v3378 = vmul.f32 %v3332, %v3370
        %v3379 = vmul.f32 %v3334, %v3371
        %v3380 = vmul.f32 %v3336, %v3372
        %v3381 = vmul.f32 %v3338, %v3373
        %v3382 = vmul.f32 %v3340, %v3374
        %v3383 = vmul.f32 %v3342, %v3375
        %v3384 = vmul.f32 %v3344, %v3376
        %v3385 = vadd.f32 %v3377, -0.28449672
        %v3386 = vadd.f32 %v3378, -0.28449672
        %v3387 = vadd.f32 %v3379, -0.28449672
        %v3388 = vadd.f32 %v3380, -0.28449672
        %v3389 = vadd.f32 %v3381, -0.28449672
        %v3390 = vadd.f32 %v3382, -0.28449672
        %v3391 = vadd.f32 %v3383, -0.28449672
        %v3392 = vadd.f32 %v3384, -0.28449672
        %v3393 = vmul.f32 %v3330, %v3385
        %v3394 = vmul.f32 %v3332, %v3386
        %v3395 = vmul.f32 %v3334, %v3387
        %v3396 = vmul.f32 %v3336, %v3388
        %v3397 = vmul.f32 %v3338, %v3389
        %v3398 = vmul.f32 %v3340, %v3390
        %v3399 = vmul.f32 %v3342, %v3391
        %v3400 = vmul.f32 %v3344, %v3392
        %v3401 = vadd.f32 %v3393, 0.2548296
        %v3402 = vadd.f32 %v3394, 0.2548296
        %v3403 = vadd.f32 %v3395, 0.2548296
        %v3404 = vadd.f32 %v3396, 0.2548296
        %v3405 = vadd.f32 %v3397, 0.2548296
        %v3406 = vadd.f32 %v3398, 0.2548296
        %v3407 = vadd.f32 %v3399, 0.2548296
        %v3408 = vadd.f32 %v3400, 0.2548296
        %v3409 = vmul.f32 %v3330, %v3401
        %v3410 = vmul.f32 %v3332, %v3402
        %v3411 = vmul.f32 %v3334, %v3403
        %v3412 = vmul.f32 %v3336, %v3404
        %v3413 = vmul.f32 %v3338, %v3405
        %v3414 = vmul.f32 %v3340, %v3406
        %v3415 = vmul.f32 %v3342, %v3407
        %v3416 = vmul.f32 %v3344, %v3408
        %v3417 = vsub.f32 0.0, %v3305
        %v3418 = vsub.f32 0.0, %v3306
        %v3419 = vsub.f32 0.0, %v3307
        %v3420 = vsub.f32 0.0, %v3308
        %v3421 = vsub.f32 0.0, %v3309
        %v3422 = vsub.f32 0.0, %v3310
        %v3423 = vsub.f32 0.0, %v3311
        %v3424 = vsub.f32 0.0, %v3312
        %v3425 = vmul.f32 %v3417, %v3305
        %v3426 = vmul.f32 %v3418, %v3306
        %v3427 = vmul.f32 %v3419, %v3307
        %v3428 = vmul.f32 %v3420, %v3308
        %v3429 = vmul.f32 %v3421, %v3309
        %v3430 = vmul.f32 %v3422, %v3310
        %v3431 = vmul.f32 %v3423, %v3311
        %v3432 = vmul.f32 %v3424, %v3312
        %v3433 = vmul.f32 %v3425, 1.442695
        %v3434 = vpow.pop %v3433
        %v3435 = vmul.f32 %v3426, 1.442695
        %v3436 = vpow.pop %v3435
        %v3437 = vmul.f32 %v3427, 1.442695
        %v3438 = vpow.pop %v3437
        %v3439 = vmul.f32 %v3428, 1.442695
        %v3440 = vpow.pop %v3439
        %v3441 = vmul.f32 %v3429, 1.442695
        %v3442 = vpow.pop %v3441
        %v3443 = vmul.f32 %v3430, 1.442695
        %v3444 = vpow.pop %v3443
        %v3445 = vmul.f32 %v3431, 1.442695
        %v3446 = vpow.pop %v3445
        %v3447 = vmul.f32 %v3432, 1.442695
        %v3448 = vpow.pop %v3447
        %v3449 = vmul.f32 %v3409, %v3434
        %v3450 = vmul.f32 %v3410, %v3436
        %v3451 = vmul.f32 %v3411, %v3438
        %v3452 = vmul.f32 %v3412, %v3440
        %v3453 = vmul.f32 %v3413, %v3442
        %v3454 = vmul.f32 %v3414, %v3444
        %v3455 = vmul.f32 %v3415, %v3446
        %v3456 = vmul.f32 %v3416, %v3448
        %v3457 = vsub.f32 1.0, %v3449
        %v3458 = vsub.f32 1.0, %v3450
        %v3459 = vsub.f32 1.0, %v3451
        %v3460 = vsub.f32 1.0, %v3452
        %v3461 = vsub.f32 1.0, %v3453
        %v3462 = vsub.f32 1.0, %v3454
        %v3463 = vsub.f32 1.0, %v3455
        %v3464 = vsub.f32 1.0, %v3456
        %vm3465 = vcmp.lt.f32.partialorder %v3297, 0.0
        %vm3466 = vcmp.lt.f32.partialorder %v3298, 0.0
        %vm3467 = vcmp.lt.f32.partialorder %v3299, 0.0
        %vm3468 = vcmp.lt.f32.partialorder %v3300, 0.0
        %vm3469 = vcmp.lt.f32.partialorder %v3301, 0.0
        %vm3470 = vcmp.lt.f32.partialorder %v3302, 0.0
        %vm3471 = vcmp.lt.f32.partialorder %v3303, 0.0
        %vm3472 = vcmp.lt.f32.partialorder %v3304, 0.0
        %v3473 = vsub.f32 0.0, %v3457
        %v3474 = vsub.f32 0.0, %v3458
        %v3475 = vsub.f32 0.0, %v3459
        %v3476 = vsub.f32 0.0, %v3460
        %v3477 = vsub.f32 0.0, %v3461
        %v3478 = vsub.f32 0.0, %v3462
        %v3479 = vsub.f32 0.0, %v3463
        %v3480 = vsub.f32 0.0, %v3464
        %v3481 = vsel %vm3465, %v3473, %v3457
        %v3482 = vsel %vm3466, %v3474, %v3458
        %v3483 = vsel %vm3467, %v3475, %v3459
        %v3484 = vsel %vm3468, %v3476, %v3460
        %v3485 = vsel %vm3469, %v3477, %v3461
        %v3486 = vsel %vm3470, %v3478, %v3462
        %v3487 = vsel %vm3471, %v3479, %v3463
        %v3488 = vsel %vm3472, %v3480, %v3464
        %v3489 = vmul.f32 %v3267, 0.5
        %v3490 = vmul.f32 %v3270, 0.5
        %v3491 = vmul.f32 %v3275, 0.5
        %v3492 = vmul.f32 %v3278, 0.5
        %v3493 = vmul.f32 %v3283, 0.5
        %v3494 = vmul.f32 %v3286, 0.5
        %v3495 = vmul.f32 %v3291, 0.5
        %v3496 = vmul.f32 %v3294, 0.5
        %v3497 = vadd.f32 %v3481, 1.0
        %v3498 = vadd.f32 %v3482, 1.0
        %v3499 = vadd.f32 %v3483, 1.0
        %v3500 = vadd.f32 %v3484, 1.0
        %v3501 = vadd.f32 %v3485, 1.0
        %v3502 = vadd.f32 %v3486, 1.0
        %v3503 = vadd.f32 %v3487, 1.0
        %v3504 = vadd.f32 %v3488, 1.0
        %v3505 = vmul.f32 %v3489, %v3497
        %v3506 = vmul.f32 %v3490, %v3498
        %v3507 = vmul.f32 %v3491, %v3499
        %v3508 = vmul.f32 %v3492, %v3500
        %v3509 = vmul.f32 %v3493, %v3501
        %v3510 = vmul.f32 %v3494, %v3502
        %v3511 = vmul.f32 %v3495, %v3503
        %v3512 = vmul.f32 %v3496, %v3504
        %v3513 = vpack.c.bf16 %v3506, %v3505
        %v3514 = vpack.c.bf16 %v3508, %v3507
        %v3515 = vpack.c.bf16 %v3510, %v3509
        %v3516 = vpack.c.bf16 %v3512, %v3511
        %v3517 = vld [vmem:[%s6] sm:$0xf]
        %v3518 = vld [vmem:[%s6 + $0x4] sm:$0xf]
        %v3519 = vld [vmem:[%s6 + $0x8] sm:$0xf]
        %v3520 = vld [vmem:[%s6 + $0xc] sm:$0xf]
        %v3521 = vld [vmem:[%s6 + $0x10] sm:$0xf]
        %v3522 = vld [vmem:[%s6 + $0x14] sm:$0xf]
        %v3523 = vld [vmem:[%s6 + $0x18] sm:$0xf]
        %v3524 = vld [vmem:[%s6 + $0x1c] sm:$0xf]
        %v3533 = vunpack.c.l.b16 %v3517
        %v3534 = vunpack.c.l.b16 %v3518
        %v3535 = vunpack.c.l.b16 %v3519
        %v3536 = vunpack.c.l.b16 %v3520
        %v3537 = vunpack.c.l.b16 %v3521
        %v3538 = vunpack.c.l.b16 %v3522
        %v3539 = vunpack.c.l.b16 %v3523
        %v3540 = vunpack.c.l.b16 %v3524
        %v3541 = vpack.c.b16 %v3534, %v3533
        %v3542 = vpack.c.b16 %v3536, %v3535
        %v3543 = vpack.c.b16 %v3538, %v3537
        %v3544 = vpack.c.b16 %v3540, %v3539
        %vm3549 = vcmask 523264
        %v3551 = vsel %vm3549, %v3513, 0
        %v3554 = vsel %vm3549, %v3514, 0
        %v3557 = vsel %vm3549, %v3515, 0
        %v3560 = vsel %vm3549, %v3516, 0
        %3562 = vmatprep.subr.bf16.mxu0 0
        %3563 = vmatpush1.bf16.msra.mxu0 %v3541
        %3564 = vmatprep.subr.bf16.mxu0 0
        %3565 = vmatpush1.bf16.msra.mxu0 %v3542
        %3566 = vmatprep.subr.bf16.mxu0 0
        %3567 = vmatpush1.bf16.msra.mxu0 %v3543
        %3568 = vmatprep.subr.bf16.mxu0 0
        %3569 = vmatpush1.bf16.msra.mxu0 %v3544
        %3570 = vmatprep.subr.bf16.mxu0 0
        %3571 = vmatpush1.bf16.msra.mxu0 0
        %3572 = vmatprep.subr.bf16.mxu0 0
        %3573 = vmatpush1.bf16.msra.mxu0 0
        %3574 = vmatprep.subr.bf16.mxu0 0
        %3575 = vmatpush1.bf16.msra.mxu0 0
        %3576 = vmatprep.subr.bf16.mxu0 0
        %3577 = vmatpush1.bf16.msra.mxu0 0
        %3578 = vmatprep.subr.bf16.mxu0 0
        %3579 = vmatpush1.bf16.msra.mxu0 0
        %3580 = vmatprep.subr.bf16.mxu0 0
        %3581 = vmatpush1.bf16.msra.mxu0 0
        %3582 = vmatprep.subr.bf16.mxu0 0
        %3583 = vmatpush1.bf16.msra.mxu0 0
        %3584 = vmatprep.subr.bf16.mxu0 0
        %3585 = vmatpush1.bf16.msra.mxu0 0
        %3586 = vmatprep.subr.bf16.mxu0 0
        %3587 = vmatpush1.bf16.msra.mxu0 0
        %3588 = vmatprep.subr.bf16.mxu0 0
        %3589 = vmatpush1.bf16.msra.mxu0 0
        %3590 = vmatprep.subr.bf16.mxu0 0
        %3591 = vmatpush1.bf16.msra.mxu0 0
        %3592 = vmatprep.subr.bf16.mxu0 0
        %3593 = vmatpush1.bf16.msra.mxu0 0
        %3594 = vmatprep.mubr.bf16.mxu0 0
        %3595 = vmatmul.mubr.bf16.gmra.mrb[0].mxu0 %v3551
        %v3596 = vpop.f32.mrb[0].mxu0
        %v3597 = vadd.f32 0.0, %v3596
        %v3598 = vpop.f32.mrb[0].mxu0
        %v3599 = vpop.f32.mrb[0].mxu0
        %v3600 = vadd.f32 0.0, %v3599
        %v3601 = vpop.f32.mrb[0].mxu0
        %3602 = vmatprep.mubr.bf16.mxu0 0
        %3603 = vmatmul.mubr.bf16.gmra.mrb[0].mxu0 %v3554
        %v3604 = vpop.f32.mrb[0].mxu0
        %v3605 = vadd.f32 0.0, %v3604
        %v3606 = vpop.f32.mrb[0].mxu0
        %v3607 = vpop.f32.mrb[0].mxu0
        %v3608 = vadd.f32 0.0, %v3607
        %v3609 = vpop.f32.mrb[0].mxu0
        %3610 = vmatprep.mubr.bf16.mxu0 0
        %3611 = vmatmul.mubr.bf16.gmra.mrb[0].mxu0 %v3557
        %v3612 = vpop.f32.mrb[0].mxu0
        %v3613 = vadd.f32 0.0, %v3612
        %v3614 = vpop.f32.mrb[0].mxu0
        %v3615 = vpop.f32.mrb[0].mxu0
        %v3616 = vadd.f32 0.0, %v3615
        %v3617 = vpop.f32.mrb[0].mxu0
        %3618 = vmatprep.mubr.bf16.mxu0 0
        %3619 = vmatmul.mubr.bf16.gmra.mrb[0].mxu0 %v3560
        %v3620 = vpop.f32.mrb[0].mxu0
        %v3621 = vadd.f32 0.0, %v3620
        %v3622 = vpop.f32.mrb[0].mxu0
        %v3623 = vpop.f32.mrb[0].mxu0
        %v3624 = vadd.f32 0.0, %v3623
        %v3625 = vpop.f32.mrb[0].mxu0
        %3626 = vdwg.mxu0
        %v3627 = vadd.f32 %v3057, %v3597
        %v3628 = vadd.f32 %v3058, %v3600
        %v3629 = vadd.f32 %v3059, %v3605
        %v3630 = vadd.f32 %v3060, %v3608
        %v3631 = vadd.f32 %v3061, %v3613
        %v3632 = vadd.f32 %v3062, %v3616
        %v3633 = vadd.f32 %v3063, %v3621
        %v3634 = vadd.f32 %v3064, %v3624
        %v3635 = vlaneseq
        %v3636 = vshrl.u32 %v3635, 7
        %v3637 = vsub.s32 0, %v3636
        %v3638 = vrot.slane %v473, %v3637
        %v3639 = vadd.f32 %v3627, %v3638
        %v3640 = vadd.f32 %v3628, %v3638
        %v3641 = vadd.f32 %v3629, %v3638
        %v3642 = vadd.f32 %v3630, %v3638
        %v3643 = vadd.f32 %v3631, %v3638
        %v3644 = vadd.f32 %v3632, %v3638
        %v3645 = vadd.f32 %v3633, %v3638
        %v3646 = vadd.f32 %v3634, %v3638
        %v3651 = vcombine.high %v3639, %v3639
        %v3652 = vcombine.high %v3640, %v3640
        %v3653 = vcombine.high %v3641, %v3641
        %v3654 = vcombine.high %v3642, %v3642
        %vm3659 = vcmask 257024
        %3660 = vst.msk [vmem:[%s465] sm:$0xf] %vm3659, %v3639
        %3661 = vst.msk [vmem:[%s465 + $0x8] sm:$0xf] %vm3659, %v3651
        %3662 = vst.msk [vmem:[%s465 + $0x10] sm:$0xf] %vm3659, %v3640
        %3663 = vst.msk [vmem:[%s465 + $0x18] sm:$0xf] %vm3659, %v3652
        %3664 = vst.msk [vmem:[%s465 + $0x20] sm:$0xf] %vm3659, %v3641
        %3665 = vst.msk [vmem:[%s465 + $0x28] sm:$0xf] %vm3659, %v3653
        %3666 = vst.msk [vmem:[%s465 + $0x30] sm:$0xf] %vm3659, %v3642
        %3667 = vst.msk [vmem:[%s465 + $0x38] sm:$0xf] %vm3659, %v3654
        %v3672 = vcombine.high %v3643, %v3643
        %v3673 = vcombine.high %v3644, %v3644
        %v3674 = vcombine.high %v3645, %v3645
        %v3675 = vcombine.high %v3646, %v3646
        %s3680 = scalar_lea.vmem %s465, 4 [#allocation15]
        %3681 = vst.msk [vmem:[%s3680] sm:$0xf] %vm3659, %v3643
        %3682 = vst.msk [vmem:[%s3680 + $0x8] sm:$0xf] %vm3659, %v3672
        %3683 = vst.msk [vmem:[%s3680 + $0x10] sm:$0xf] %vm3659, %v3644
        %3684 = vst.msk [vmem:[%s3680 + $0x18] sm:$0xf] %vm3659, %v3673
        %3685 = vst.msk [vmem:[%s3680 + $0x20] sm:$0xf] %vm3659, %v3645
        %3686 = vst.msk [vmem:[%s3680 + $0x28] sm:$0xf] %vm3659, %v3674
        %3687 = vst.msk [vmem:[%s3680 + $0x30] sm:$0xf] %vm3659, %v3646
        %3688 = vst.msk [vmem:[%s3680 + $0x38] sm:$0xf] %vm3659, %v3675
        %s3689 = sand.u32 %s253, 1
        %s3690 = scalar_lea.sflag [#allocation5], %s3689
        %s3691 = sand.u32 %s253, 1
        %s3692 = smul.addr %s3691, 64
        %s3693 = scalar_lea.vmem [#allocation15], %s3692
        // Predicated region
        $region89: #{tpu_custom_call.1} parent=59 // pred_check
          %p3694 = pneg %p263
        $region90: #{tpu_custom_call.1} parent=59 // pred_check_branch
          %3696 = sbr.rel (%p3694) target = $region92
        $region91: #{tpu_custom_call.1} parent=59 // pred_region
          %s3697 = smul.u32 2, %s30
          %s3699 = ssub.s32 1024, 1024
          %3700 = vsyncadd %s3690, %s3699
          %s3701 = smul.addr %s3697, 8
          %s3702 = smul.addr %s3701, 64
          %s3703 = scalar_lea.hbm %s10, %s3702
          %s3704 = sshll.u32 %s3693, 4
          %s3705 = int_to_ptr.vmem [resolvable:$true] %s3704
          %3710 = dma.vmem_to_hbm [thread:$0]  %s3705, 1024, %s3703, %s3690, 64, 64, 4
        $region92: #{tpu_custom_call.1} parent=59 // pred_fallthru
          _
      $region60: #{tpu_custom_call.1} parent=5 // pred_fallthru
        _
      %p3711 = scmp.le.s32.totalorder 2, %s25
      // Predicated region
      $region93: #{tpu_custom_call.1} parent=5 // pred_check
        %p3712 = pneg %p3711
      $region94: #{tpu_custom_call.1} parent=5 // pred_check_branch
        %3714 = sbr.rel (%p3712) target = $region96
      $region95: #{tpu_custom_call.1} parent=5 // pred_region
        %s3715 = ssub.s32 %s25, 2
        // Predicated region
        $region97: #{tpu_custom_call.1} parent=95 // pred_check
          %p3716 = pneg %p269
        $region98: #{tpu_custom_call.1} parent=95 // pred_check_branch
          %3718 = sbr.rel (%p3716) target = $region100
        $region99: #{tpu_custom_call.1} parent=95 // pred_region
          %s3719 = sand.u32 %s254, 1
          %s3720 = scalar_lea.sflag [#allocation5], %s3719
          %s3721 = sand.u32 %s254, 1
          %s3722 = smul.addr %s3721, 64
          %s3723 = scalar_lea.vmem [#allocation15], %s3722
          %3724 = dma.done %s3720, 1024
        $region100: #{tpu_custom_call.1} parent=95 // pred_fallthru
          _
      $region96: #{tpu_custom_call.1} parent=5 // pred_fallthru
        _
    $region6: #{tpu_custom_call.1} parent=1 // loop_footer
      %s29 = sadd.s32 1, %s25
    $region7: #{tpu_custom_call.1} parent=1 // loop_footer_branch
      %24 = sbr.rel target = $region3
    $region8: #{tpu_custom_call.1} parent=1 // loop_exit
      _
    %3725 = vsyncpa [#allocation4], 1
    %s3726 = scalar_lea.sflag [#allocation4], 1
    %3727 = vsyncpa %s3726, 1
    %3728 = vsyncpa [#allocation7], 1
    %3729 = vsyncpa [#allocation10], 1
    %3730 = vsyncpa [#allocation13], 1
    %3731 = vsyncpa [#allocation5], 1
    %s3732 = scalar_lea.sflag [#allocation5], 1
    %3733 = vsyncpa %s3732, 1

</llo_original>
